<compile_context>
chip_gen: v5e
topology: v5e:2x2
jax: 0.10.0
libtpu: 0.0.40
codegen_flags: <defaults>
</compile_context>

<pallas_src>
import functools
import math

import jax
import jax.numpy as jnp
from jax.experimental import pallas as pl
from jax.experimental.pallas import tpu as pltpu


def _vmem():
    # whole-array block resident in VMEM
    return pl.BlockSpec(memory_space=pltpu.MemorySpace.VMEM)


# --------------------------------------------------------------------------
# Single fused kernel: patch-embed -> L x encoder layer -> mean-pool -> head
# --------------------------------------------------------------------------
def _fused_forward_kernel(
        patches_ref, w_patch_ref, b_patch_ref,
        wqkv_ref, bqkv_ref, wo_ref, bo_ref,
        g1_ref, beta1_ref, wf1_ref, bf1_ref,
        wf2_ref, bf2_ref, g2_ref, beta2_ref,
        g_head_ref, b_head_ln_ref, w_head_ref, b_head_ref,
        attn_mask_ref, pool_ref,
        o_ref, *, num_layers, num_heads, eps=1e-5):
    f32 = jnp.float32
    bf16 = jnp.bfloat16

    # ---- patch embedding on flattened tokens: (B*Np, PDpad) @ (PDpad, D) ----
    x = jnp.dot(patches_ref[...], w_patch_ref[...],
                preferred_element_type=f32) + b_patch_ref[...]
    BN, D = x.shape
    hd = D // num_heads
    scale = 1.0 / math.sqrt(hd)

    # additive mask: 0 inside a batch block, -1e30 across batch elements
    attn_mask = attn_mask_ref[...]                       # (BN, BN) f32

    for l in range(num_layers):                          # static layer loop
        # ---- multi-head self-attention (post-norm PyTorch defaults) ----
        qkv = jnp.dot(x.astype(bf16), wqkv_ref[l],
                      preferred_element_type=f32) + bqkv_ref[l]      # (BN, 3D)
        q, k, v = qkv[:, 0:D], qkv[:, D:2 * D], qkv[:, 2 * D:3 * D]

        attn = jnp.zeros((BN, D), f32)
        for h in range(num_heads):                       # static head loop
            sl = slice(h * hd, (h + 1) * hd)
            qh, kh, vh = q[:, sl], k[:, sl], v[:, sl]    # (BN, hd)
            # scores over ALL tokens at once; cross-batch pairs masked out
            s = jax.lax.dot_general(qh, kh, (((1,), (1,)), ((), ())),
                                    preferred_element_type=f32)
            s = s * scale + attn_mask                    # (BN, BN)
            s = s - jnp.max(s, axis=-1, keepdims=True)
            p = jnp.exp(s)
            p = p * pl.reciprocal(jnp.sum(p, axis=-1, keepdims=True),
                                  approx=True)
            ctx = jnp.dot(p, vh, preferred_element_type=f32)         # (BN, hd)
            # fold out-projection per head (avoids the 8-way lane concat)
            attn = attn + jnp.dot(ctx.astype(bf16),
                                  wo_ref[l, h * hd:(h + 1) * hd, :],
                                  preferred_element_type=f32)
        attn = attn + bo_ref[l]

        # ---- residual + LayerNorm 1 (dropout == identity in eval) ----
        h1 = x + attn
        mu = jnp.mean(h1, axis=-1, keepdims=True)
        var = jnp.mean((h1 - mu) ** 2, axis=-1, keepdims=True)
        h1 = (h1 - mu) * jax.lax.rsqrt(var + eps) * g1_ref[l] + beta1_ref[l]

        # ---- feed-forward (Linear -> ReLU -> Linear) ----
        ff = jnp.dot(h1.astype(bf16), wf1_ref[l],
                     preferred_element_type=f32) + bf1_ref[l]
        ff = jnp.maximum(ff, 0.0)
        ff = jnp.dot(ff.astype(bf16), wf2_ref[l],
                     preferred_element_type=f32) + bf2_ref[l]

        # ---- residual + LayerNorm 2 ----
        h2 = h1 + ff
        mu2 = jnp.mean(h2, axis=-1, keepdims=True)
        var2 = jnp.mean((h2 - mu2) ** 2, axis=-1, keepdims=True)
        x = (h2 - mu2) * jax.lax.rsqrt(var2 + eps) * g2_ref[l] + beta2_ref[l]

    # ---- mean over sequence (tiny pooling matmul) -> LayerNorm -> head ----
    pooled = jnp.dot(pool_ref[...], x, preferred_element_type=f32)   # (B, D)
    mu = jnp.mean(pooled, axis=-1, keepdims=True)
    var = jnp.mean((pooled - mu) ** 2, axis=-1, keepdims=True)
    nrm = (pooled - mu) * jax.lax.rsqrt(var + eps) * g_head_ref[...] \
        + b_head_ln_ref[...]
    logits = jnp.dot(nrm.astype(bf16), w_head_ref[...],
                     preferred_element_type=f32) + b_head_ref[...]   # (B, Cpad)
    o_ref[...] = logits.astype(o_ref.dtype)


# --------------------------------------------------------------------------
# Glue: non-overlapping patch extraction (== Conv2d(k=p, stride=p) unfolding)
# --------------------------------------------------------------------------
def extract_patches(x_nchw, patch_size):
    B, C, H, W = x_nchw.shape
    p = patch_size
    gh, gw = H // p, W // p
    x = x_nchw.reshape(B, C, gh, p, gw, p)
    x = x.transpose(0, 2, 4, 1, 3, 5)                    # (B, gh, gw, C, p, p)
    return x.reshape(B, gh * gw, C * p * p)              # (B, Np, C*p*p)


def custom_image_classifier(x_nchw, params, *, patch_size, num_heads,
                            num_classes):
    B = x_nchw.shape[0]
    patches = extract_patches(x_nchw, patch_size)        # (B, Np, C*p*p)
    Np, pd = patches.shape[1], patches.shape[2]
    pd_pad = params["w_patch"].shape[0]
    BN = B * Np

    patches = patches.reshape(BN, pd)
    patches = jnp.pad(patches, ((0, 0), (0, pd_pad - pd))).astype(jnp.bfloat16)

    # constants: batch-block attention mask and mean-pooling matrix
    blk = jnp.arange(BN) // Np
    attn_mask = jnp.where(blk[:, None] == blk[None, :],
                          0.0, -1e30).astype(jnp.float32)            # (BN, BN)
    pool = (blk[None, :] == jnp.arange(B)[:, None]).astype(jnp.float32) / Np

    num_layers = params["wqkv"].shape[0]
    c_pad = params["w_head"].shape[1]

    kernel = functools.partial(_fused_forward_kernel,
                               num_layers=num_layers, num_heads=num_heads)
    logits_pad = pl.pallas_call(
        kernel,
        out_shape=jax.ShapeDtypeStruct((B, c_pad), jnp.float32),
        in_specs=[_vmem() for _ in range(21)],
        out_specs=_vmem(),
    )(patches, params["w_patch"], params["b_patch"],
      params["wqkv"], params["bqkv"], params["wo"], params["bo"],
      params["g1"], params["beta1"], params["wf1"], params["bf1"],
      params["wf2"], params["bf2"], params["g2"], params["beta2"],
      params["g_head"], params["b_head_ln"], params["w_head"], params["b_head"],
      attn_mask, pool)
    return logits_pad[:, :num_classes]                   # lane-dense -> 10


# --------------------------------------------------------------------------
# Deterministic synthetic parameter initialization
#   MXU weights in bf16 (stacked over layers); biases / LN params in f32.
# --------------------------------------------------------------------------
def init_params(key, *, channels, patch_size, embed_dim, num_layers,
                mlp_dim, num_classes, lane=128):
    pd = channels * patch_size * patch_size
    pd_pad = ((pd + lane - 1) // lane) * lane
    c_pad = max(lane, ((num_classes + lane - 1) // lane) * lane)
    D, F, L = embed_dim, mlp_dim, num_layers
    s = 0.02
    ks = iter(jax.random.split(key, 16))

    def nrm(shape):
        return jax.random.normal(next(ks), shape, jnp.float32) * s

    w_patch = jnp.zeros((pd_pad, D), jnp.float32).at[:pd].set(nrm((pd, D)))
    w_head = jnp.zeros((D, c_pad), jnp.float32).at[:, :num_classes].set(
        nrm((D, num_classes)))

    return {
        "w_patch": w_patch.astype(jnp.bfloat16),
        "b_patch": jnp.zeros((1, D), jnp.float32),
        "wqkv": nrm((L, D, 3 * D)).astype(jnp.bfloat16),
        "bqkv": jnp.zeros((L, 1, 3 * D), jnp.float32),
        "wo": nrm((L, D, D)).astype(jnp.bfloat16),
        "bo": jnp.zeros((L, 1, D), jnp.float32),
        "g1": jnp.ones((L, 1, D), jnp.float32),
        "beta1": jnp.zeros((L, 1, D), jnp.float32),
        "wf1": nrm((L, D, F)).astype(jnp.bfloat16),
        "bf1": jnp.zeros((L, 1, F), jnp.float32),
        "wf2": nrm((L, F, D)).astype(jnp.bfloat16),
        "bf2": jnp.zeros((L, 1, D), jnp.float32),
        "g2": jnp.ones((L, 1, D), jnp.float32),
        "beta2": jnp.zeros((L, 1, D), jnp.float32),
        "g_head": jnp.ones((1, D), jnp.float32),
        "b_head_ln": jnp.zeros((1, D), jnp.float32),
        "w_head": w_head.astype(jnp.bfloat16),
        "b_head": jnp.zeros((1, c_pad), jnp.float32),
    }


if __name__ == "__main__":
    # Small shapes consistent with the module's forward:
    # batch=2, channels=3, 28x28 images, patch_size=14 -> 4 patches,
    # embed_dim=128, 8 heads, 2 encoder layers, mlp_dim=256, 10 classes.
    batch, channels, height, width = 2, 3, 28, 28
    patch_size, embed_dim, num_heads = 14, 128, 8
    num_layers, mlp_dim, num_classes = 2, 256, 10

    key = jax.random.PRNGKey(0)
    k_x, k_p = jax.random.split(key)
    x = jax.random.normal(k_x, (batch, channels, height, width), jnp.float32)
    params = init_params(k_p, channels=channels, patch_size=patch_size,
                         embed_dim=embed_dim, num_layers=num_layers,
                         mlp_dim=mlp_dim, num_classes=num_classes)

    fwd = jax.jit(functools.partial(custom_image_classifier,
                                    patch_size=patch_size, num_heads=num_heads,
                                    num_classes=num_classes))
    logits = fwd(x, params)
    jax.block_until_ready(logits)
    assert logits.shape == (batch, num_classes)
    print("KERNEL_OK")
</pallas_src>

<mosaic_0001>
module attributes {stable_mosaic.version = 11 : i64} {
  func.func @_fused_forward_kernel(%arg0: memref<8x640xbf16, #tpu.memory_space<vmem>>, %arg1: memref<640x128xbf16, #tpu.memory_space<vmem>>, %arg2: memref<1x128xf32, #tpu.memory_space<vmem>>, %arg3: memref<2x128x384xbf16, #tpu.memory_space<vmem>>, %arg4: memref<2x1x384xf32, #tpu.memory_space<vmem>>, %arg5: memref<2x128x128xbf16, #tpu.memory_space<vmem>>, %arg6: memref<2x1x128xf32, #tpu.memory_space<vmem>>, %arg7: memref<2x1x128xf32, #tpu.memory_space<vmem>>, %arg8: memref<2x1x128xf32, #tpu.memory_space<vmem>>, %arg9: memref<2x128x256xbf16, #tpu.memory_space<vmem>>, %arg10: memref<2x1x256xf32, #tpu.memory_space<vmem>>, %arg11: memref<2x256x128xbf16, #tpu.memory_space<vmem>>, %arg12: memref<2x1x128xf32, #tpu.memory_space<vmem>>, %arg13: memref<2x1x128xf32, #tpu.memory_space<vmem>>, %arg14: memref<2x1x128xf32, #tpu.memory_space<vmem>>, %arg15: memref<1x128xf32, #tpu.memory_space<vmem>>, %arg16: memref<1x128xf32, #tpu.memory_space<vmem>>, %arg17: memref<128x128xbf16, #tpu.memory_space<vmem>>, %arg18: memref<1x128xf32, #tpu.memory_space<vmem>>, %arg19: memref<8x8xf32, #tpu.memory_space<vmem>>, %arg20: memref<2x8xf32, #tpu.memory_space<vmem>>, %arg21: memref<2x128xf32, #tpu.memory_space<vmem>>) attributes {dimension_semantics = [], scalar_prefetch = 0 : i64, scratch_operands = 0 : i64, tpu.core_type = #tpu.core_type<tc>} {
    %c0 = arith.constant 0 : index
    %c0_0 = arith.constant 0 : index
    %0 = vector.load %arg0[%c0, %c0_0] : memref<8x640xbf16, #tpu.memory_space<vmem>>, vector<8x640xbf16>
    %c0_1 = arith.constant 0 : index
    %c0_2 = arith.constant 0 : index
    %1 = vector.load %arg1[%c0_1, %c0_2] : memref<640x128xbf16, #tpu.memory_space<vmem>>, vector<640x128xbf16>
    %cst = arith.constant dense<0.000000e+00> : vector<8x128xf32>
    %2 = tpu.matmul %0, %1, %cst {dimension_numbers = #tpu.dot_dimension_numbers<[1], [0], [0], [1], [0, 0, 1, 1], [], []>} : vector<8x640xbf16>, vector<640x128xbf16>, vector<8x128xf32> -> vector<8x128xf32>
    %c0_3 = arith.constant 0 : index
    %c0_4 = arith.constant 0 : index
    %3 = vector.load %arg2[%c0_3, %c0_4] : memref<1x128xf32, #tpu.memory_space<vmem>>, vector<1x128xf32>
    %4 = vector.broadcast %3 : vector<1x128xf32> to vector<8x128xf32>
    %5 = arith.addf %2, %4 : vector<8x128xf32>
    %c0_5 = arith.constant 0 : index
    %c0_6 = arith.constant 0 : index
    %6 = vector.load %arg19[%c0_5, %c0_6] : memref<8x8xf32, #tpu.memory_space<vmem>>, vector<8x8xf32>
    %7 = arith.truncf %5 : vector<8x128xf32> to vector<8x128xbf16>
    %c0_7 = arith.constant 0 : index
    %c0_8 = arith.constant 0 : index
    %c0_9 = arith.constant 0 : index
    %8 = vector.load %arg3[%c0_7, %c0_8, %c0_9] : memref<2x128x384xbf16, #tpu.memory_space<vmem>>, vector<1x128x384xbf16>
    %9 = vector.shape_cast %8 : vector<1x128x384xbf16> to vector<128x384xbf16>
    %cst_10 = arith.constant dense<0.000000e+00> : vector<8x384xf32>
    %10 = tpu.matmul %7, %9, %cst_10 {dimension_numbers = #tpu.dot_dimension_numbers<[1], [0], [0], [1], [0, 0, 1, 1], [], []>} : vector<8x128xbf16>, vector<128x384xbf16>, vector<8x384xf32> -> vector<8x384xf32>
    %c0_11 = arith.constant 0 : index
    %c0_12 = arith.constant 0 : index
    %c0_13 = arith.constant 0 : index
    %11 = vector.load %arg4[%c0_11, %c0_12, %c0_13] : memref<2x1x384xf32, #tpu.memory_space<vmem>>, vector<1x1x384xf32>
    %12 = vector.shape_cast %11 : vector<1x1x384xf32> to vector<1x384xf32>
    %13 = vector.broadcast %12 : vector<1x384xf32> to vector<8x384xf32>
    %14 = arith.addf %10, %13 : vector<8x384xf32>
    %15 = vector.extract_strided_slice %14 {offsets = [0, 0], sizes = [8, 128], strides = [1, 1]} : vector<8x384xf32> to vector<8x128xf32>
    %16 = vector.extract_strided_slice %14 {offsets = [0, 128], sizes = [8, 128], strides = [1, 1]} : vector<8x384xf32> to vector<8x128xf32>
    %17 = vector.extract_strided_slice %14 {offsets = [0, 256], sizes = [8, 128], strides = [1, 1]} : vector<8x384xf32> to vector<8x128xf32>
    %cst_14 = arith.constant 0.000000e+00 : f32
    %18 = vector.broadcast %cst_14 : f32 to vector<8x128xf32>
    %19 = vector.extract_strided_slice %15 {offsets = [0, 0], sizes = [8, 16], strides = [1, 1]} : vector<8x128xf32> to vector<8x16xf32>
    %20 = vector.extract_strided_slice %16 {offsets = [0, 0], sizes = [8, 16], strides = [1, 1]} : vector<8x128xf32> to vector<8x16xf32>
    %21 = vector.extract_strided_slice %17 {offsets = [0, 0], sizes = [8, 16], strides = [1, 1]} : vector<8x128xf32> to vector<8x16xf32>
    %cst_15 = arith.constant dense<0.000000e+00> : vector<8x8xf32>
    %22 = tpu.matmul %19, %20, %cst_15 {dimension_numbers = #tpu.dot_dimension_numbers<[1], [1], [0], [0], [0, 0, 1, 0], [], []>} : vector<8x16xf32>, vector<8x16xf32>, vector<8x8xf32> -> vector<8x8xf32>
    %cst_16 = arith.constant 2.500000e-01 : f32
    %23 = vector.broadcast %cst_16 : f32 to vector<8x8xf32>
    %24 = arith.mulf %22, %23 : vector<8x8xf32>
    %25 = arith.addf %24, %6 : vector<8x8xf32>
    %cst_17 = arith.constant dense<0xFF800000> : vector<8xf32>
    %26 = vector.multi_reduction <maximumf>, %25, %cst_17 [1] : vector<8x8xf32> to vector<8xf32>
    %27 = vector.shape_cast %26 : vector<8xf32> to vector<8x1xf32>
    %28 = vector.broadcast %27 : vector<8x1xf32> to vector<8x8xf32>
    %29 = arith.subf %25, %28 : vector<8x8xf32>
    %30 = math.exp %29 : vector<8x8xf32>
    %cst_18 = arith.constant dense<0.000000e+00> : vector<8xf32>
    %31 = vector.multi_reduction <add>, %30, %cst_18 [1] : vector<8x8xf32> to vector<8xf32>
    %32 = vector.shape_cast %31 : vector<8xf32> to vector<8x1xf32>
    %33 = tpu.reciprocal %32 {approx = true} : vector<8x1xf32> -> vector<8x1xf32>
    %34 = vector.broadcast %33 : vector<8x1xf32> to vector<8x8xf32>
    %35 = arith.mulf %30, %34 : vector<8x8xf32>
    %cst_19 = arith.constant dense<0.000000e+00> : vector<8x16xf32>
    %36 = tpu.matmul %35, %21, %cst_19 {dimension_numbers = #tpu.dot_dimension_numbers<[1], [0], [0], [1], [0, 0, 1, 1], [], []>} : vector<8x8xf32>, vector<8x16xf32>, vector<8x16xf32> -> vector<8x16xf32>
    %37 = arith.truncf %36 : vector<8x16xf32> to vector<8x16xbf16>
    %c0_20 = arith.constant 0 : index
    %c0_21 = arith.constant 0 : index
    %c0_22 = arith.constant 0 : index
    %38 = vector.load %arg5[%c0_20, %c0_21, %c0_22] : memref<2x128x128xbf16, #tpu.memory_space<vmem>>, vector<1x16x128xbf16>
    %39 = vector.shape_cast %38 : vector<1x16x128xbf16> to vector<16x128xbf16>
    %cst_23 = arith.constant dense<0.000000e+00> : vector<8x128xf32>
    %40 = tpu.matmul %37, %39, %cst_23 {dimension_numbers = #tpu.dot_dimension_numbers<[1], [0], [0], [1], [0, 0, 1, 1], [], []>} : vector<8x16xbf16>, vector<16x128xbf16>, vector<8x128xf32> -> vector<8x128xf32>
    %41 = arith.addf %18, %40 : vector<8x128xf32>
    %42 = vector.extract_strided_slice %15 {offsets = [0, 16], sizes = [8, 16], strides = [1, 1]} : vector<8x128xf32> to vector<8x16xf32>
    %43 = vector.extract_strided_slice %16 {offsets = [0, 16], sizes = [8, 16], strides = [1, 1]} : vector<8x128xf32> to vector<8x16xf32>
    %44 = vector.extract_strided_slice %17 {offsets = [0, 16], sizes = [8, 16], strides = [1, 1]} : vector<8x128xf32> to vector<8x16xf32>
    %cst_24 = arith.constant dense<0.000000e+00> : vector<8x8xf32>
    %45 = tpu.matmul %42, %43, %cst_24 {dimension_numbers = #tpu.dot_dimension_numbers<[1], [1], [0], [0], [0, 0, 1, 0], [], []>} : vector<8x16xf32>, vector<8x16xf32>, vector<8x8xf32> -> vector<8x8xf32>
    %cst_25 = arith.constant 2.500000e-01 : f32
    %46 = vector.broadcast %cst_25 : f32 to vector<8x8xf32>
    %47 = arith.mulf %45, %46 : vector<8x8xf32>
    %48 = arith.addf %47, %6 : vector<8x8xf32>
    %cst_26 = arith.constant dense<0xFF800000> : vector<8xf32>
    %49 = vector.multi_reduction <maximumf>, %48, %cst_26 [1] : vector<8x8xf32> to vector<8xf32>
    %50 = vector.shape_cast %49 : vector<8xf32> to vector<8x1xf32>
    %51 = vector.broadcast %50 : vector<8x1xf32> to vector<8x8xf32>
    %52 = arith.subf %48, %51 : vector<8x8xf32>
    %53 = math.exp %52 : vector<8x8xf32>
    %cst_27 = arith.constant dense<0.000000e+00> : vector<8xf32>
    %54 = vector.multi_reduction <add>, %53, %cst_27 [1] : vector<8x8xf32> to vector<8xf32>
    %55 = vector.shape_cast %54 : vector<8xf32> to vector<8x1xf32>
    %56 = tpu.reciprocal %55 {approx = true} : vector<8x1xf32> -> vector<8x1xf32>
    %57 = vector.broadcast %56 : vector<8x1xf32> to vector<8x8xf32>
    %58 = arith.mulf %53, %57 : vector<8x8xf32>
    %cst_28 = arith.constant dense<0.000000e+00> : vector<8x16xf32>
    %59 = tpu.matmul %58, %44, %cst_28 {dimension_numbers = #tpu.dot_dimension_numbers<[1], [0], [0], [1], [0, 0, 1, 1], [], []>} : vector<8x8xf32>, vector<8x16xf32>, vector<8x16xf32> -> vector<8x16xf32>
    %60 = arith.truncf %59 : vector<8x16xf32> to vector<8x16xbf16>
    %c0_29 = arith.constant 0 : index
    %c16 = arith.constant 16 : index
    %c0_30 = arith.constant 0 : index
    %61 = vector.load %arg5[%c0_29, %c16, %c0_30] : memref<2x128x128xbf16, #tpu.memory_space<vmem>>, vector<1x16x128xbf16>
    %62 = vector.shape_cast %61 : vector<1x16x128xbf16> to vector<16x128xbf16>
    %cst_31 = arith.constant dense<0.000000e+00> : vector<8x128xf32>
    %63 = tpu.matmul %60, %62, %cst_31 {dimension_numbers = #tpu.dot_dimension_numbers<[1], [0], [0], [1], [0, 0, 1, 1], [], []>} : vector<8x16xbf16>, vector<16x128xbf16>, vector<8x128xf32> -> vector<8x128xf32>
    %64 = arith.addf %41, %63 : vector<8x128xf32>
    %65 = vector.extract_strided_slice %15 {offsets = [0, 32], sizes = [8, 16], strides = [1, 1]} : vector<8x128xf32> to vector<8x16xf32>
    %66 = vector.extract_strided_slice %16 {offsets = [0, 32], sizes = [8, 16], strides = [1, 1]} : vector<8x128xf32> to vector<8x16xf32>
    %67 = vector.extract_strided_slice %17 {offsets = [0, 32], sizes = [8, 16], strides = [1, 1]} : vector<8x128xf32> to vector<8x16xf32>
    %cst_32 = arith.constant dense<0.000000e+00> : vector<8x8xf32>
    %68 = tpu.matmul %65, %66, %cst_32 {dimension_numbers = #tpu.dot_dimension_numbers<[1], [1], [0], [0], [0, 0, 1, 0], [], []>} : vector<8x16xf32>, vector<8x16xf32>, vector<8x8xf32> -> vector<8x8xf32>
    %cst_33 = arith.constant 2.500000e-01 : f32
    %69 = vector.broadcast %cst_33 : f32 to vector<8x8xf32>
    %70 = arith.mulf %68, %69 : vector<8x8xf32>
    %71 = arith.addf %70, %6 : vector<8x8xf32>
    %cst_34 = arith.constant dense<0xFF800000> : vector<8xf32>
    %72 = vector.multi_reduction <maximumf>, %71, %cst_34 [1] : vector<8x8xf32> to vector<8xf32>
    %73 = vector.shape_cast %72 : vector<8xf32> to vector<8x1xf32>
    %74 = vector.broadcast %73 : vector<8x1xf32> to vector<8x8xf32>
    %75 = arith.subf %71, %74 : vector<8x8xf32>
    %76 = math.exp %75 : vector<8x8xf32>
    %cst_35 = arith.constant dense<0.000000e+00> : vector<8xf32>
    %77 = vector.multi_reduction <add>, %76, %cst_35 [1] : vector<8x8xf32> to vector<8xf32>
    %78 = vector.shape_cast %77 : vector<8xf32> to vector<8x1xf32>
    %79 = tpu.reciprocal %78 {approx = true} : vector<8x1xf32> -> vector<8x1xf32>
    %80 = vector.broadcast %79 : vector<8x1xf32> to vector<8x8xf32>
    %81 = arith.mulf %76, %80 : vector<8x8xf32>
    %cst_36 = arith.constant dense<0.000000e+00> : vector<8x16xf32>
    %82 = tpu.matmul %81, %67, %cst_36 {dimension_numbers = #tpu.dot_dimension_numbers<[1], [0], [0], [1], [0, 0, 1, 1], [], []>} : vector<8x8xf32>, vector<8x16xf32>, vector<8x16xf32> -> vector<8x16xf32>
    %83 = arith.truncf %82 : vector<8x16xf32> to vector<8x16xbf16>
    %c0_37 = arith.constant 0 : index
    %c32 = arith.constant 32 : index
    %c0_38 = arith.constant 0 : index
    %84 = vector.load %arg5[%c0_37, %c32, %c0_38] : memref<2x128x128xbf16, #tpu.memory_space<vmem>>, vector<1x16x128xbf16>
    %85 = vector.shape_cast %84 : vector<1x16x128xbf16> to vector<16x128xbf16>
    %cst_39 = arith.constant dense<0.000000e+00> : vector<8x128xf32>
    %86 = tpu.matmul %83, %85, %cst_39 {dimension_numbers = #tpu.dot_dimension_numbers<[1], [0], [0], [1], [0, 0, 1, 1], [], []>} : vector<8x16xbf16>, vector<16x128xbf16>, vector<8x128xf32> -> vector<8x128xf32>
    %87 = arith.addf %64, %86 : vector<8x128xf32>
    %88 = vector.extract_strided_slice %15 {offsets = [0, 48], sizes = [8, 16], strides = [1, 1]} : vector<8x128xf32> to vector<8x16xf32>
    %89 = vector.extract_strided_slice %16 {offsets = [0, 48], sizes = [8, 16], strides = [1, 1]} : vector<8x128xf32> to vector<8x16xf32>
    %90 = vector.extract_strided_slice %17 {offsets = [0, 48], sizes = [8, 16], strides = [1, 1]} : vector<8x128xf32> to vector<8x16xf32>
    %cst_40 = arith.constant dense<0.000000e+00> : vector<8x8xf32>
    %91 = tpu.matmul %88, %89, %cst_40 {dimension_numbers = #tpu.dot_dimension_numbers<[1], [1], [0], [0], [0, 0, 1, 0], [], []>} : vector<8x16xf32>, vector<8x16xf32>, vector<8x8xf32> -> vector<8x8xf32>
    %cst_41 = arith.constant 2.500000e-01 : f32
    %92 = vector.broadcast %cst_41 : f32 to vector<8x8xf32>
    %93 = arith.mulf %91, %92 : vector<8x8xf32>
    %94 = arith.addf %93, %6 : vector<8x8xf32>
    %cst_42 = arith.constant dense<0xFF800000> : vector<8xf32>
    %95 = vector.multi_reduction <maximumf>, %94, %cst_42 [1] : vector<8x8xf32> to vector<8xf32>
    %96 = vector.shape_cast %95 : vector<8xf32> to vector<8x1xf32>
    %97 = vector.broadcast %96 : vector<8x1xf32> to vector<8x8xf32>
    %98 = arith.subf %94, %97 : vector<8x8xf32>
    %99 = math.exp %98 : vector<8x8xf32>
    %cst_43 = arith.constant dense<0.000000e+00> : vector<8xf32>
    %100 = vector.multi_reduction <add>, %99, %cst_43 [1] : vector<8x8xf32> to vector<8xf32>
    %101 = vector.shape_cast %100 : vector<8xf32> to vector<8x1xf32>
    %102 = tpu.reciprocal %101 {approx = true} : vector<8x1xf32> -> vector<8x1xf32>
    %103 = vector.broadcast %102 : vector<8x1xf32> to vector<8x8xf32>
    %104 = arith.mulf %99, %103 : vector<8x8xf32>
    %cst_44 = arith.constant dense<0.000000e+00> : vector<8x16xf32>
    %105 = tpu.matmul %104, %90, %cst_44 {dimension_numbers = #tpu.dot_dimension_numbers<[1], [0], [0], [1], [0, 0, 1, 1], [], []>} : vector<8x8xf32>, vector<8x16xf32>, vector<8x16xf32> -> vector<8x16xf32>
    %106 = arith.truncf %105 : vector<8x16xf32> to vector<8x16xbf16>
    %c0_45 = arith.constant 0 : index
    %c48 = arith.constant 48 : index
    %c0_46 = arith.constant 0 : index
    %107 = vector.load %arg5[%c0_45, %c48, %c0_46] : memref<2x128x128xbf16, #tpu.memory_space<vmem>>, vector<1x16x128xbf16>
    %108 = vector.shape_cast %107 : vector<1x16x128xbf16> to vector<16x128xbf16>
    %cst_47 = arith.constant dense<0.000000e+00> : vector<8x128xf32>
    %109 = tpu.matmul %106, %108, %cst_47 {dimension_numbers = #tpu.dot_dimension_numbers<[1], [0], [0], [1], [0, 0, 1, 1], [], []>} : vector<8x16xbf16>, vector<16x128xbf16>, vector<8x128xf32> -> vector<8x128xf32>
    %110 = arith.addf %87, %109 : vector<8x128xf32>
    %111 = vector.extract_strided_slice %15 {offsets = [0, 64], sizes = [8, 16], strides = [1, 1]} : vector<8x128xf32> to vector<8x16xf32>
    %112 = vector.extract_strided_slice %16 {offsets = [0, 64], sizes = [8, 16], strides = [1, 1]} : vector<8x128xf32> to vector<8x16xf32>
    %113 = vector.extract_strided_slice %17 {offsets = [0, 64], sizes = [8, 16], strides = [1, 1]} : vector<8x128xf32> to vector<8x16xf32>
    %cst_48 = arith.constant dense<0.000000e+00> : vector<8x8xf32>
    %114 = tpu.matmul %111, %112, %cst_48 {dimension_numbers = #tpu.dot_dimension_numbers<[1], [1], [0], [0], [0, 0, 1, 0], [], []>} : vector<8x16xf32>, vector<8x16xf32>, vector<8x8xf32> -> vector<8x8xf32>
    %cst_49 = arith.constant 2.500000e-01 : f32
    %115 = vector.broadcast %cst_49 : f32 to vector<8x8xf32>
    %116 = arith.mulf %114, %115 : vector<8x8xf32>
    %117 = arith.addf %116, %6 : vector<8x8xf32>
    %cst_50 = arith.constant dense<0xFF800000> : vector<8xf32>
    %118 = vector.multi_reduction <maximumf>, %117, %cst_50 [1] : vector<8x8xf32> to vector<8xf32>
    %119 = vector.shape_cast %118 : vector<8xf32> to vector<8x1xf32>
    %120 = vector.broadcast %119 : vector<8x1xf32> to vector<8x8xf32>
    %121 = arith.subf %117, %120 : vector<8x8xf32>
    %122 = math.exp %121 : vector<8x8xf32>
    %cst_51 = arith.constant dense<0.000000e+00> : vector<8xf32>
    %123 = vector.multi_reduction <add>, %122, %cst_51 [1] : vector<8x8xf32> to vector<8xf32>
    %124 = vector.shape_cast %123 : vector<8xf32> to vector<8x1xf32>
    %125 = tpu.reciprocal %124 {approx = true} : vector<8x1xf32> -> vector<8x1xf32>
    %126 = vector.broadcast %125 : vector<8x1xf32> to vector<8x8xf32>
    %127 = arith.mulf %122, %126 : vector<8x8xf32>
    %cst_52 = arith.constant dense<0.000000e+00> : vector<8x16xf32>
    %128 = tpu.matmul %127, %113, %cst_52 {dimension_numbers = #tpu.dot_dimension_numbers<[1], [0], [0], [1], [0, 0, 1, 1], [], []>} : vector<8x8xf32>, vector<8x16xf32>, vector<8x16xf32> -> vector<8x16xf32>
    %129 = arith.truncf %128 : vector<8x16xf32> to vector<8x16xbf16>
    %c0_53 = arith.constant 0 : index
    %c64 = arith.constant 64 : index
    %c0_54 = arith.constant 0 : index
    %130 = vector.load %arg5[%c0_53, %c64, %c0_54] : memref<2x128x128xbf16, #tpu.memory_space<vmem>>, vector<1x16x128xbf16>
    %131 = vector.shape_cast %130 : vector<1x16x128xbf16> to vector<16x128xbf16>
    %cst_55 = arith.constant dense<0.000000e+00> : vector<8x128xf32>
    %132 = tpu.matmul %129, %131, %cst_55 {dimension_numbers = #tpu.dot_dimension_numbers<[1], [0], [0], [1], [0, 0, 1, 1], [], []>} : vector<8x16xbf16>, vector<16x128xbf16>, vector<8x128xf32> -> vector<8x128xf32>
    %133 = arith.addf %110, %132 : vector<8x128xf32>
    %134 = vector.extract_strided_slice %15 {offsets = [0, 80], sizes = [8, 16], strides = [1, 1]} : vector<8x128xf32> to vector<8x16xf32>
    %135 = vector.extract_strided_slice %16 {offsets = [0, 80], sizes = [8, 16], strides = [1, 1]} : vector<8x128xf32> to vector<8x16xf32>
    %136 = vector.extract_strided_slice %17 {offsets = [0, 80], sizes = [8, 16], strides = [1, 1]} : vector<8x128xf32> to vector<8x16xf32>
    %cst_56 = arith.constant dense<0.000000e+00> : vector<8x8xf32>
    %137 = tpu.matmul %134, %135, %cst_56 {dimension_numbers = #tpu.dot_dimension_numbers<[1], [1], [0], [0], [0, 0, 1, 0], [], []>} : vector<8x16xf32>, vector<8x16xf32>, vector<8x8xf32> -> vector<8x8xf32>
    %cst_57 = arith.constant 2.500000e-01 : f32
    %138 = vector.broadcast %cst_57 : f32 to vector<8x8xf32>
    %139 = arith.mulf %137, %138 : vector<8x8xf32>
    %140 = arith.addf %139, %6 : vector<8x8xf32>
    %cst_58 = arith.constant dense<0xFF800000> : vector<8xf32>
    %141 = vector.multi_reduction <maximumf>, %140, %cst_58 [1] : vector<8x8xf32> to vector<8xf32>
    %142 = vector.shape_cast %141 : vector<8xf32> to vector<8x1xf32>
    %143 = vector.broadcast %142 : vector<8x1xf32> to vector<8x8xf32>
    %144 = arith.subf %140, %143 : vector<8x8xf32>
    %145 = math.exp %144 : vector<8x8xf32>
    %cst_59 = arith.constant dense<0.000000e+00> : vector<8xf32>
    %146 = vector.multi_reduction <add>, %145, %cst_59 [1] : vector<8x8xf32> to vector<8xf32>
    %147 = vector.shape_cast %146 : vector<8xf32> to vector<8x1xf32>
    %148 = tpu.reciprocal %147 {approx = true} : vector<8x1xf32> -> vector<8x1xf32>
    %149 = vector.broadcast %148 : vector<8x1xf32> to vector<8x8xf32>
    %150 = arith.mulf %145, %149 : vector<8x8xf32>
    %cst_60 = arith.constant dense<0.000000e+00> : vector<8x16xf32>
    %151 = tpu.matmul %150, %136, %cst_60 {dimension_numbers = #tpu.dot_dimension_numbers<[1], [0], [0], [1], [0, 0, 1, 1], [], []>} : vector<8x8xf32>, vector<8x16xf32>, vector<8x16xf32> -> vector<8x16xf32>
    %152 = arith.truncf %151 : vector<8x16xf32> to vector<8x16xbf16>
    %c0_61 = arith.constant 0 : index
    %c80 = arith.constant 80 : index
    %c0_62 = arith.constant 0 : index
    %153 = vector.load %arg5[%c0_61, %c80, %c0_62] : memref<2x128x128xbf16, #tpu.memory_space<vmem>>, vector<1x16x128xbf16>
    %154 = vector.shape_cast %153 : vector<1x16x128xbf16> to vector<16x128xbf16>
    %cst_63 = arith.constant dense<0.000000e+00> : vector<8x128xf32>
    %155 = tpu.matmul %152, %154, %cst_63 {dimension_numbers = #tpu.dot_dimension_numbers<[1], [0], [0], [1], [0, 0, 1, 1], [], []>} : vector<8x16xbf16>, vector<16x128xbf16>, vector<8x128xf32> -> vector<8x128xf32>
    %156 = arith.addf %133, %155 : vector<8x128xf32>
    %157 = vector.extract_strided_slice %15 {offsets = [0, 96], sizes = [8, 16], strides = [1, 1]} : vector<8x128xf32> to vector<8x16xf32>
    %158 = vector.extract_strided_slice %16 {offsets = [0, 96], sizes = [8, 16], strides = [1, 1]} : vector<8x128xf32> to vector<8x16xf32>
    %159 = vector.extract_strided_slice %17 {offsets = [0, 96], sizes = [8, 16], strides = [1, 1]} : vector<8x128xf32> to vector<8x16xf32>
    %cst_64 = arith.constant dense<0.000000e+00> : vector<8x8xf32>
    %160 = tpu.matmul %157, %158, %cst_64 {dimension_numbers = #tpu.dot_dimension_numbers<[1], [1], [0], [0], [0, 0, 1, 0], [], []>} : vector<8x16xf32>, vector<8x16xf32>, vector<8x8xf32> -> vector<8x8xf32>
    %cst_65 = arith.constant 2.500000e-01 : f32
    %161 = vector.broadcast %cst_65 : f32 to vector<8x8xf32>
    %162 = arith.mulf %160, %161 : vector<8x8xf32>
    %163 = arith.addf %162, %6 : vector<8x8xf32>
    %cst_66 = arith.constant dense<0xFF800000> : vector<8xf32>
    %164 = vector.multi_reduction <maximumf>, %163, %cst_66 [1] : vector<8x8xf32> to vector<8xf32>
    %165 = vector.shape_cast %164 : vector<8xf32> to vector<8x1xf32>
    %166 = vector.broadcast %165 : vector<8x1xf32> to vector<8x8xf32>
    %167 = arith.subf %163, %166 : vector<8x8xf32>
    %168 = math.exp %167 : vector<8x8xf32>
    %cst_67 = arith.constant dense<0.000000e+00> : vector<8xf32>
    %169 = vector.multi_reduction <add>, %168, %cst_67 [1] : vector<8x8xf32> to vector<8xf32>
    %170 = vector.shape_cast %169 : vector<8xf32> to vector<8x1xf32>
    %171 = tpu.reciprocal %170 {approx = true} : vector<8x1xf32> -> vector<8x1xf32>
    %172 = vector.broadcast %171 : vector<8x1xf32> to vector<8x8xf32>
    %173 = arith.mulf %168, %172 : vector<8x8xf32>
    %cst_68 = arith.constant dense<0.000000e+00> : vector<8x16xf32>
    %174 = tpu.matmul %173, %159, %cst_68 {dimension_numbers = #tpu.dot_dimension_numbers<[1], [0], [0], [1], [0, 0, 1, 1], [], []>} : vector<8x8xf32>, vector<8x16xf32>, vector<8x16xf32> -> vector<8x16xf32>
    %175 = arith.truncf %174 : vector<8x16xf32> to vector<8x16xbf16>
    %c0_69 = arith.constant 0 : index
    %c96 = arith.constant 96 : index
    %c0_70 = arith.constant 0 : index
    %176 = vector.load %arg5[%c0_69, %c96, %c0_70] : memref<2x128x128xbf16, #tpu.memory_space<vmem>>, vector<1x16x128xbf16>
    %177 = vector.shape_cast %176 : vector<1x16x128xbf16> to vector<16x128xbf16>
    %cst_71 = arith.constant dense<0.000000e+00> : vector<8x128xf32>
    %178 = tpu.matmul %175, %177, %cst_71 {dimension_numbers = #tpu.dot_dimension_numbers<[1], [0], [0], [1], [0, 0, 1, 1], [], []>} : vector<8x16xbf16>, vector<16x128xbf16>, vector<8x128xf32> -> vector<8x128xf32>
    %179 = arith.addf %156, %178 : vector<8x128xf32>
    %180 = vector.extract_strided_slice %15 {offsets = [0, 112], sizes = [8, 16], strides = [1, 1]} : vector<8x128xf32> to vector<8x16xf32>
    %181 = vector.extract_strided_slice %16 {offsets = [0, 112], sizes = [8, 16], strides = [1, 1]} : vector<8x128xf32> to vector<8x16xf32>
    %182 = vector.extract_strided_slice %17 {offsets = [0, 112], sizes = [8, 16], strides = [1, 1]} : vector<8x128xf32> to vector<8x16xf32>
    %cst_72 = arith.constant dense<0.000000e+00> : vector<8x8xf32>
    %183 = tpu.matmul %180, %181, %cst_72 {dimension_numbers = #tpu.dot_dimension_numbers<[1], [1], [0], [0], [0, 0, 1, 0], [], []>} : vector<8x16xf32>, vector<8x16xf32>, vector<8x8xf32> -> vector<8x8xf32>
    %cst_73 = arith.constant 2.500000e-01 : f32
    %184 = vector.broadcast %cst_73 : f32 to vector<8x8xf32>
    %185 = arith.mulf %183, %184 : vector<8x8xf32>
    %186 = arith.addf %185, %6 : vector<8x8xf32>
    %cst_74 = arith.constant dense<0xFF800000> : vector<8xf32>
    %187 = vector.multi_reduction <maximumf>, %186, %cst_74 [1] : vector<8x8xf32> to vector<8xf32>
    %188 = vector.shape_cast %187 : vector<8xf32> to vector<8x1xf32>
    %189 = vector.broadcast %188 : vector<8x1xf32> to vector<8x8xf32>
    %190 = arith.subf %186, %189 : vector<8x8xf32>
    %191 = math.exp %190 : vector<8x8xf32>
    %cst_75 = arith.constant dense<0.000000e+00> : vector<8xf32>
    %192 = vector.multi_reduction <add>, %191, %cst_75 [1] : vector<8x8xf32> to vector<8xf32>
    %193 = vector.shape_cast %192 : vector<8xf32> to vector<8x1xf32>
    %194 = tpu.reciprocal %193 {approx = true} : vector<8x1xf32> -> vector<8x1xf32>
    %195 = vector.broadcast %194 : vector<8x1xf32> to vector<8x8xf32>
    %196 = arith.mulf %191, %195 : vector<8x8xf32>
    %cst_76 = arith.constant dense<0.000000e+00> : vector<8x16xf32>
    %197 = tpu.matmul %196, %182, %cst_76 {dimension_numbers = #tpu.dot_dimension_numbers<[1], [0], [0], [1], [0, 0, 1, 1], [], []>} : vector<8x8xf32>, vector<8x16xf32>, vector<8x16xf32> -> vector<8x16xf32>
    %198 = arith.truncf %197 : vector<8x16xf32> to vector<8x16xbf16>
    %c0_77 = arith.constant 0 : index
    %c112 = arith.constant 112 : index
    %c0_78 = arith.constant 0 : index
    %199 = vector.load %arg5[%c0_77, %c112, %c0_78] : memref<2x128x128xbf16, #tpu.memory_space<vmem>>, vector<1x16x128xbf16>
    %200 = vector.shape_cast %199 : vector<1x16x128xbf16> to vector<16x128xbf16>
    %cst_79 = arith.constant dense<0.000000e+00> : vector<8x128xf32>
    %201 = tpu.matmul %198, %200, %cst_79 {dimension_numbers = #tpu.dot_dimension_numbers<[1], [0], [0], [1], [0, 0, 1, 1], [], []>} : vector<8x16xbf16>, vector<16x128xbf16>, vector<8x128xf32> -> vector<8x128xf32>
    %202 = arith.addf %179, %201 : vector<8x128xf32>
    %c0_80 = arith.constant 0 : index
    %c0_81 = arith.constant 0 : index
    %c0_82 = arith.constant 0 : index
    %203 = vector.load %arg6[%c0_80, %c0_81, %c0_82] : memref<2x1x128xf32, #tpu.memory_space<vmem>>, vector<1x1x128xf32>
    %204 = vector.shape_cast %203 : vector<1x1x128xf32> to vector<1x128xf32>
    %205 = vector.broadcast %204 : vector<1x128xf32> to vector<8x128xf32>
    %206 = arith.addf %202, %205 : vector<8x128xf32>
    %207 = arith.addf %5, %206 : vector<8x128xf32>
    %cst_83 = arith.constant dense<0.000000e+00> : vector<8xf32>
    %208 = vector.multi_reduction <add>, %207, %cst_83 [1] : vector<8x128xf32> to vector<8xf32>
    %209 = vector.shape_cast %208 : vector<8xf32> to vector<8x1xf32>
    %cst_84 = arith.constant 1.280000e+02 : f32
    %210 = vector.broadcast %cst_84 : f32 to vector<8x1xf32>
    %211 = arith.divf %209, %210 : vector<8x1xf32>
    %212 = vector.broadcast %211 : vector<8x1xf32> to vector<8x128xf32>
    %213 = arith.subf %207, %212 : vector<8x128xf32>
    %214 = arith.mulf %213, %213 : vector<8x128xf32>
    %cst_85 = arith.constant dense<0.000000e+00> : vector<8xf32>
    %215 = vector.multi_reduction <add>, %214, %cst_85 [1] : vector<8x128xf32> to vector<8xf32>
    %216 = vector.shape_cast %215 : vector<8xf32> to vector<8x1xf32>
    %cst_86 = arith.constant 1.280000e+02 : f32
    %217 = vector.broadcast %cst_86 : f32 to vector<8x1xf32>
    %218 = arith.divf %216, %217 : vector<8x1xf32>
    %219 = vector.broadcast %211 : vector<8x1xf32> to vector<8x128xf32>
    %220 = arith.subf %207, %219 : vector<8x128xf32>
    %cst_87 = arith.constant 9.99999974E-6 : f32
    %221 = vector.broadcast %cst_87 : f32 to vector<8x1xf32>
    %222 = arith.addf %218, %221 : vector<8x1xf32>
    %223 = math.rsqrt %222 : vector<8x1xf32>
    %224 = vector.broadcast %223 : vector<8x1xf32> to vector<8x128xf32>
    %225 = arith.mulf %220, %224 : vector<8x128xf32>
    %c0_88 = arith.constant 0 : index
    %c0_89 = arith.constant 0 : index
    %c0_90 = arith.constant 0 : index
    %226 = vector.load %arg7[%c0_88, %c0_89, %c0_90] : memref<2x1x128xf32, #tpu.memory_space<vmem>>, vector<1x1x128xf32>
    %227 = vector.shape_cast %226 : vector<1x1x128xf32> to vector<1x128xf32>
    %228 = vector.broadcast %227 : vector<1x128xf32> to vector<8x128xf32>
    %229 = arith.mulf %225, %228 : vector<8x128xf32>
    %c0_91 = arith.constant 0 : index
    %c0_92 = arith.constant 0 : index
    %c0_93 = arith.constant 0 : index
    %230 = vector.load %arg8[%c0_91, %c0_92, %c0_93] : memref<2x1x128xf32, #tpu.memory_space<vmem>>, vector<1x1x128xf32>
    %231 = vector.shape_cast %230 : vector<1x1x128xf32> to vector<1x128xf32>
    %232 = vector.broadcast %231 : vector<1x128xf32> to vector<8x128xf32>
    %233 = arith.addf %229, %232 : vector<8x128xf32>
    %234 = arith.truncf %233 : vector<8x128xf32> to vector<8x128xbf16>
    %c0_94 = arith.constant 0 : index
    %c0_95 = arith.constant 0 : index
    %c0_96 = arith.constant 0 : index
    %235 = vector.load %arg9[%c0_94, %c0_95, %c0_96] : memref<2x128x256xbf16, #tpu.memory_space<vmem>>, vector<1x128x256xbf16>
    %236 = vector.shape_cast %235 : vector<1x128x256xbf16> to vector<128x256xbf16>
    %cst_97 = arith.constant dense<0.000000e+00> : vector<8x256xf32>
    %237 = tpu.matmul %234, %236, %cst_97 {dimension_numbers = #tpu.dot_dimension_numbers<[1], [0], [0], [1], [0, 0, 1, 1], [], []>} : vector<8x128xbf16>, vector<128x256xbf16>, vector<8x256xf32> -> vector<8x256xf32>
    %c0_98 = arith.constant 0 : index
    %c0_99 = arith.constant 0 : index
    %c0_100 = arith.constant 0 : index
    %238 = vector.load %arg10[%c0_98, %c0_99, %c0_100] : memref<2x1x256xf32, #tpu.memory_space<vmem>>, vector<1x1x256xf32>
    %239 = vector.shape_cast %238 : vector<1x1x256xf32> to vector<1x256xf32>
    %240 = vector.broadcast %239 : vector<1x256xf32> to vector<8x256xf32>
    %241 = arith.addf %237, %240 : vector<8x256xf32>
    %cst_101 = arith.constant 0.000000e+00 : f32
    %242 = vector.broadcast %cst_101 : f32 to vector<8x256xf32>
    %243 = arith.maximumf %241, %242 : vector<8x256xf32>
    %244 = arith.truncf %243 : vector<8x256xf32> to vector<8x256xbf16>
    %c0_102 = arith.constant 0 : index
    %c0_103 = arith.constant 0 : index
    %c0_104 = arith.constant 0 : index
    %245 = vector.load %arg11[%c0_102, %c0_103, %c0_104] : memref<2x256x128xbf16, #tpu.memory_space<vmem>>, vector<1x256x128xbf16>
    %246 = vector.shape_cast %245 : vector<1x256x128xbf16> to vector<256x128xbf16>
    %cst_105 = arith.constant dense<0.000000e+00> : vector<8x128xf32>
    %247 = tpu.matmul %244, %246, %cst_105 {dimension_numbers = #tpu.dot_dimension_numbers<[1], [0], [0], [1], [0, 0, 1, 1], [], []>} : vector<8x256xbf16>, vector<256x128xbf16>, vector<8x128xf32> -> vector<8x128xf32>
    %c0_106 = arith.constant 0 : index
    %c0_107 = arith.constant 0 : index
    %c0_108 = arith.constant 0 : index
    %248 = vector.load %arg12[%c0_106, %c0_107, %c0_108] : memref<2x1x128xf32, #tpu.memory_space<vmem>>, vector<1x1x128xf32>
    %249 = vector.shape_cast %248 : vector<1x1x128xf32> to vector<1x128xf32>
    %250 = vector.broadcast %249 : vector<1x128xf32> to vector<8x128xf32>
    %251 = arith.addf %247, %250 : vector<8x128xf32>
    %252 = arith.addf %233, %251 : vector<8x128xf32>
    %cst_109 = arith.constant dense<0.000000e+00> : vector<8xf32>
    %253 = vector.multi_reduction <add>, %252, %cst_109 [1] : vector<8x128xf32> to vector<8xf32>
    %254 = vector.shape_cast %253 : vector<8xf32> to vector<8x1xf32>
    %cst_110 = arith.constant 1.280000e+02 : f32
    %255 = vector.broadcast %cst_110 : f32 to vector<8x1xf32>
    %256 = arith.divf %254, %255 : vector<8x1xf32>
    %257 = vector.broadcast %256 : vector<8x1xf32> to vector<8x128xf32>
    %258 = arith.subf %252, %257 : vector<8x128xf32>
    %259 = arith.mulf %258, %258 : vector<8x128xf32>
    %cst_111 = arith.constant dense<0.000000e+00> : vector<8xf32>
    %260 = vector.multi_reduction <add>, %259, %cst_111 [1] : vector<8x128xf32> to vector<8xf32>
    %261 = vector.shape_cast %260 : vector<8xf32> to vector<8x1xf32>
    %cst_112 = arith.constant 1.280000e+02 : f32
    %262 = vector.broadcast %cst_112 : f32 to vector<8x1xf32>
    %263 = arith.divf %261, %262 : vector<8x1xf32>
    %264 = vector.broadcast %256 : vector<8x1xf32> to vector<8x128xf32>
    %265 = arith.subf %252, %264 : vector<8x128xf32>
    %cst_113 = arith.constant 9.99999974E-6 : f32
    %266 = vector.broadcast %cst_113 : f32 to vector<8x1xf32>
    %267 = arith.addf %263, %266 : vector<8x1xf32>
    %268 = math.rsqrt %267 : vector<8x1xf32>
    %269 = vector.broadcast %268 : vector<8x1xf32> to vector<8x128xf32>
    %270 = arith.mulf %265, %269 : vector<8x128xf32>
    %c0_114 = arith.constant 0 : index
    %c0_115 = arith.constant 0 : index
    %c0_116 = arith.constant 0 : index
    %271 = vector.load %arg13[%c0_114, %c0_115, %c0_116] : memref<2x1x128xf32, #tpu.memory_space<vmem>>, vector<1x1x128xf32>
    %272 = vector.shape_cast %271 : vector<1x1x128xf32> to vector<1x128xf32>
    %273 = vector.broadcast %272 : vector<1x128xf32> to vector<8x128xf32>
    %274 = arith.mulf %270, %273 : vector<8x128xf32>
    %c0_117 = arith.constant 0 : index
    %c0_118 = arith.constant 0 : index
    %c0_119 = arith.constant 0 : index
    %275 = vector.load %arg14[%c0_117, %c0_118, %c0_119] : memref<2x1x128xf32, #tpu.memory_space<vmem>>, vector<1x1x128xf32>
    %276 = vector.shape_cast %275 : vector<1x1x128xf32> to vector<1x128xf32>
    %277 = vector.broadcast %276 : vector<1x128xf32> to vector<8x128xf32>
    %278 = arith.addf %274, %277 : vector<8x128xf32>
    %279 = arith.truncf %278 : vector<8x128xf32> to vector<8x128xbf16>
    %c1 = arith.constant 1 : index
    %c0_120 = arith.constant 0 : index
    %c0_121 = arith.constant 0 : index
    %280 = vector.load %arg3[%c1, %c0_120, %c0_121] : memref<2x128x384xbf16, #tpu.memory_space<vmem>>, vector<1x128x384xbf16>
    %281 = vector.shape_cast %280 : vector<1x128x384xbf16> to vector<128x384xbf16>
    %cst_122 = arith.constant dense<0.000000e+00> : vector<8x384xf32>
    %282 = tpu.matmul %279, %281, %cst_122 {dimension_numbers = #tpu.dot_dimension_numbers<[1], [0], [0], [1], [0, 0, 1, 1], [], []>} : vector<8x128xbf16>, vector<128x384xbf16>, vector<8x384xf32> -> vector<8x384xf32>
    %c1_123 = arith.constant 1 : index
    %c0_124 = arith.constant 0 : index
    %c0_125 = arith.constant 0 : index
    %283 = vector.load %arg4[%c1_123, %c0_124, %c0_125] : memref<2x1x384xf32, #tpu.memory_space<vmem>>, vector<1x1x384xf32>
    %284 = vector.shape_cast %283 : vector<1x1x384xf32> to vector<1x384xf32>
    %285 = vector.broadcast %284 : vector<1x384xf32> to vector<8x384xf32>
    %286 = arith.addf %282, %285 : vector<8x384xf32>
    %287 = vector.extract_strided_slice %286 {offsets = [0, 0], sizes = [8, 128], strides = [1, 1]} : vector<8x384xf32> to vector<8x128xf32>
    %288 = vector.extract_strided_slice %286 {offsets = [0, 128], sizes = [8, 128], strides = [1, 1]} : vector<8x384xf32> to vector<8x128xf32>
    %289 = vector.extract_strided_slice %286 {offsets = [0, 256], sizes = [8, 128], strides = [1, 1]} : vector<8x384xf32> to vector<8x128xf32>
    %cst_126 = arith.constant 0.000000e+00 : f32
    %290 = vector.broadcast %cst_126 : f32 to vector<8x128xf32>
    %291 = vector.extract_strided_slice %287 {offsets = [0, 0], sizes = [8, 16], strides = [1, 1]} : vector<8x128xf32> to vector<8x16xf32>
    %292 = vector.extract_strided_slice %288 {offsets = [0, 0], sizes = [8, 16], strides = [1, 1]} : vector<8x128xf32> to vector<8x16xf32>
    %293 = vector.extract_strided_slice %289 {offsets = [0, 0], sizes = [8, 16], strides = [1, 1]} : vector<8x128xf32> to vector<8x16xf32>
    %cst_127 = arith.constant dense<0.000000e+00> : vector<8x8xf32>
    %294 = tpu.matmul %291, %292, %cst_127 {dimension_numbers = #tpu.dot_dimension_numbers<[1], [1], [0], [0], [0, 0, 1, 0], [], []>} : vector<8x16xf32>, vector<8x16xf32>, vector<8x8xf32> -> vector<8x8xf32>
    %cst_128 = arith.constant 2.500000e-01 : f32
    %295 = vector.broadcast %cst_128 : f32 to vector<8x8xf32>
    %296 = arith.mulf %294, %295 : vector<8x8xf32>
    %297 = arith.addf %296, %6 : vector<8x8xf32>
    %cst_129 = arith.constant dense<0xFF800000> : vector<8xf32>
    %298 = vector.multi_reduction <maximumf>, %297, %cst_129 [1] : vector<8x8xf32> to vector<8xf32>
    %299 = vector.shape_cast %298 : vector<8xf32> to vector<8x1xf32>
    %300 = vector.broadcast %299 : vector<8x1xf32> to vector<8x8xf32>
    %301 = arith.subf %297, %300 : vector<8x8xf32>
    %302 = math.exp %301 : vector<8x8xf32>
    %cst_130 = arith.constant dense<0.000000e+00> : vector<8xf32>
    %303 = vector.multi_reduction <add>, %302, %cst_130 [1] : vector<8x8xf32> to vector<8xf32>
    %304 = vector.shape_cast %303 : vector<8xf32> to vector<8x1xf32>
    %305 = tpu.reciprocal %304 {approx = true} : vector<8x1xf32> -> vector<8x1xf32>
    %306 = vector.broadcast %305 : vector<8x1xf32> to vector<8x8xf32>
    %307 = arith.mulf %302, %306 : vector<8x8xf32>
    %cst_131 = arith.constant dense<0.000000e+00> : vector<8x16xf32>
    %308 = tpu.matmul %307, %293, %cst_131 {dimension_numbers = #tpu.dot_dimension_numbers<[1], [0], [0], [1], [0, 0, 1, 1], [], []>} : vector<8x8xf32>, vector<8x16xf32>, vector<8x16xf32> -> vector<8x16xf32>
    %309 = arith.truncf %308 : vector<8x16xf32> to vector<8x16xbf16>
    %c1_132 = arith.constant 1 : index
    %c0_133 = arith.constant 0 : index
    %c0_134 = arith.constant 0 : index
    %310 = vector.load %arg5[%c1_132, %c0_133, %c0_134] : memref<2x128x128xbf16, #tpu.memory_space<vmem>>, vector<1x16x128xbf16>
    %311 = vector.shape_cast %310 : vector<1x16x128xbf16> to vector<16x128xbf16>
    %cst_135 = arith.constant dense<0.000000e+00> : vector<8x128xf32>
    %312 = tpu.matmul %309, %311, %cst_135 {dimension_numbers = #tpu.dot_dimension_numbers<[1], [0], [0], [1], [0, 0, 1, 1], [], []>} : vector<8x16xbf16>, vector<16x128xbf16>, vector<8x128xf32> -> vector<8x128xf32>
    %313 = arith.addf %290, %312 : vector<8x128xf32>
    %314 = vector.extract_strided_slice %287 {offsets = [0, 16], sizes = [8, 16], strides = [1, 1]} : vector<8x128xf32> to vector<8x16xf32>
    %315 = vector.extract_strided_slice %288 {offsets = [0, 16], sizes = [8, 16], strides = [1, 1]} : vector<8x128xf32> to vector<8x16xf32>
    %316 = vector.extract_strided_slice %289 {offsets = [0, 16], sizes = [8, 16], strides = [1, 1]} : vector<8x128xf32> to vector<8x16xf32>
    %cst_136 = arith.constant dense<0.000000e+00> : vector<8x8xf32>
    %317 = tpu.matmul %314, %315, %cst_136 {dimension_numbers = #tpu.dot_dimension_numbers<[1], [1], [0], [0], [0, 0, 1, 0], [], []>} : vector<8x16xf32>, vector<8x16xf32>, vector<8x8xf32> -> vector<8x8xf32>
    %cst_137 = arith.constant 2.500000e-01 : f32
    %318 = vector.broadcast %cst_137 : f32 to vector<8x8xf32>
    %319 = arith.mulf %317, %318 : vector<8x8xf32>
    %320 = arith.addf %319, %6 : vector<8x8xf32>
    %cst_138 = arith.constant dense<0xFF800000> : vector<8xf32>
    %321 = vector.multi_reduction <maximumf>, %320, %cst_138 [1] : vector<8x8xf32> to vector<8xf32>
    %322 = vector.shape_cast %321 : vector<8xf32> to vector<8x1xf32>
    %323 = vector.broadcast %322 : vector<8x1xf32> to vector<8x8xf32>
    %324 = arith.subf %320, %323 : vector<8x8xf32>
    %325 = math.exp %324 : vector<8x8xf32>
    %cst_139 = arith.constant dense<0.000000e+00> : vector<8xf32>
    %326 = vector.multi_reduction <add>, %325, %cst_139 [1] : vector<8x8xf32> to vector<8xf32>
    %327 = vector.shape_cast %326 : vector<8xf32> to vector<8x1xf32>
    %328 = tpu.reciprocal %327 {approx = true} : vector<8x1xf32> -> vector<8x1xf32>
    %329 = vector.broadcast %328 : vector<8x1xf32> to vector<8x8xf32>
    %330 = arith.mulf %325, %329 : vector<8x8xf32>
    %cst_140 = arith.constant dense<0.000000e+00> : vector<8x16xf32>
    %331 = tpu.matmul %330, %316, %cst_140 {dimension_numbers = #tpu.dot_dimension_numbers<[1], [0], [0], [1], [0, 0, 1, 1], [], []>} : vector<8x8xf32>, vector<8x16xf32>, vector<8x16xf32> -> vector<8x16xf32>
    %332 = arith.truncf %331 : vector<8x16xf32> to vector<8x16xbf16>
    %c1_141 = arith.constant 1 : index
    %c16_142 = arith.constant 16 : index
    %c0_143 = arith.constant 0 : index
    %333 = vector.load %arg5[%c1_141, %c16_142, %c0_143] : memref<2x128x128xbf16, #tpu.memory_space<vmem>>, vector<1x16x128xbf16>
    %334 = vector.shape_cast %333 : vector<1x16x128xbf16> to vector<16x128xbf16>
    %cst_144 = arith.constant dense<0.000000e+00> : vector<8x128xf32>
    %335 = tpu.matmul %332, %334, %cst_144 {dimension_numbers = #tpu.dot_dimension_numbers<[1], [0], [0], [1], [0, 0, 1, 1], [], []>} : vector<8x16xbf16>, vector<16x128xbf16>, vector<8x128xf32> -> vector<8x128xf32>
    %336 = arith.addf %313, %335 : vector<8x128xf32>
    %337 = vector.extract_strided_slice %287 {offsets = [0, 32], sizes = [8, 16], strides = [1, 1]} : vector<8x128xf32> to vector<8x16xf32>
    %338 = vector.extract_strided_slice %288 {offsets = [0, 32], sizes = [8, 16], strides = [1, 1]} : vector<8x128xf32> to vector<8x16xf32>
    %339 = vector.extract_strided_slice %289 {offsets = [0, 32], sizes = [8, 16], strides = [1, 1]} : vector<8x128xf32> to vector<8x16xf32>
    %cst_145 = arith.constant dense<0.000000e+00> : vector<8x8xf32>
    %340 = tpu.matmul %337, %338, %cst_145 {dimension_numbers = #tpu.dot_dimension_numbers<[1], [1], [0], [0], [0, 0, 1, 0], [], []>} : vector<8x16xf32>, vector<8x16xf32>, vector<8x8xf32> -> vector<8x8xf32>
    %cst_146 = arith.constant 2.500000e-01 : f32
    %341 = vector.broadcast %cst_146 : f32 to vector<8x8xf32>
    %342 = arith.mulf %340, %341 : vector<8x8xf32>
    %343 = arith.addf %342, %6 : vector<8x8xf32>
    %cst_147 = arith.constant dense<0xFF800000> : vector<8xf32>
    %344 = vector.multi_reduction <maximumf>, %343, %cst_147 [1] : vector<8x8xf32> to vector<8xf32>
    %345 = vector.shape_cast %344 : vector<8xf32> to vector<8x1xf32>
    %346 = vector.broadcast %345 : vector<8x1xf32> to vector<8x8xf32>
    %347 = arith.subf %343, %346 : vector<8x8xf32>
    %348 = math.exp %347 : vector<8x8xf32>
    %cst_148 = arith.constant dense<0.000000e+00> : vector<8xf32>
    %349 = vector.multi_reduction <add>, %348, %cst_148 [1] : vector<8x8xf32> to vector<8xf32>
    %350 = vector.shape_cast %349 : vector<8xf32> to vector<8x1xf32>
    %351 = tpu.reciprocal %350 {approx = true} : vector<8x1xf32> -> vector<8x1xf32>
    %352 = vector.broadcast %351 : vector<8x1xf32> to vector<8x8xf32>
    %353 = arith.mulf %348, %352 : vector<8x8xf32>
    %cst_149 = arith.constant dense<0.000000e+00> : vector<8x16xf32>
    %354 = tpu.matmul %353, %339, %cst_149 {dimension_numbers = #tpu.dot_dimension_numbers<[1], [0], [0], [1], [0, 0, 1, 1], [], []>} : vector<8x8xf32>, vector<8x16xf32>, vector<8x16xf32> -> vector<8x16xf32>
    %355 = arith.truncf %354 : vector<8x16xf32> to vector<8x16xbf16>
    %c1_150 = arith.constant 1 : index
    %c32_151 = arith.constant 32 : index
    %c0_152 = arith.constant 0 : index
    %356 = vector.load %arg5[%c1_150, %c32_151, %c0_152] : memref<2x128x128xbf16, #tpu.memory_space<vmem>>, vector<1x16x128xbf16>
    %357 = vector.shape_cast %356 : vector<1x16x128xbf16> to vector<16x128xbf16>
    %cst_153 = arith.constant dense<0.000000e+00> : vector<8x128xf32>
    %358 = tpu.matmul %355, %357, %cst_153 {dimension_numbers = #tpu.dot_dimension_numbers<[1], [0], [0], [1], [0, 0, 1, 1], [], []>} : vector<8x16xbf16>, vector<16x128xbf16>, vector<8x128xf32> -> vector<8x128xf32>
    %359 = arith.addf %336, %358 : vector<8x128xf32>
    %360 = vector.extract_strided_slice %287 {offsets = [0, 48], sizes = [8, 16], strides = [1, 1]} : vector<8x128xf32> to vector<8x16xf32>
    %361 = vector.extract_strided_slice %288 {offsets = [0, 48], sizes = [8, 16], strides = [1, 1]} : vector<8x128xf32> to vector<8x16xf32>
    %362 = vector.extract_strided_slice %289 {offsets = [0, 48], sizes = [8, 16], strides = [1, 1]} : vector<8x128xf32> to vector<8x16xf32>
    %cst_154 = arith.constant dense<0.000000e+00> : vector<8x8xf32>
    %363 = tpu.matmul %360, %361, %cst_154 {dimension_numbers = #tpu.dot_dimension_numbers<[1], [1], [0], [0], [0, 0, 1, 0], [], []>} : vector<8x16xf32>, vector<8x16xf32>, vector<8x8xf32> -> vector<8x8xf32>
    %cst_155 = arith.constant 2.500000e-01 : f32
    %364 = vector.broadcast %cst_155 : f32 to vector<8x8xf32>
    %365 = arith.mulf %363, %364 : vector<8x8xf32>
    %366 = arith.addf %365, %6 : vector<8x8xf32>
    %cst_156 = arith.constant dense<0xFF800000> : vector<8xf32>
    %367 = vector.multi_reduction <maximumf>, %366, %cst_156 [1] : vector<8x8xf32> to vector<8xf32>
    %368 = vector.shape_cast %367 : vector<8xf32> to vector<8x1xf32>
    %369 = vector.broadcast %368 : vector<8x1xf32> to vector<8x8xf32>
    %370 = arith.subf %366, %369 : vector<8x8xf32>
    %371 = math.exp %370 : vector<8x8xf32>
    %cst_157 = arith.constant dense<0.000000e+00> : vector<8xf32>
    %372 = vector.multi_reduction <add>, %371, %cst_157 [1] : vector<8x8xf32> to vector<8xf32>
    %373 = vector.shape_cast %372 : vector<8xf32> to vector<8x1xf32>
    %374 = tpu.reciprocal %373 {approx = true} : vector<8x1xf32> -> vector<8x1xf32>
    %375 = vector.broadcast %374 : vector<8x1xf32> to vector<8x8xf32>
    %376 = arith.mulf %371, %375 : vector<8x8xf32>
    %cst_158 = arith.constant dense<0.000000e+00> : vector<8x16xf32>
    %377 = tpu.matmul %376, %362, %cst_158 {dimension_numbers = #tpu.dot_dimension_numbers<[1], [0], [0], [1], [0, 0, 1, 1], [], []>} : vector<8x8xf32>, vector<8x16xf32>, vector<8x16xf32> -> vector<8x16xf32>
    %378 = arith.truncf %377 : vector<8x16xf32> to vector<8x16xbf16>
    %c1_159 = arith.constant 1 : index
    %c48_160 = arith.constant 48 : index
    %c0_161 = arith.constant 0 : index
    %379 = vector.load %arg5[%c1_159, %c48_160, %c0_161] : memref<2x128x128xbf16, #tpu.memory_space<vmem>>, vector<1x16x128xbf16>
    %380 = vector.shape_cast %379 : vector<1x16x128xbf16> to vector<16x128xbf16>
    %cst_162 = arith.constant dense<0.000000e+00> : vector<8x128xf32>
    %381 = tpu.matmul %378, %380, %cst_162 {dimension_numbers = #tpu.dot_dimension_numbers<[1], [0], [0], [1], [0, 0, 1, 1], [], []>} : vector<8x16xbf16>, vector<16x128xbf16>, vector<8x128xf32> -> vector<8x128xf32>
    %382 = arith.addf %359, %381 : vector<8x128xf32>
    %383 = vector.extract_strided_slice %287 {offsets = [0, 64], sizes = [8, 16], strides = [1, 1]} : vector<8x128xf32> to vector<8x16xf32>
    %384 = vector.extract_strided_slice %288 {offsets = [0, 64], sizes = [8, 16], strides = [1, 1]} : vector<8x128xf32> to vector<8x16xf32>
    %385 = vector.extract_strided_slice %289 {offsets = [0, 64], sizes = [8, 16], strides = [1, 1]} : vector<8x128xf32> to vector<8x16xf32>
    %cst_163 = arith.constant dense<0.000000e+00> : vector<8x8xf32>
    %386 = tpu.matmul %383, %384, %cst_163 {dimension_numbers = #tpu.dot_dimension_numbers<[1], [1], [0], [0], [0, 0, 1, 0], [], []>} : vector<8x16xf32>, vector<8x16xf32>, vector<8x8xf32> -> vector<8x8xf32>
    %cst_164 = arith.constant 2.500000e-01 : f32
    %387 = vector.broadcast %cst_164 : f32 to vector<8x8xf32>
    %388 = arith.mulf %386, %387 : vector<8x8xf32>
    %389 = arith.addf %388, %6 : vector<8x8xf32>
    %cst_165 = arith.constant dense<0xFF800000> : vector<8xf32>
    %390 = vector.multi_reduction <maximumf>, %389, %cst_165 [1] : vector<8x8xf32> to vector<8xf32>
    %391 = vector.shape_cast %390 : vector<8xf32> to vector<8x1xf32>
    %392 = vector.broadcast %391 : vector<8x1xf32> to vector<8x8xf32>
    %393 = arith.subf %389, %392 : vector<8x8xf32>
    %394 = math.exp %393 : vector<8x8xf32>
    %cst_166 = arith.constant dense<0.000000e+00> : vector<8xf32>
    %395 = vector.multi_reduction <add>, %394, %cst_166 [1] : vector<8x8xf32> to vector<8xf32>
    %396 = vector.shape_cast %395 : vector<8xf32> to vector<8x1xf32>
    %397 = tpu.reciprocal %396 {approx = true} : vector<8x1xf32> -> vector<8x1xf32>
    %398 = vector.broadcast %397 : vector<8x1xf32> to vector<8x8xf32>
    %399 = arith.mulf %394, %398 : vector<8x8xf32>
    %cst_167 = arith.constant dense<0.000000e+00> : vector<8x16xf32>
    %400 = tpu.matmul %399, %385, %cst_167 {dimension_numbers = #tpu.dot_dimension_numbers<[1], [0], [0], [1], [0, 0, 1, 1], [], []>} : vector<8x8xf32>, vector<8x16xf32>, vector<8x16xf32> -> vector<8x16xf32>
    %401 = arith.truncf %400 : vector<8x16xf32> to vector<8x16xbf16>
    %c1_168 = arith.constant 1 : index
    %c64_169 = arith.constant 64 : index
    %c0_170 = arith.constant 0 : index
    %402 = vector.load %arg5[%c1_168, %c64_169, %c0_170] : memref<2x128x128xbf16, #tpu.memory_space<vmem>>, vector<1x16x128xbf16>
    %403 = vector.shape_cast %402 : vector<1x16x128xbf16> to vector<16x128xbf16>
    %cst_171 = arith.constant dense<0.000000e+00> : vector<8x128xf32>
    %404 = tpu.matmul %401, %403, %cst_171 {dimension_numbers = #tpu.dot_dimension_numbers<[1], [0], [0], [1], [0, 0, 1, 1], [], []>} : vector<8x16xbf16>, vector<16x128xbf16>, vector<8x128xf32> -> vector<8x128xf32>
    %405 = arith.addf %382, %404 : vector<8x128xf32>
    %406 = vector.extract_strided_slice %287 {offsets = [0, 80], sizes = [8, 16], strides = [1, 1]} : vector<8x128xf32> to vector<8x16xf32>
    %407 = vector.extract_strided_slice %288 {offsets = [0, 80], sizes = [8, 16], strides = [1, 1]} : vector<8x128xf32> to vector<8x16xf32>
    %408 = vector.extract_strided_slice %289 {offsets = [0, 80], sizes = [8, 16], strides = [1, 1]} : vector<8x128xf32> to vector<8x16xf32>
    %cst_172 = arith.constant dense<0.000000e+00> : vector<8x8xf32>
    %409 = tpu.matmul %406, %407, %cst_172 {dimension_numbers = #tpu.dot_dimension_numbers<[1], [1], [0], [0], [0, 0, 1, 0], [], []>} : vector<8x16xf32>, vector<8x16xf32>, vector<8x8xf32> -> vector<8x8xf32>
    %cst_173 = arith.constant 2.500000e-01 : f32
    %410 = vector.broadcast %cst_173 : f32 to vector<8x8xf32>
    %411 = arith.mulf %409, %410 : vector<8x8xf32>
    %412 = arith.addf %411, %6 : vector<8x8xf32>
    %cst_174 = arith.constant dense<0xFF800000> : vector<8xf32>
    %413 = vector.multi_reduction <maximumf>, %412, %cst_174 [1] : vector<8x8xf32> to vector<8xf32>
    %414 = vector.shape_cast %413 : vector<8xf32> to vector<8x1xf32>
    %415 = vector.broadcast %414 : vector<8x1xf32> to vector<8x8xf32>
    %416 = arith.subf %412, %415 : vector<8x8xf32>
    %417 = math.exp %416 : vector<8x8xf32>
    %cst_175 = arith.constant dense<0.000000e+00> : vector<8xf32>
    %418 = vector.multi_reduction <add>, %417, %cst_175 [1] : vector<8x8xf32> to vector<8xf32>
    %419 = vector.shape_cast %418 : vector<8xf32> to vector<8x1xf32>
    %420 = tpu.reciprocal %419 {approx = true} : vector<8x1xf32> -> vector<8x1xf32>
    %421 = vector.broadcast %420 : vector<8x1xf32> to vector<8x8xf32>
    %422 = arith.mulf %417, %421 : vector<8x8xf32>
    %cst_176 = arith.constant dense<0.000000e+00> : vector<8x16xf32>
    %423 = tpu.matmul %422, %408, %cst_176 {dimension_numbers = #tpu.dot_dimension_numbers<[1], [0], [0], [1], [0, 0, 1, 1], [], []>} : vector<8x8xf32>, vector<8x16xf32>, vector<8x16xf32> -> vector<8x16xf32>
    %424 = arith.truncf %423 : vector<8x16xf32> to vector<8x16xbf16>
    %c1_177 = arith.constant 1 : index
    %c80_178 = arith.constant 80 : index
    %c0_179 = arith.constant 0 : index
    %425 = vector.load %arg5[%c1_177, %c80_178, %c0_179] : memref<2x128x128xbf16, #tpu.memory_space<vmem>>, vector<1x16x128xbf16>
    %426 = vector.shape_cast %425 : vector<1x16x128xbf16> to vector<16x128xbf16>
    %cst_180 = arith.constant dense<0.000000e+00> : vector<8x128xf32>
    %427 = tpu.matmul %424, %426, %cst_180 {dimension_numbers = #tpu.dot_dimension_numbers<[1], [0], [0], [1], [0, 0, 1, 1], [], []>} : vector<8x16xbf16>, vector<16x128xbf16>, vector<8x128xf32> -> vector<8x128xf32>
    %428 = arith.addf %405, %427 : vector<8x128xf32>
    %429 = vector.extract_strided_slice %287 {offsets = [0, 96], sizes = [8, 16], strides = [1, 1]} : vector<8x128xf32> to vector<8x16xf32>
    %430 = vector.extract_strided_slice %288 {offsets = [0, 96], sizes = [8, 16], strides = [1, 1]} : vector<8x128xf32> to vector<8x16xf32>
    %431 = vector.extract_strided_slice %289 {offsets = [0, 96], sizes = [8, 16], strides = [1, 1]} : vector<8x128xf32> to vector<8x16xf32>
    %cst_181 = arith.constant dense<0.000000e+00> : vector<8x8xf32>
    %432 = tpu.matmul %429, %430, %cst_181 {dimension_numbers = #tpu.dot_dimension_numbers<[1], [1], [0], [0], [0, 0, 1, 0], [], []>} : vector<8x16xf32>, vector<8x16xf32>, vector<8x8xf32> -> vector<8x8xf32>
    %cst_182 = arith.constant 2.500000e-01 : f32
    %433 = vector.broadcast %cst_182 : f32 to vector<8x8xf32>
    %434 = arith.mulf %432, %433 : vector<8x8xf32>
    %435 = arith.addf %434, %6 : vector<8x8xf32>
    %cst_183 = arith.constant dense<0xFF800000> : vector<8xf32>
    %436 = vector.multi_reduction <maximumf>, %435, %cst_183 [1] : vector<8x8xf32> to vector<8xf32>
    %437 = vector.shape_cast %436 : vector<8xf32> to vector<8x1xf32>
    %438 = vector.broadcast %437 : vector<8x1xf32> to vector<8x8xf32>
    %439 = arith.subf %435, %438 : vector<8x8xf32>
    %440 = math.exp %439 : vector<8x8xf32>
    %cst_184 = arith.constant dense<0.000000e+00> : vector<8xf32>
    %441 = vector.multi_reduction <add>, %440, %cst_184 [1] : vector<8x8xf32> to vector<8xf32>
    %442 = vector.shape_cast %441 : vector<8xf32> to vector<8x1xf32>
    %443 = tpu.reciprocal %442 {approx = true} : vector<8x1xf32> -> vector<8x1xf32>
    %444 = vector.broadcast %443 : vector<8x1xf32> to vector<8x8xf32>
    %445 = arith.mulf %440, %444 : vector<8x8xf32>
    %cst_185 = arith.constant dense<0.000000e+00> : vector<8x16xf32>
    %446 = tpu.matmul %445, %431, %cst_185 {dimension_numbers = #tpu.dot_dimension_numbers<[1], [0], [0], [1], [0, 0, 1, 1], [], []>} : vector<8x8xf32>, vector<8x16xf32>, vector<8x16xf32> -> vector<8x16xf32>
    %447 = arith.truncf %446 : vector<8x16xf32> to vector<8x16xbf16>
    %c1_186 = arith.constant 1 : index
    %c96_187 = arith.constant 96 : index
    %c0_188 = arith.constant 0 : index
    %448 = vector.load %arg5[%c1_186, %c96_187, %c0_188] : memref<2x128x128xbf16, #tpu.memory_space<vmem>>, vector<1x16x128xbf16>
    %449 = vector.shape_cast %448 : vector<1x16x128xbf16> to vector<16x128xbf16>
    %cst_189 = arith.constant dense<0.000000e+00> : vector<8x128xf32>
    %450 = tpu.matmul %447, %449, %cst_189 {dimension_numbers = #tpu.dot_dimension_numbers<[1], [0], [0], [1], [0, 0, 1, 1], [], []>} : vector<8x16xbf16>, vector<16x128xbf16>, vector<8x128xf32> -> vector<8x128xf32>
    %451 = arith.addf %428, %450 : vector<8x128xf32>
    %452 = vector.extract_strided_slice %287 {offsets = [0, 112], sizes = [8, 16], strides = [1, 1]} : vector<8x128xf32> to vector<8x16xf32>
    %453 = vector.extract_strided_slice %288 {offsets = [0, 112], sizes = [8, 16], strides = [1, 1]} : vector<8x128xf32> to vector<8x16xf32>
    %454 = vector.extract_strided_slice %289 {offsets = [0, 112], sizes = [8, 16], strides = [1, 1]} : vector<8x128xf32> to vector<8x16xf32>
    %cst_190 = arith.constant dense<0.000000e+00> : vector<8x8xf32>
    %455 = tpu.matmul %452, %453, %cst_190 {dimension_numbers = #tpu.dot_dimension_numbers<[1], [1], [0], [0], [0, 0, 1, 0], [], []>} : vector<8x16xf32>, vector<8x16xf32>, vector<8x8xf32> -> vector<8x8xf32>
    %cst_191 = arith.constant 2.500000e-01 : f32
    %456 = vector.broadcast %cst_191 : f32 to vector<8x8xf32>
    %457 = arith.mulf %455, %456 : vector<8x8xf32>
    %458 = arith.addf %457, %6 : vector<8x8xf32>
    %cst_192 = arith.constant dense<0xFF800000> : vector<8xf32>
    %459 = vector.multi_reduction <maximumf>, %458, %cst_192 [1] : vector<8x8xf32> to vector<8xf32>
    %460 = vector.shape_cast %459 : vector<8xf32> to vector<8x1xf32>
    %461 = vector.broadcast %460 : vector<8x1xf32> to vector<8x8xf32>
    %462 = arith.subf %458, %461 : vector<8x8xf32>
    %463 = math.exp %462 : vector<8x8xf32>
    %cst_193 = arith.constant dense<0.000000e+00> : vector<8xf32>
    %464 = vector.multi_reduction <add>, %463, %cst_193 [1] : vector<8x8xf32> to vector<8xf32>
    %465 = vector.shape_cast %464 : vector<8xf32> to vector<8x1xf32>
    %466 = tpu.reciprocal %465 {approx = true} : vector<8x1xf32> -> vector<8x1xf32>
    %467 = vector.broadcast %466 : vector<8x1xf32> to vector<8x8xf32>
    %468 = arith.mulf %463, %467 : vector<8x8xf32>
    %cst_194 = arith.constant dense<0.000000e+00> : vector<8x16xf32>
    %469 = tpu.matmul %468, %454, %cst_194 {dimension_numbers = #tpu.dot_dimension_numbers<[1], [0], [0], [1], [0, 0, 1, 1], [], []>} : vector<8x8xf32>, vector<8x16xf32>, vector<8x16xf32> -> vector<8x16xf32>
    %470 = arith.truncf %469 : vector<8x16xf32> to vector<8x16xbf16>
    %c1_195 = arith.constant 1 : index
    %c112_196 = arith.constant 112 : index
    %c0_197 = arith.constant 0 : index
    %471 = vector.load %arg5[%c1_195, %c112_196, %c0_197] : memref<2x128x128xbf16, #tpu.memory_space<vmem>>, vector<1x16x128xbf16>
    %472 = vector.shape_cast %471 : vector<1x16x128xbf16> to vector<16x128xbf16>
    %cst_198 = arith.constant dense<0.000000e+00> : vector<8x128xf32>
    %473 = tpu.matmul %470, %472, %cst_198 {dimension_numbers = #tpu.dot_dimension_numbers<[1], [0], [0], [1], [0, 0, 1, 1], [], []>} : vector<8x16xbf16>, vector<16x128xbf16>, vector<8x128xf32> -> vector<8x128xf32>
    %474 = arith.addf %451, %473 : vector<8x128xf32>
    %c1_199 = arith.constant 1 : index
    %c0_200 = arith.constant 0 : index
    %c0_201 = arith.constant 0 : index
    %475 = vector.load %arg6[%c1_199, %c0_200, %c0_201] : memref<2x1x128xf32, #tpu.memory_space<vmem>>, vector<1x1x128xf32>
    %476 = vector.shape_cast %475 : vector<1x1x128xf32> to vector<1x128xf32>
    %477 = vector.broadcast %476 : vector<1x128xf32> to vector<8x128xf32>
    %478 = arith.addf %474, %477 : vector<8x128xf32>
    %479 = arith.addf %278, %478 : vector<8x128xf32>
    %cst_202 = arith.constant dense<0.000000e+00> : vector<8xf32>
    %480 = vector.multi_reduction <add>, %479, %cst_202 [1] : vector<8x128xf32> to vector<8xf32>
    %481 = vector.shape_cast %480 : vector<8xf32> to vector<8x1xf32>
    %cst_203 = arith.constant 1.280000e+02 : f32
    %482 = vector.broadcast %cst_203 : f32 to vector<8x1xf32>
    %483 = arith.divf %481, %482 : vector<8x1xf32>
    %484 = vector.broadcast %483 : vector<8x1xf32> to vector<8x128xf32>
    %485 = arith.subf %479, %484 : vector<8x128xf32>
    %486 = arith.mulf %485, %485 : vector<8x128xf32>
    %cst_204 = arith.constant dense<0.000000e+00> : vector<8xf32>
    %487 = vector.multi_reduction <add>, %486, %cst_204 [1] : vector<8x128xf32> to vector<8xf32>
    %488 = vector.shape_cast %487 : vector<8xf32> to vector<8x1xf32>
    %cst_205 = arith.constant 1.280000e+02 : f32
    %489 = vector.broadcast %cst_205 : f32 to vector<8x1xf32>
    %490 = arith.divf %488, %489 : vector<8x1xf32>
    %491 = vector.broadcast %483 : vector<8x1xf32> to vector<8x128xf32>
    %492 = arith.subf %479, %491 : vector<8x128xf32>
    %cst_206 = arith.constant 9.99999974E-6 : f32
    %493 = vector.broadcast %cst_206 : f32 to vector<8x1xf32>
    %494 = arith.addf %490, %493 : vector<8x1xf32>
    %495 = math.rsqrt %494 : vector<8x1xf32>
    %496 = vector.broadcast %495 : vector<8x1xf32> to vector<8x128xf32>
    %497 = arith.mulf %492, %496 : vector<8x128xf32>
    %c1_207 = arith.constant 1 : index
    %c0_208 = arith.constant 0 : index
    %c0_209 = arith.constant 0 : index
    %498 = vector.load %arg7[%c1_207, %c0_208, %c0_209] : memref<2x1x128xf32, #tpu.memory_space<vmem>>, vector<1x1x128xf32>
    %499 = vector.shape_cast %498 : vector<1x1x128xf32> to vector<1x128xf32>
    %500 = vector.broadcast %499 : vector<1x128xf32> to vector<8x128xf32>
    %501 = arith.mulf %497, %500 : vector<8x128xf32>
    %c1_210 = arith.constant 1 : index
    %c0_211 = arith.constant 0 : index
    %c0_212 = arith.constant 0 : index
    %502 = vector.load %arg8[%c1_210, %c0_211, %c0_212] : memref<2x1x128xf32, #tpu.memory_space<vmem>>, vector<1x1x128xf32>
    %503 = vector.shape_cast %502 : vector<1x1x128xf32> to vector<1x128xf32>
    %504 = vector.broadcast %503 : vector<1x128xf32> to vector<8x128xf32>
    %505 = arith.addf %501, %504 : vector<8x128xf32>
    %506 = arith.truncf %505 : vector<8x128xf32> to vector<8x128xbf16>
    %c1_213 = arith.constant 1 : index
    %c0_214 = arith.constant 0 : index
    %c0_215 = arith.constant 0 : index
    %507 = vector.load %arg9[%c1_213, %c0_214, %c0_215] : memref<2x128x256xbf16, #tpu.memory_space<vmem>>, vector<1x128x256xbf16>
    %508 = vector.shape_cast %507 : vector<1x128x256xbf16> to vector<128x256xbf16>
    %cst_216 = arith.constant dense<0.000000e+00> : vector<8x256xf32>
    %509 = tpu.matmul %506, %508, %cst_216 {dimension_numbers = #tpu.dot_dimension_numbers<[1], [0], [0], [1], [0, 0, 1, 1], [], []>} : vector<8x128xbf16>, vector<128x256xbf16>, vector<8x256xf32> -> vector<8x256xf32>
    %c1_217 = arith.constant 1 : index
    %c0_218 = arith.constant 0 : index
    %c0_219 = arith.constant 0 : index
    %510 = vector.load %arg10[%c1_217, %c0_218, %c0_219] : memref<2x1x256xf32, #tpu.memory_space<vmem>>, vector<1x1x256xf32>
    %511 = vector.shape_cast %510 : vector<1x1x256xf32> to vector<1x256xf32>
    %512 = vector.broadcast %511 : vector<1x256xf32> to vector<8x256xf32>
    %513 = arith.addf %509, %512 : vector<8x256xf32>
    %cst_220 = arith.constant 0.000000e+00 : f32
    %514 = vector.broadcast %cst_220 : f32 to vector<8x256xf32>
    %515 = arith.maximumf %513, %514 : vector<8x256xf32>
    %516 = arith.truncf %515 : vector<8x256xf32> to vector<8x256xbf16>
    %c1_221 = arith.constant 1 : index
    %c0_222 = arith.constant 0 : index
    %c0_223 = arith.constant 0 : index
    %517 = vector.load %arg11[%c1_221, %c0_222, %c0_223] : memref<2x256x128xbf16, #tpu.memory_space<vmem>>, vector<1x256x128xbf16>
    %518 = vector.shape_cast %517 : vector<1x256x128xbf16> to vector<256x128xbf16>
    %cst_224 = arith.constant dense<0.000000e+00> : vector<8x128xf32>
    %519 = tpu.matmul %516, %518, %cst_224 {dimension_numbers = #tpu.dot_dimension_numbers<[1], [0], [0], [1], [0, 0, 1, 1], [], []>} : vector<8x256xbf16>, vector<256x128xbf16>, vector<8x128xf32> -> vector<8x128xf32>
    %c1_225 = arith.constant 1 : index
    %c0_226 = arith.constant 0 : index
    %c0_227 = arith.constant 0 : index
    %520 = vector.load %arg12[%c1_225, %c0_226, %c0_227] : memref<2x1x128xf32, #tpu.memory_space<vmem>>, vector<1x1x128xf32>
    %521 = vector.shape_cast %520 : vector<1x1x128xf32> to vector<1x128xf32>
    %522 = vector.broadcast %521 : vector<1x128xf32> to vector<8x128xf32>
    %523 = arith.addf %519, %522 : vector<8x128xf32>
    %524 = arith.addf %505, %523 : vector<8x128xf32>
    %cst_228 = arith.constant dense<0.000000e+00> : vector<8xf32>
    %525 = vector.multi_reduction <add>, %524, %cst_228 [1] : vector<8x128xf32> to vector<8xf32>
    %526 = vector.shape_cast %525 : vector<8xf32> to vector<8x1xf32>
    %cst_229 = arith.constant 1.280000e+02 : f32
    %527 = vector.broadcast %cst_229 : f32 to vector<8x1xf32>
    %528 = arith.divf %526, %527 : vector<8x1xf32>
    %529 = vector.broadcast %528 : vector<8x1xf32> to vector<8x128xf32>
    %530 = arith.subf %524, %529 : vector<8x128xf32>
    %531 = arith.mulf %530, %530 : vector<8x128xf32>
    %cst_230 = arith.constant dense<0.000000e+00> : vector<8xf32>
    %532 = vector.multi_reduction <add>, %531, %cst_230 [1] : vector<8x128xf32> to vector<8xf32>
    %533 = vector.shape_cast %532 : vector<8xf32> to vector<8x1xf32>
    %cst_231 = arith.constant 1.280000e+02 : f32
    %534 = vector.broadcast %cst_231 : f32 to vector<8x1xf32>
    %535 = arith.divf %533, %534 : vector<8x1xf32>
    %536 = vector.broadcast %528 : vector<8x1xf32> to vector<8x128xf32>
    %537 = arith.subf %524, %536 : vector<8x128xf32>
    %cst_232 = arith.constant 9.99999974E-6 : f32
    %538 = vector.broadcast %cst_232 : f32 to vector<8x1xf32>
    %539 = arith.addf %535, %538 : vector<8x1xf32>
    %540 = math.rsqrt %539 : vector<8x1xf32>
    %541 = vector.broadcast %540 : vector<8x1xf32> to vector<8x128xf32>
    %542 = arith.mulf %537, %541 : vector<8x128xf32>
    %c1_233 = arith.constant 1 : index
    %c0_234 = arith.constant 0 : index
    %c0_235 = arith.constant 0 : index
    %543 = vector.load %arg13[%c1_233, %c0_234, %c0_235] : memref<2x1x128xf32, #tpu.memory_space<vmem>>, vector<1x1x128xf32>
    %544 = vector.shape_cast %543 : vector<1x1x128xf32> to vector<1x128xf32>
    %545 = vector.broadcast %544 : vector<1x128xf32> to vector<8x128xf32>
    %546 = arith.mulf %542, %545 : vector<8x128xf32>
    %c1_236 = arith.constant 1 : index
    %c0_237 = arith.constant 0 : index
    %c0_238 = arith.constant 0 : index
    %547 = vector.load %arg14[%c1_236, %c0_237, %c0_238] : memref<2x1x128xf32, #tpu.memory_space<vmem>>, vector<1x1x128xf32>
    %548 = vector.shape_cast %547 : vector<1x1x128xf32> to vector<1x128xf32>
    %549 = vector.broadcast %548 : vector<1x128xf32> to vector<8x128xf32>
    %550 = arith.addf %546, %549 : vector<8x128xf32>
    %c0_239 = arith.constant 0 : index
    %c0_240 = arith.constant 0 : index
    %551 = vector.load %arg20[%c0_239, %c0_240] : memref<2x8xf32, #tpu.memory_space<vmem>>, vector<2x8xf32>
    %cst_241 = arith.constant dense<0.000000e+00> : vector<2x128xf32>
    %552 = tpu.matmul %551, %550, %cst_241 {dimension_numbers = #tpu.dot_dimension_numbers<[1], [0], [0], [1], [0, 0, 1, 1], [], []>} : vector<2x8xf32>, vector<8x128xf32>, vector<2x128xf32> -> vector<2x128xf32>
    %cst_242 = arith.constant dense<0.000000e+00> : vector<2xf32>
    %553 = vector.multi_reduction <add>, %552, %cst_242 [1] : vector<2x128xf32> to vector<2xf32>
    %554 = vector.shape_cast %553 : vector<2xf32> to vector<2x1xf32>
    %cst_243 = arith.constant 1.280000e+02 : f32
    %555 = vector.broadcast %cst_243 : f32 to vector<2x1xf32>
    %556 = arith.divf %554, %555 : vector<2x1xf32>
    %557 = vector.broadcast %556 : vector<2x1xf32> to vector<2x128xf32>
    %558 = arith.subf %552, %557 : vector<2x128xf32>
    %559 = arith.mulf %558, %558 : vector<2x128xf32>
    %cst_244 = arith.constant dense<0.000000e+00> : vector<2xf32>
    %560 = vector.multi_reduction <add>, %559, %cst_244 [1] : vector<2x128xf32> to vector<2xf32>
    %561 = vector.shape_cast %560 : vector<2xf32> to vector<2x1xf32>
    %cst_245 = arith.constant 1.280000e+02 : f32
    %562 = vector.broadcast %cst_245 : f32 to vector<2x1xf32>
    %563 = arith.divf %561, %562 : vector<2x1xf32>
    %564 = vector.broadcast %556 : vector<2x1xf32> to vector<2x128xf32>
    %565 = arith.subf %552, %564 : vector<2x128xf32>
    %cst_246 = arith.constant 9.99999974E-6 : f32
    %566 = vector.broadcast %cst_246 : f32 to vector<2x1xf32>
    %567 = arith.addf %563, %566 : vector<2x1xf32>
    %568 = math.rsqrt %567 : vector<2x1xf32>
    %569 = vector.broadcast %568 : vector<2x1xf32> to vector<2x128xf32>
    %570 = arith.mulf %565, %569 : vector<2x128xf32>
    %c0_247 = arith.constant 0 : index
    %c0_248 = arith.constant 0 : index
    %571 = vector.load %arg15[%c0_247, %c0_248] : memref<1x128xf32, #tpu.memory_space<vmem>>, vector<1x128xf32>
    %572 = vector.broadcast %571 : vector<1x128xf32> to vector<2x128xf32>
    %573 = arith.mulf %570, %572 : vector<2x128xf32>
    %c0_249 = arith.constant 0 : index
    %c0_250 = arith.constant 0 : index
    %574 = vector.load %arg16[%c0_249, %c0_250] : memref<1x128xf32, #tpu.memory_space<vmem>>, vector<1x128xf32>
    %575 = vector.broadcast %574 : vector<1x128xf32> to vector<2x128xf32>
    %576 = arith.addf %573, %575 : vector<2x128xf32>
    %577 = arith.truncf %576 : vector<2x128xf32> to vector<2x128xbf16>
    %c0_251 = arith.constant 0 : index
    %c0_252 = arith.constant 0 : index
    %578 = vector.load %arg17[%c0_251, %c0_252] : memref<128x128xbf16, #tpu.memory_space<vmem>>, vector<128x128xbf16>
    %cst_253 = arith.constant dense<0.000000e+00> : vector<2x128xf32>
    %579 = tpu.matmul %577, %578, %cst_253 {dimension_numbers = #tpu.dot_dimension_numbers<[1], [0], [0], [1], [0, 0, 1, 1], [], []>} : vector<2x128xbf16>, vector<128x128xbf16>, vector<2x128xf32> -> vector<2x128xf32>
    %c0_254 = arith.constant 0 : index
    %c0_255 = arith.constant 0 : index
    %580 = vector.load %arg18[%c0_254, %c0_255] : memref<1x128xf32, #tpu.memory_space<vmem>>, vector<1x128xf32>
    %581 = vector.broadcast %580 : vector<1x128xf32> to vector<2x128xf32>
    %582 = arith.addf %579, %581 : vector<2x128xf32>
    %c0_256 = arith.constant 0 : index
    %c0_257 = arith.constant 0 : index
    %583 = vector.load %arg21[%c0_256, %c0_257] : memref<2x128xf32, #tpu.memory_space<vmem>>, vector<2x128xf32>
    tpu.vector_store %arg21[%c0_256, %c0_257], %582 {strides = array<i32>} : memref<2x128xf32, #tpu.memory_space<vmem>>, vector<2x128xf32>,
    return
  }
}

</mosaic_0001>

<llo_original>
// kernel: custom_image_classifier.1
$region0: #{custom_image_classifier.1}
  #allocation0 [shape = 'u32[]', space=smem, size = 0x4, offset = 0x4, fixed_abs, tag = 'smem constant byte address 0x4 - core index']
  #allocation1 [shape = 'u32[72,128]{1,0:T(1,128)}', space=vmem, size = 0x9000, scoped, tag = 'internal scratch']
  %s0 = inlined_call_operand.vmem [shape: bf16[8,640], index: 0, kind: input, shape index: {}]
  %s1 = inlined_call_operand.vmem [shape: bf16[640,128], index: 1, kind: input, shape index: {}]
  %s2 = inlined_call_operand.vmem [shape: f32[1,128], index: 2, kind: input, shape index: {}]
  %s3 = inlined_call_operand.vmem [shape: bf16[2,128,384], index: 3, kind: input, shape index: {}]
  %s4 = inlined_call_operand.vmem [shape: f32[2,1,384], index: 4, kind: input, shape index: {}]
  %s5 = inlined_call_operand.vmem [shape: bf16[2,128,128], index: 5, kind: input, shape index: {}]
  %s6 = inlined_call_operand.vmem [shape: f32[2,1,128], index: 6, kind: input, shape index: {}]
  %s7 = inlined_call_operand.vmem [shape: f32[2,1,128], index: 7, kind: input, shape index: {}]
  %s8 = inlined_call_operand.vmem [shape: f32[2,1,128], index: 8, kind: input, shape index: {}]
  %s9 = inlined_call_operand.vmem [shape: bf16[2,128,256], index: 9, kind: input, shape index: {}]
  %s10 = inlined_call_operand.vmem [shape: f32[2,1,256], index: 10, kind: input, shape index: {}]
  %s11 = inlined_call_operand.hbm [shape: bf16[2,256,128], index: 11, kind: input, shape index: {}]
  %s12 = inlined_call_operand.vmem [shape: f32[2,1,128], index: 12, kind: input, shape index: {}]
  %s13 = inlined_call_operand.vmem [shape: f32[2,1,128], index: 13, kind: input, shape index: {}]
  %s14 = inlined_call_operand.vmem [shape: f32[2,1,128], index: 14, kind: input, shape index: {}]
  %s15 = inlined_call_operand.vmem [shape: f32[1,128], index: 15, kind: input, shape index: {}]
  %s16 = inlined_call_operand.vmem [shape: f32[1,128], index: 16, kind: input, shape index: {}]
  %s17 = inlined_call_operand.hbm [shape: bf16[128,128], index: 17, kind: input, shape index: {}]
  %s18 = inlined_call_operand.vmem [shape: f32[1,128], index: 18, kind: input, shape index: {}]
  %s19 = inlined_call_operand.vmem [shape: f32[8,8], index: 19, kind: input, shape index: {}]
  %s20 = inlined_call_operand.vmem [shape: f32[2,8], index: 20, kind: input, shape index: {}]
  %s21 = inlined_call_operand.hbm [shape: f32[2,128], index: 21, kind: output, shape index: {}]
  %s22 = sld [smem:[#allocation0]]
  $region102: #{custom_image_classifier.1} parent=0
    _
  %s24 = ssub.s32 1, %s22
  %s25 = scalar_select 0, %s24, %s22
  $region1: #{custom_image_classifier.1} parent=0
    #allocation2 [shape = 'u8[131072]{0}', space=vmem, size = 0x20000, scoped, tag = 'input window, operand 11, single buffered']
    #allocation3 [shape = 's32[1]{0}', space=sflag, size = 0x4, scoped, tag = 'scoped memory for custom_image_classifier.1']
    #allocation4 [shape = 's32[1]{0}', space=sflag, size = 0x4, scoped, tag = 'scoped memory for custom_image_classifier.1']
    #allocation5 [shape = 'u8[32768]{0}', space=vmem, size = 0x8000, scoped, tag = 'input window, operand 17, single buffered']
    #allocation6 [shape = 's32[1]{0}', space=sflag, size = 0x4, scoped, tag = 'scoped memory for custom_image_classifier.1']
    #allocation7 [shape = 'u8[1024]{0}', space=vmem, size = 0x400, scoped, tag = 'output window, operand 0, single buffered']
    %26 = vsyncpa [#allocation3], 0
    %27 = vsyncpa [#allocation6], 0
    %28 = vsyncpa [#allocation4], 0
    // Predicated region
    $region2: #{custom_image_classifier.1} parent=1 // pred_check
      _
    $region3: #{custom_image_classifier.1} parent=1 // pred_check_branch
      %30 = sbr.rel (0) target = $region5
    $region4: #{custom_image_classifier.1} parent=1 // pred_region
      _
    $region5: #{custom_image_classifier.1} parent=1 // pred_fallthru
      _
    // Predicated region
    $region6: #{custom_image_classifier.1} parent=1 // pred_check
      _
    $region7: #{custom_image_classifier.1} parent=1 // pred_check_branch
      %32 = sbr.rel (0) target = $region9
    $region8: #{custom_image_classifier.1} parent=1 // pred_region
      _
    $region9: #{custom_image_classifier.1} parent=1 // pred_fallthru
      _
    // Predicated region
    $region10: #{custom_image_classifier.1} parent=1 // pred_check
      _
    $region11: #{custom_image_classifier.1} parent=1 // pred_check_branch
      %34 = sbr.rel (0) target = $region13
    $region12: #{custom_image_classifier.1} parent=1 // pred_region
      _
    $region13: #{custom_image_classifier.1} parent=1 // pred_fallthru
      _
    // Predicated region
    $region14: #{custom_image_classifier.1} parent=1 // pred_check
      _
    $region15: #{custom_image_classifier.1} parent=1 // pred_check_branch
      %36 = sbr.rel (0) target = $region17
    $region16: #{custom_image_classifier.1} parent=1 // pred_region
      _
    $region17: #{custom_image_classifier.1} parent=1 // pred_fallthru
      _
    // Predicated region
    $region18: #{custom_image_classifier.1} parent=1 // pred_check
      _
    $region19: #{custom_image_classifier.1} parent=1 // pred_check_branch
      %38 = sbr.rel (0) target = $region21
    $region20: #{custom_image_classifier.1} parent=1 // pred_region
      _
    $region21: #{custom_image_classifier.1} parent=1 // pred_fallthru
      _
    // Predicated region
    $region22: #{custom_image_classifier.1} parent=1 // pred_check
      _
    $region23: #{custom_image_classifier.1} parent=1 // pred_check_branch
      %40 = sbr.rel (0) target = $region25
    $region24: #{custom_image_classifier.1} parent=1 // pred_region
      _
    $region25: #{custom_image_classifier.1} parent=1 // pred_fallthru
      _
    // Predicated region
    $region26: #{custom_image_classifier.1} parent=1 // pred_check
      _
    $region27: #{custom_image_classifier.1} parent=1 // pred_check_branch
      %42 = sbr.rel (0) target = $region29
    $region28: #{custom_image_classifier.1} parent=1 // pred_region
      _
    $region29: #{custom_image_classifier.1} parent=1 // pred_fallthru
      _
    // Predicated region
    $region30: #{custom_image_classifier.1} parent=1 // pred_check
      _
    $region31: #{custom_image_classifier.1} parent=1 // pred_check_branch
      %44 = sbr.rel (0) target = $region33
    $region32: #{custom_image_classifier.1} parent=1 // pred_region
      _
    $region33: #{custom_image_classifier.1} parent=1 // pred_fallthru
      _
    // Predicated region
    $region34: #{custom_image_classifier.1} parent=1 // pred_check
      _
    $region35: #{custom_image_classifier.1} parent=1 // pred_check_branch
      %46 = sbr.rel (0) target = $region37
    $region36: #{custom_image_classifier.1} parent=1 // pred_region
      _
    $region37: #{custom_image_classifier.1} parent=1 // pred_fallthru
      _
    // Predicated region
    $region38: #{custom_image_classifier.1} parent=1 // pred_check
      _
    $region39: #{custom_image_classifier.1} parent=1 // pred_check_branch
      %48 = sbr.rel (0) target = $region41
    $region40: #{custom_image_classifier.1} parent=1 // pred_region
      _
    $region41: #{custom_image_classifier.1} parent=1 // pred_fallthru
      _
    // Predicated region
    $region42: #{custom_image_classifier.1} parent=1 // pred_check
      _
    $region43: #{custom_image_classifier.1} parent=1 // pred_check_branch
      %50 = sbr.rel (0) target = $region45
    $region44: #{custom_image_classifier.1} parent=1 // pred_region
      _
    $region45: #{custom_image_classifier.1} parent=1 // pred_fallthru
      _
    // Predicated region
    $region46: #{custom_image_classifier.1} parent=1 // pred_check
      _
    $region47: #{custom_image_classifier.1} parent=1 // pred_check_branch
      %52 = sbr.rel (0) target = $region49
    $region48: #{custom_image_classifier.1} parent=1 // pred_region
      %54 = vsyncadd [#allocation3], 0
      %s55 = sshll.u32 %s11, 4
      %s56 = int_to_ptr.hbm [resolvable:$true] %s55
      %s57 = sshll.u32 [#allocation2], 4
      %s58 = int_to_ptr.vmem [resolvable:$true] %s57
      %63 = dma.hbm_to_vmem [thread:$0]  %s56, 4096, %s58, [#allocation3], 64, 64, 4
    $region49: #{custom_image_classifier.1} parent=1 // pred_fallthru
      _
    // Predicated region
    $region50: #{custom_image_classifier.1} parent=1 // pred_check
      _
    $region51: #{custom_image_classifier.1} parent=1 // pred_check_branch
      %65 = sbr.rel (0) target = $region53
    $region52: #{custom_image_classifier.1} parent=1 // pred_region
      _
    $region53: #{custom_image_classifier.1} parent=1 // pred_fallthru
      _
    // Predicated region
    $region54: #{custom_image_classifier.1} parent=1 // pred_check
      _
    $region55: #{custom_image_classifier.1} parent=1 // pred_check_branch
      %67 = sbr.rel (0) target = $region57
    $region56: #{custom_image_classifier.1} parent=1 // pred_region
      _
    $region57: #{custom_image_classifier.1} parent=1 // pred_fallthru
      _
    // Predicated region
    $region58: #{custom_image_classifier.1} parent=1 // pred_check
      _
    $region59: #{custom_image_classifier.1} parent=1 // pred_check_branch
      %69 = sbr.rel (0) target = $region61
    $region60: #{custom_image_classifier.1} parent=1 // pred_region
      _
    $region61: #{custom_image_classifier.1} parent=1 // pred_fallthru
      _
    // Predicated region
    $region62: #{custom_image_classifier.1} parent=1 // pred_check
      _
    $region63: #{custom_image_classifier.1} parent=1 // pred_check_branch
      %71 = sbr.rel (0) target = $region65
    $region64: #{custom_image_classifier.1} parent=1 // pred_region
      _
    $region65: #{custom_image_classifier.1} parent=1 // pred_fallthru
      _
    // Predicated region
    $region66: #{custom_image_classifier.1} parent=1 // pred_check
      _
    $region67: #{custom_image_classifier.1} parent=1 // pred_check_branch
      %73 = sbr.rel (0) target = $region69
    $region68: #{custom_image_classifier.1} parent=1 // pred_region
      _
    $region69: #{custom_image_classifier.1} parent=1 // pred_fallthru
      _
    // Predicated region
    $region70: #{custom_image_classifier.1} parent=1 // pred_check
      _
    $region71: #{custom_image_classifier.1} parent=1 // pred_check_branch
      %75 = sbr.rel (0) target = $region73
    $region72: #{custom_image_classifier.1} parent=1 // pred_region
      %77 = vsyncadd [#allocation6], 0
      %s78 = sshll.u32 %s17, 4
      %s79 = int_to_ptr.hbm [resolvable:$true] %s78
      %s80 = sshll.u32 [#allocation5], 4
      %s81 = int_to_ptr.vmem [resolvable:$true] %s80
      %86 = dma.hbm_to_vmem [thread:$0]  %s79, 1024, %s81, [#allocation6], 64, 64, 4
    $region73: #{custom_image_classifier.1} parent=1 // pred_fallthru
      _
    // Predicated region
    $region74: #{custom_image_classifier.1} parent=1 // pred_check
      _
    $region75: #{custom_image_classifier.1} parent=1 // pred_check_branch
      %88 = sbr.rel (0) target = $region77
    $region76: #{custom_image_classifier.1} parent=1 // pred_region
      _
    $region77: #{custom_image_classifier.1} parent=1 // pred_fallthru
      _
    // Predicated region
    $region78: #{custom_image_classifier.1} parent=1 // pred_check
      _
    $region79: #{custom_image_classifier.1} parent=1 // pred_check_branch
      %90 = sbr.rel (0) target = $region81
    $region80: #{custom_image_classifier.1} parent=1 // pred_region
      _
    $region81: #{custom_image_classifier.1} parent=1 // pred_fallthru
      _
    // Predicated region
    $region82: #{custom_image_classifier.1} parent=1 // pred_check
      _
    $region83: #{custom_image_classifier.1} parent=1 // pred_check_branch
      %92 = sbr.rel (0) target = $region85
    $region84: #{custom_image_classifier.1} parent=1 // pred_region
      _
    $region85: #{custom_image_classifier.1} parent=1 // pred_fallthru
      _
    // Predicated region
    $region86: #{custom_image_classifier.1} parent=1 // pred_check
      _
    $region87: #{custom_image_classifier.1} parent=1 // pred_check_branch
      %94 = sbr.rel (0) target = $region89
    $region88: #{custom_image_classifier.1} parent=1 // pred_region
      %96 = dma.done [#allocation3], 4096
    $region89: #{custom_image_classifier.1} parent=1 // pred_fallthru
      _
    // Predicated region
    $region90: #{custom_image_classifier.1} parent=1 // pred_check
      _
    $region91: #{custom_image_classifier.1} parent=1 // pred_check_branch
      %98 = sbr.rel (0) target = $region93
    $region92: #{custom_image_classifier.1} parent=1 // pred_region
      %100 = dma.done [#allocation6], 1024
    $region93: #{custom_image_classifier.1} parent=1 // pred_fallthru
      _
    %v102 = vld [vmem:[%s0] sm:$0xff]
    %v103 = vld [vmem:[%s0 + $0x8] sm:$0xff]
    %v104 = vld [vmem:[%s0 + $0x10] sm:$0xf]
    %v105 = vld [vmem:[%s1] sm:$0xf]
    %v106 = vld [vmem:[%s1 + $0x4] sm:$0xf]
    %v107 = vld [vmem:[%s1 + $0x8] sm:$0xf]
    %v108 = vld [vmem:[%s1 + $0xc] sm:$0xf]
    %v109 = vld [vmem:[%s1 + $0x10] sm:$0xf]
    %v110 = vld [vmem:[%s1 + $0x14] sm:$0xf]
    %v111 = vld [vmem:[%s1 + $0x18] sm:$0xf]
    %v112 = vld [vmem:[%s1 + $0x1c] sm:$0xf]
    %v113 = vld [vmem:[%s1 + $0x20] sm:$0xf]
    %v114 = vld [vmem:[%s1 + $0x24] sm:$0xf]
    %v115 = vld [vmem:[%s1 + $0x28] sm:$0xf]
    %v116 = vld [vmem:[%s1 + $0x2c] sm:$0xf]
    %v117 = vld [vmem:[%s1 + $0x30] sm:$0xf]
    %v118 = vld [vmem:[%s1 + $0x34] sm:$0xf]
    %v119 = vld [vmem:[%s1 + $0x38] sm:$0xf]
    %v120 = vld [vmem:[%s1 + $0x3c] sm:$0xf]
    %v121 = vld [vmem:[%s1 + $0x40] sm:$0xf]
    %v122 = vld [vmem:[%s1 + $0x44] sm:$0xf]
    %v123 = vld [vmem:[%s1 + $0x48] sm:$0xf]
    %v124 = vld [vmem:[%s1 + $0x4c] sm:$0xf]
    %v125 = vld [vmem:[%s1 + $0x50] sm:$0xf]
    %v126 = vld [vmem:[%s1 + $0x54] sm:$0xf]
    %v127 = vld [vmem:[%s1 + $0x58] sm:$0xf]
    %v128 = vld [vmem:[%s1 + $0x5c] sm:$0xf]
    %v129 = vld [vmem:[%s1 + $0x60] sm:$0xf]
    %v130 = vld [vmem:[%s1 + $0x64] sm:$0xf]
    %v131 = vld [vmem:[%s1 + $0x68] sm:$0xf]
    %v132 = vld [vmem:[%s1 + $0x6c] sm:$0xf]
    %v133 = vld [vmem:[%s1 + $0x70] sm:$0xf]
    %v134 = vld [vmem:[%s1 + $0x74] sm:$0xf]
    %v135 = vld [vmem:[%s1 + $0x78] sm:$0xf]
    %v136 = vld [vmem:[%s1 + $0x7c] sm:$0xf]
    %v137 = vld [vmem:[%s1 + $0x80] sm:$0xf]
    %v138 = vld [vmem:[%s1 + $0x84] sm:$0xf]
    %v139 = vld [vmem:[%s1 + $0x88] sm:$0xf]
    %v140 = vld [vmem:[%s1 + $0x8c] sm:$0xf]
    %v141 = vld [vmem:[%s1 + $0x90] sm:$0xf]
    %v142 = vld [vmem:[%s1 + $0x94] sm:$0xf]
    %v143 = vld [vmem:[%s1 + $0x98] sm:$0xf]
    %v144 = vld [vmem:[%s1 + $0x9c] sm:$0xf]
    %v145 = vld [vmem:[%s1 + $0xa0] sm:$0xf]
    %v146 = vld [vmem:[%s1 + $0xa4] sm:$0xf]
    %v147 = vld [vmem:[%s1 + $0xa8] sm:$0xf]
    %v148 = vld [vmem:[%s1 + $0xac] sm:$0xf]
    %v149 = vld [vmem:[%s1 + $0xb0] sm:$0xf]
    %v150 = vld [vmem:[%s1 + $0xb4] sm:$0xf]
    %v151 = vld [vmem:[%s1 + $0xb8] sm:$0xf]
    %v152 = vld [vmem:[%s1 + $0xbc] sm:$0xf]
    %v153 = vld [vmem:[%s1 + $0xc0] sm:$0xf]
    %v154 = vld [vmem:[%s1 + $0xc4] sm:$0xf]
    %v155 = vld [vmem:[%s1 + $0xc8] sm:$0xf]
    %v156 = vld [vmem:[%s1 + $0xcc] sm:$0xf]
    %v157 = vld [vmem:[%s1 + $0xd0] sm:$0xf]
    %v158 = vld [vmem:[%s1 + $0xd4] sm:$0xf]
    %v159 = vld [vmem:[%s1 + $0xd8] sm:$0xf]
    %v160 = vld [vmem:[%s1 + $0xdc] sm:$0xf]
    %v161 = vld [vmem:[%s1 + $0xe0] sm:$0xf]
    %v162 = vld [vmem:[%s1 + $0xe4] sm:$0xf]
    %v163 = vld [vmem:[%s1 + $0xe8] sm:$0xf]
    %v164 = vld [vmem:[%s1 + $0xec] sm:$0xf]
    %v165 = vld [vmem:[%s1 + $0xf0] sm:$0xf]
    %v166 = vld [vmem:[%s1 + $0xf4] sm:$0xf]
    %v167 = vld [vmem:[%s1 + $0xf8] sm:$0xf]
    %v168 = vld [vmem:[%s1 + $0xfc] sm:$0xf]
    %v169 = vld [vmem:[%s1 + $0x100] sm:$0xf]
    %v170 = vld [vmem:[%s1 + $0x104] sm:$0xf]
    %v171 = vld [vmem:[%s1 + $0x108] sm:$0xf]
    %v172 = vld [vmem:[%s1 + $0x10c] sm:$0xf]
    %v173 = vld [vmem:[%s1 + $0x110] sm:$0xf]
    %v174 = vld [vmem:[%s1 + $0x114] sm:$0xf]
    %v175 = vld [vmem:[%s1 + $0x118] sm:$0xf]
    %v176 = vld [vmem:[%s1 + $0x11c] sm:$0xf]
    %v177 = vld [vmem:[%s1 + $0x120] sm:$0xf]
    %v178 = vld [vmem:[%s1 + $0x124] sm:$0xf]
    %v179 = vld [vmem:[%s1 + $0x128] sm:$0xf]
    %v180 = vld [vmem:[%s1 + $0x12c] sm:$0xf]
    %v181 = vld [vmem:[%s1 + $0x130] sm:$0xf]
    %v182 = vld [vmem:[%s1 + $0x134] sm:$0xf]
    %v183 = vld [vmem:[%s1 + $0x138] sm:$0xf]
    %v184 = vld [vmem:[%s1 + $0x13c] sm:$0xf]
    %v185 = vld [vmem:[%s2] sm:$0x1]
    %v187 = vperm.slane %v185, 0
    %v192 = vunpack.c.l.b16 %v102
    %v193 = vunpack.c.h.b16 %v102
    %v194 = vunpack.c.l.b16 %v103
    %v195 = vunpack.c.h.b16 %v103
    %v196 = vunpack.c.l.b16 %v104
    %v197 = vpack.c.b16 %v192, %v192
    %v198 = vpack.c.b16 %v193, %v193
    %v199 = vpack.c.b16 %v194, %v194
    %v200 = vpack.c.b16 %v195, %v195
    %v201 = vpack.c.b16 %v196, %v196
    %v287 = vunpack.c.l.b16 %v105
    %v288 = vunpack.c.l.b16 %v106
    %v289 = vunpack.c.l.b16 %v107
    %v290 = vunpack.c.l.b16 %v108
    %v291 = vunpack.c.l.b16 %v109
    %v292 = vunpack.c.l.b16 %v110
    %v293 = vunpack.c.l.b16 %v111
    %v294 = vunpack.c.l.b16 %v112
    %v295 = vunpack.c.l.b16 %v113
    %v296 = vunpack.c.l.b16 %v114
    %v297 = vunpack.c.l.b16 %v115
    %v298 = vunpack.c.l.b16 %v116
    %v299 = vunpack.c.l.b16 %v117
    %v300 = vunpack.c.l.b16 %v118
    %v301 = vunpack.c.l.b16 %v119
    %v302 = vunpack.c.l.b16 %v120
    %v303 = vunpack.c.l.b16 %v121
    %v304 = vunpack.c.l.b16 %v122
    %v305 = vunpack.c.l.b16 %v123
    %v306 = vunpack.c.l.b16 %v124
    %v307 = vunpack.c.l.b16 %v125
    %v308 = vunpack.c.l.b16 %v126
    %v309 = vunpack.c.l.b16 %v127
    %v310 = vunpack.c.l.b16 %v128
    %v311 = vunpack.c.l.b16 %v129
    %v312 = vunpack.c.l.b16 %v130
    %v313 = vunpack.c.l.b16 %v131
    %v314 = vunpack.c.l.b16 %v132
    %v315 = vunpack.c.l.b16 %v133
    %v316 = vunpack.c.l.b16 %v134
    %v317 = vunpack.c.l.b16 %v135
    %v318 = vunpack.c.l.b16 %v136
    %v319 = vunpack.c.l.b16 %v137
    %v320 = vunpack.c.l.b16 %v138
    %v321 = vunpack.c.l.b16 %v139
    %v322 = vunpack.c.l.b16 %v140
    %v323 = vunpack.c.l.b16 %v141
    %v324 = vunpack.c.l.b16 %v142
    %v325 = vunpack.c.l.b16 %v143
    %v326 = vunpack.c.l.b16 %v144
    %v327 = vunpack.c.l.b16 %v145
    %v328 = vunpack.c.l.b16 %v146
    %v329 = vunpack.c.l.b16 %v147
    %v330 = vunpack.c.l.b16 %v148
    %v331 = vunpack.c.l.b16 %v149
    %v332 = vunpack.c.l.b16 %v150
    %v333 = vunpack.c.l.b16 %v151
    %v334 = vunpack.c.l.b16 %v152
    %v335 = vunpack.c.l.b16 %v153
    %v336 = vunpack.c.l.b16 %v154
    %v337 = vunpack.c.l.b16 %v155
    %v338 = vunpack.c.l.b16 %v156
    %v339 = vunpack.c.l.b16 %v157
    %v340 = vunpack.c.l.b16 %v158
    %v341 = vunpack.c.l.b16 %v159
    %v342 = vunpack.c.l.b16 %v160
    %v343 = vunpack.c.l.b16 %v161
    %v344 = vunpack.c.l.b16 %v162
    %v345 = vunpack.c.l.b16 %v163
    %v346 = vunpack.c.l.b16 %v164
    %v347 = vunpack.c.l.b16 %v165
    %v348 = vunpack.c.l.b16 %v166
    %v349 = vunpack.c.l.b16 %v167
    %v350 = vunpack.c.l.b16 %v168
    %v351 = vunpack.c.l.b16 %v169
    %v352 = vunpack.c.l.b16 %v170
    %v353 = vunpack.c.l.b16 %v171
    %v354 = vunpack.c.l.b16 %v172
    %v355 = vunpack.c.l.b16 %v173
    %v356 = vunpack.c.l.b16 %v174
    %v357 = vunpack.c.l.b16 %v175
    %v358 = vunpack.c.l.b16 %v176
    %v359 = vunpack.c.l.b16 %v177
    %v360 = vunpack.c.l.b16 %v178
    %v361 = vunpack.c.l.b16 %v179
    %v362 = vunpack.c.l.b16 %v180
    %v363 = vunpack.c.l.b16 %v181
    %v364 = vunpack.c.l.b16 %v182
    %v365 = vunpack.c.l.b16 %v183
    %v366 = vunpack.c.l.b16 %v184
    %v367 = vpack.c.b16 %v288, %v287
    %v368 = vpack.c.b16 %v290, %v289
    %v369 = vpack.c.b16 %v292, %v291
    %v370 = vpack.c.b16 %v294, %v293
    %v371 = vpack.c.b16 %v296, %v295
    %v372 = vpack.c.b16 %v298, %v297
    %v373 = vpack.c.b16 %v300, %v299
    %v374 = vpack.c.b16 %v302, %v301
    %v375 = vpack.c.b16 %v304, %v303
    %v376 = vpack.c.b16 %v306, %v305
    %v377 = vpack.c.b16 %v308, %v307
    %v378 = vpack.c.b16 %v310, %v309
    %v379 = vpack.c.b16 %v312, %v311
    %v380 = vpack.c.b16 %v314, %v313
    %v381 = vpack.c.b16 %v316, %v315
    %v382 = vpack.c.b16 %v318, %v317
    %v383 = vpack.c.b16 %v320, %v319
    %v384 = vpack.c.b16 %v322, %v321
    %v385 = vpack.c.b16 %v324, %v323
    %v386 = vpack.c.b16 %v326, %v325
    %v387 = vpack.c.b16 %v328, %v327
    %v388 = vpack.c.b16 %v330, %v329
    %v389 = vpack.c.b16 %v332, %v331
    %v390 = vpack.c.b16 %v334, %v333
    %v391 = vpack.c.b16 %v336, %v335
    %v392 = vpack.c.b16 %v338, %v337
    %v393 = vpack.c.b16 %v340, %v339
    %v394 = vpack.c.b16 %v342, %v341
    %v395 = vpack.c.b16 %v344, %v343
    %v396 = vpack.c.b16 %v346, %v345
    %v397 = vpack.c.b16 %v348, %v347
    %v398 = vpack.c.b16 %v350, %v349
    %v399 = vpack.c.b16 %v352, %v351
    %v400 = vpack.c.b16 %v354, %v353
    %v401 = vpack.c.b16 %v356, %v355
    %v402 = vpack.c.b16 %v358, %v357
    %v403 = vpack.c.b16 %v360, %v359
    %v404 = vpack.c.b16 %v362, %v361
    %v405 = vpack.c.b16 %v364, %v363
    %v406 = vpack.c.b16 %v366, %v365
    %447 = vmatpush.bf16.msra.mxu0 %v374
    %448 = vmatpush.bf16.msra.mxu0 %v373
    %449 = vmatpush.bf16.msra.mxu0 %v372
    %450 = vmatpush.bf16.msra.mxu0 %v371
    %451 = vmatpush.bf16.msra.mxu0 %v370
    %452 = vmatpush.bf16.msra.mxu0 %v369
    %453 = vmatpush.bf16.msra.mxu0 %v368
    %454 = vmatpush.bf16.msra.mxu0 %v367
    %455 = vmatmul.bf16.gmra.mxu0 %v197
    %v456 = vpop.f32.mrf.mxu0
    %v457 = vadd.f32 %v187, %v456
    %v458 = vpop.f32.mrf.mxu0
    %459 = vdwg.mxu0
    %460 = vmatpush.bf16.msra.mxu0 %v382
    %461 = vmatpush.bf16.msra.mxu0 %v381
    %462 = vmatpush.bf16.msra.mxu0 %v380
    %463 = vmatpush.bf16.msra.mxu0 %v379
    %464 = vmatpush.bf16.msra.mxu0 %v378
    %465 = vmatpush.bf16.msra.mxu0 %v377
    %466 = vmatpush.bf16.msra.mxu0 %v376
    %467 = vmatpush.bf16.msra.mxu0 %v375
    %468 = vmatmul.bf16.gmra.mxu0 %v198
    %v469 = vpop.f32.mrf.mxu0
    %v470 = vadd.f32 %v457, %v469
    %v471 = vpop.f32.mrf.mxu0
    %472 = vdwg.mxu0
    %473 = vmatpush.bf16.msra.mxu0 %v390
    %474 = vmatpush.bf16.msra.mxu0 %v389
    %475 = vmatpush.bf16.msra.mxu0 %v388
    %476 = vmatpush.bf16.msra.mxu0 %v387
    %477 = vmatpush.bf16.msra.mxu0 %v386
    %478 = vmatpush.bf16.msra.mxu0 %v385
    %479 = vmatpush.bf16.msra.mxu0 %v384
    %480 = vmatpush.bf16.msra.mxu0 %v383
    %481 = vmatmul.bf16.gmra.mxu0 %v199
    %v482 = vpop.f32.mrf.mxu0
    %v483 = vadd.f32 %v470, %v482
    %v484 = vpop.f32.mrf.mxu0
    %485 = vdwg.mxu0
    %486 = vmatpush.bf16.msra.mxu0 %v398
    %487 = vmatpush.bf16.msra.mxu0 %v397
    %488 = vmatpush.bf16.msra.mxu0 %v396
    %489 = vmatpush.bf16.msra.mxu0 %v395
    %490 = vmatpush.bf16.msra.mxu0 %v394
    %491 = vmatpush.bf16.msra.mxu0 %v393
    %492 = vmatpush.bf16.msra.mxu0 %v392
    %493 = vmatpush.bf16.msra.mxu0 %v391
    %494 = vmatmul.bf16.gmra.mxu0 %v200
    %v495 = vpop.f32.mrf.mxu0
    %v496 = vadd.f32 %v483, %v495
    %v497 = vpop.f32.mrf.mxu0
    %498 = vdwg.mxu0
    %499 = vmatpush.bf16.msra.mxu0 %v406
    %500 = vmatpush.bf16.msra.mxu0 %v405
    %501 = vmatpush.bf16.msra.mxu0 %v404
    %502 = vmatpush.bf16.msra.mxu0 %v403
    %503 = vmatpush.bf16.msra.mxu0 %v402
    %504 = vmatpush.bf16.msra.mxu0 %v401
    %505 = vmatpush.bf16.msra.mxu0 %v400
    %506 = vmatpush.bf16.msra.mxu0 %v399
    %507 = vmatmul.bf16.gmra.mxu0 %v201
    %v508 = vpop.f32.mrf.mxu0
    %v509 = vadd.f32 %v496, %v508
    %v510 = vpop.f32.mrf.mxu0
    %511 = vdwg.mxu0
    %v512 = vld [vmem:[%s19] sm:$0xff]
    %v513 = vpack.c.bf16 %v509, %v509
    %v514 = vld [vmem:[%s3] sm:$0xff]
    %v515 = vld [vmem:[%s3 + $0x8] sm:$0xf]
    %v516 = vld [vmem:[%s3 + $0xc] sm:$0xff]
    %v517 = vld [vmem:[%s3 + $0x14] sm:$0xf]
    %v518 = vld [vmem:[%s3 + $0x18] sm:$0xff]
    %v519 = vld [vmem:[%s3 + $0x20] sm:$0xf]
    %v520 = vld [vmem:[%s3 + $0x24] sm:$0xff]
    %v521 = vld [vmem:[%s3 + $0x2c] sm:$0xf]
    %v522 = vld [vmem:[%s3 + $0x30] sm:$0xff]
    %v523 = vld [vmem:[%s3 + $0x38] sm:$0xf]
    %v524 = vld [vmem:[%s3 + $0x3c] sm:$0xff]
    %v525 = vld [vmem:[%s3 + $0x44] sm:$0xf]
    %v526 = vld [vmem:[%s3 + $0x48] sm:$0xff]
    %v527 = vld [vmem:[%s3 + $0x50] sm:$0xf]
    %v528 = vld [vmem:[%s3 + $0x54] sm:$0xff]
    %v529 = vld [vmem:[%s3 + $0x5c] sm:$0xf]
    %v530 = vld [vmem:[%s3 + $0x60] sm:$0xff]
    %v531 = vld [vmem:[%s3 + $0x68] sm:$0xf]
    %v532 = vld [vmem:[%s3 + $0x6c] sm:$0xff]
    %v533 = vld [vmem:[%s3 + $0x74] sm:$0xf]
    %v534 = vld [vmem:[%s3 + $0x78] sm:$0xff]
    %v535 = vld [vmem:[%s3 + $0x80] sm:$0xf]
    %v536 = vld [vmem:[%s3 + $0x84] sm:$0xff]
    %v537 = vld [vmem:[%s3 + $0x8c] sm:$0xf]
    %v538 = vld [vmem:[%s3 + $0x90] sm:$0xff]
    %v539 = vld [vmem:[%s3 + $0x98] sm:$0xf]
    %v540 = vld [vmem:[%s3 + $0x9c] sm:$0xff]
    %v541 = vld [vmem:[%s3 + $0xa4] sm:$0xf]
    %v542 = vld [vmem:[%s3 + $0xa8] sm:$0xff]
    %v543 = vld [vmem:[%s3 + $0xb0] sm:$0xf]
    %v544 = vld [vmem:[%s3 + $0xb4] sm:$0xff]
    %v545 = vld [vmem:[%s3 + $0xbc] sm:$0xf]
    %v546 = vld [vmem:[%s4] sm:$0x7]
    %v548 = vperm.slane %v546, 0
    %v549 = vperm.slane %v546, 1
    %v550 = vperm.slane %v546, 2
    %v586 = vunpack.c.l.b16 %v514
    %v587 = vunpack.c.h.b16 %v514
    %v588 = vunpack.c.l.b16 %v515
    %v589 = vunpack.c.l.b16 %v516
    %v590 = vunpack.c.h.b16 %v516
    %v591 = vunpack.c.l.b16 %v517
    %v592 = vunpack.c.l.b16 %v518
    %v593 = vunpack.c.h.b16 %v518
    %v594 = vunpack.c.l.b16 %v519
    %v595 = vunpack.c.l.b16 %v520
    %v596 = vunpack.c.h.b16 %v520
    %v597 = vunpack.c.l.b16 %v521
    %v598 = vunpack.c.l.b16 %v522
    %v599 = vunpack.c.h.b16 %v522
    %v600 = vunpack.c.l.b16 %v523
    %v601 = vunpack.c.l.b16 %v524
    %v602 = vunpack.c.h.b16 %v524
    %v603 = vunpack.c.l.b16 %v525
    %v604 = vunpack.c.l.b16 %v526
    %v605 = vunpack.c.h.b16 %v526
    %v606 = vunpack.c.l.b16 %v527
    %v607 = vunpack.c.l.b16 %v528
    %v608 = vunpack.c.h.b16 %v528
    %v609 = vunpack.c.l.b16 %v529
    %v610 = vunpack.c.l.b16 %v530
    %v611 = vunpack.c.h.b16 %v530
    %v612 = vunpack.c.l.b16 %v531
    %v613 = vunpack.c.l.b16 %v532
    %v614 = vunpack.c.h.b16 %v532
    %v615 = vunpack.c.l.b16 %v533
    %v616 = vunpack.c.l.b16 %v534
    %v617 = vunpack.c.h.b16 %v534
    %v618 = vunpack.c.l.b16 %v535
    %v619 = vunpack.c.l.b16 %v536
    %v620 = vunpack.c.h.b16 %v536
    %v621 = vunpack.c.l.b16 %v537
    %v622 = vunpack.c.l.b16 %v538
    %v623 = vunpack.c.h.b16 %v538
    %v624 = vunpack.c.l.b16 %v539
    %v625 = vunpack.c.l.b16 %v540
    %v626 = vunpack.c.h.b16 %v540
    %v627 = vunpack.c.l.b16 %v541
    %v628 = vunpack.c.l.b16 %v542
    %v629 = vunpack.c.h.b16 %v542
    %v630 = vunpack.c.l.b16 %v543
    %v631 = vunpack.c.l.b16 %v544
    %v632 = vunpack.c.h.b16 %v544
    %v633 = vunpack.c.l.b16 %v545
    %v634 = vpack.c.b16 %v589, %v586
    %v635 = vpack.c.b16 %v590, %v587
    %v636 = vpack.c.b16 %v591, %v588
    %v637 = vpack.c.b16 %v595, %v592
    %v638 = vpack.c.b16 %v596, %v593
    %v639 = vpack.c.b16 %v597, %v594
    %v640 = vpack.c.b16 %v601, %v598
    %v641 = vpack.c.b16 %v602, %v599
    %v642 = vpack.c.b16 %v603, %v600
    %v643 = vpack.c.b16 %v607, %v604
    %v644 = vpack.c.b16 %v608, %v605
    %v645 = vpack.c.b16 %v609, %v606
    %v646 = vpack.c.b16 %v613, %v610
    %v647 = vpack.c.b16 %v614, %v611
    %v648 = vpack.c.b16 %v615, %v612
    %v649 = vpack.c.b16 %v619, %v616
    %v650 = vpack.c.b16 %v620, %v617
    %v651 = vpack.c.b16 %v621, %v618
    %v652 = vpack.c.b16 %v625, %v622
    %v653 = vpack.c.b16 %v626, %v623
    %v654 = vpack.c.b16 %v627, %v624
    %v655 = vpack.c.b16 %v631, %v628
    %v656 = vpack.c.b16 %v632, %v629
    %v657 = vpack.c.b16 %v633, %v630
    %682 = vmatpush.bf16.msra.mxu0 %v655
    %683 = vmatpush.bf16.msra.mxu0 %v652
    %684 = vmatpush.bf16.msra.mxu0 %v649
    %685 = vmatpush.bf16.msra.mxu0 %v646
    %686 = vmatpush.bf16.msra.mxu0 %v643
    %687 = vmatpush.bf16.msra.mxu0 %v640
    %688 = vmatpush.bf16.msra.mxu0 %v637
    %689 = vmatpush.bf16.msra.mxu0 %v634
    %690 = vmatmul.bf16.gmra.mxu0 %v513
    %v691 = vpop.f32.mrf.mxu0
    %v692 = vadd.f32 %v548, %v691
    %v693 = vpop.f32.mrf.mxu0
    %694 = vdwg.mxu0
    %695 = vmatpush.bf16.msra.mxu0 %v656
    %696 = vmatpush.bf16.msra.mxu0 %v653
    %697 = vmatpush.bf16.msra.mxu0 %v650
    %698 = vmatpush.bf16.msra.mxu0 %v647
    %699 = vmatpush.bf16.msra.mxu0 %v644
    %700 = vmatpush.bf16.msra.mxu0 %v641
    %701 = vmatpush.bf16.msra.mxu0 %v638
    %702 = vmatpush.bf16.msra.mxu0 %v635
    %703 = vmatmul.bf16.gmra.mxu0 %v513
    %v704 = vpop.f32.mrf.mxu0
    %v705 = vadd.f32 %v549, %v704
    %v706 = vpop.f32.mrf.mxu0
    %707 = vdwg.mxu0
    %708 = vmatpush.bf16.msra.mxu0 %v657
    %709 = vmatpush.bf16.msra.mxu0 %v654
    %710 = vmatpush.bf16.msra.mxu0 %v651
    %711 = vmatpush.bf16.msra.mxu0 %v648
    %712 = vmatpush.bf16.msra.mxu0 %v645
    %713 = vmatpush.bf16.msra.mxu0 %v642
    %714 = vmatpush.bf16.msra.mxu0 %v639
    %715 = vmatpush.bf16.msra.mxu0 %v636
    %716 = vmatmul.bf16.gmra.mxu0 %v513
    %v717 = vpop.f32.mrf.mxu0
    %v718 = vadd.f32 %v550, %v717
    %v719 = vpop.f32.mrf.mxu0
    %720 = vdwg.mxu0
    %vm721 = vcmask 130048
    %v723 = vsel %vm721, %v692, 0
    %v726 = vsel %vm721, %v705, 0
    %728 = vmatpush.xpose.msra.mxu0 0.0
    %729 = vmatpush.xpose.msra.mxu0 0.0
    %730 = vmatpush.xpose.msra.mxu0 0.0
    %731 = vmatpush.xpose.msra.mxu0 0.0
    %732 = vmatpush.xpose.msra.mxu0 0.0
    %733 = vmatpush.xpose.msra.mxu0 0.0
    %734 = vmatpush.xpose.msra.mxu0 0.0
    %735 = vmatpush.xpose.msra.mxu0 0.0
    %736 = vmatpush.xpose.msra.mxu0 0.0
    %737 = vmatpush.xpose.msra.mxu0 0.0
    %738 = vmatpush.xpose.msra.mxu0 0.0
    %739 = vmatpush.xpose.msra.mxu0 0.0
    %740 = vmatpush.xpose.msra.mxu0 0.0
    %741 = vmatpush.xpose.msra.mxu0 0.0
    %742 = vmatpush.xpose.msra.mxu0 0.0
    %743 = vmatpush.xpose.msra.mxu0 %v726
    %744 = vmatmul.f32.gmra.mxu0 %v723
    %v745 = vpop.f32.mrf.mxu0
    %v746 = vadd.f32 0.0, %v745
    %747 = vdwg.mxu0
    %v748 = vmul.f32 %v746, 0.25
    %v749 = vadd.f32 %v748, %v512
    %vm750 = vcmask 64512
    %v751 = vsel %vm750, %v749, -inf
    %752 = vmax.xlane.f32.xlu0 %v751
    %v753 = vpop.xlane.xlu0 %752
    %v754 = vsub.f32 %v749, %v753
    %v755 = vmul.f32 %v754, 1.442695
    %v756 = vpow.pop %v755
    %v757 = vsel %vm750, %v756, 0.0
    %758 = vadd.xlane.f32.xlu0 %v757
    %v759 = vpop.xlane.xlu0 %758
    %v760 = vrcp.pop %v759
    %v761 = vmul.f32 %v756, %v760
    %v763 = vsel %vm750, %v761, 0
    %765 = vmatpush.msra.mxu0 0.0
    %766 = vmatpush.msra.mxu0 0.0
    %767 = vmatpush.msra.mxu0 0.0
    %768 = vmatpush.msra.mxu0 0.0
    %769 = vmatpush.msra.mxu0 0.0
    %770 = vmatpush.msra.mxu0 0.0
    %771 = vmatpush.msra.mxu0 0.0
    %772 = vmatpush.msra.mxu0 0.0
    %773 = vmatpush.msra.mxu0 0.0
    %774 = vmatpush.msra.mxu0 0.0
    %775 = vmatpush.msra.mxu0 0.0
    %776 = vmatpush.msra.mxu0 0.0
    %777 = vmatpush.msra.mxu0 0.0
    %778 = vmatpush.msra.mxu0 0.0
    %779 = vmatpush.msra.mxu0 0.0
    %780 = vmatpush.msra.mxu0 %v718
    %781 = vmatmul.f32.gmra.mxu0 %v763
    %v782 = vpop.f32.mrf.mxu0
    %v783 = vadd.f32 0.0, %v782
    %784 = vdwg.mxu0
    %v785 = vpack.c.bf16 %v783, %v783
    %v786 = vld [vmem:[%s5] sm:$0xf]
    %v787 = vld [vmem:[%s5 + $0x4] sm:$0xf]
    %788 = vrot.lane.b32.xlu0 %v692, 112
    %v789 = vpop.permute.xlu0 %788
    %790 = vrot.lane.b32.xlu0 %v705, 112
    %v791 = vpop.permute.xlu0 %790
    %v792 = vsel %vm721, %v789, 0
    %v794 = vsel %vm721, %v791, 0
    %796 = vmatpush.xpose.msra.mxu0 0.0
    %797 = vmatpush.xpose.msra.mxu0 0.0
    %798 = vmatpush.xpose.msra.mxu0 0.0
    %799 = vmatpush.xpose.msra.mxu0 0.0
    %800 = vmatpush.xpose.msra.mxu0 0.0
    %801 = vmatpush.xpose.msra.mxu0 0.0
    %802 = vmatpush.xpose.msra.mxu0 0.0
    %803 = vmatpush.xpose.msra.mxu0 0.0
    %804 = vmatpush.xpose.msra.mxu0 0.0
    %805 = vmatpush.xpose.msra.mxu0 0.0
    %806 = vmatpush.xpose.msra.mxu0 0.0
    %807 = vmatpush.xpose.msra.mxu0 0.0
    %808 = vmatpush.xpose.msra.mxu0 0.0
    %809 = vmatpush.xpose.msra.mxu0 0.0
    %810 = vmatpush.xpose.msra.mxu0 0.0
    %811 = vmatpush.xpose.msra.mxu0 %v794
    %812 = vmatmul.f32.gmra.mxu0 %v792
    %v813 = vpop.f32.mrf.mxu0
    %v814 = vadd.f32 0.0, %v813
    %815 = vdwg.mxu0
    %v816 = vmul.f32 %v814, 0.25
    %v817 = vadd.f32 %v816, %v512
    %v818 = vsel %vm750, %v817, -inf
    %819 = vmax.xlane.f32.xlu0 %v818
    %v820 = vpop.xlane.xlu0 %819
    %v821 = vsub.f32 %v817, %v820
    %v822 = vmul.f32 %v821, 1.442695
    %v823 = vpow.pop %v822
    %v824 = vsel %vm750, %v823, 0.0
    %825 = vadd.xlane.f32.xlu0 %v824
    %v826 = vpop.xlane.xlu0 %825
    %v827 = vrcp.pop %v826
    %v828 = vmul.f32 %v823, %v827
    %830 = vrot.lane.b32.xlu0 %v718, 112
    %v831 = vpop.permute.xlu0 %830
    %v834 = vsel %vm750, %v828, 0
    %836 = vmatpush.msra.mxu0 0.0
    %837 = vmatpush.msra.mxu0 0.0
    %838 = vmatpush.msra.mxu0 0.0
    %839 = vmatpush.msra.mxu0 0.0
    %840 = vmatpush.msra.mxu0 0.0
    %841 = vmatpush.msra.mxu0 0.0
    %842 = vmatpush.msra.mxu0 0.0
    %843 = vmatpush.msra.mxu0 0.0
    %844 = vmatpush.msra.mxu0 0.0
    %845 = vmatpush.msra.mxu0 0.0
    %846 = vmatpush.msra.mxu0 0.0
    %847 = vmatpush.msra.mxu0 0.0
    %848 = vmatpush.msra.mxu0 0.0
    %849 = vmatpush.msra.mxu0 0.0
    %850 = vmatpush.msra.mxu0 0.0
    %851 = vmatpush.msra.mxu0 %v831
    %852 = vmatmul.f32.gmra.mxu0 %v834
    %v853 = vpop.f32.mrf.mxu0
    %v854 = vadd.f32 0.0, %v853
    %855 = vdwg.mxu0
    %v856 = vpack.c.bf16 %v854, %v854
    %v857 = vld [vmem:[%s5 + $0x8] sm:$0xf]
    %v858 = vld [vmem:[%s5 + $0xc] sm:$0xf]
    %v861 = vunpack.c.l.b16 %v857
    %v862 = vunpack.c.l.b16 %v858
    %v863 = vpack.c.b16 %v862, %v861
    %v866 = vsel %vm721, %v856, 0
    %868 = vmatpush.bf16.msra.mxu0 0
    %869 = vmatpush.bf16.msra.mxu0 0
    %870 = vmatpush.bf16.msra.mxu0 0
    %871 = vmatpush.bf16.msra.mxu0 0
    %872 = vmatpush.bf16.msra.mxu0 0
    %873 = vmatpush.bf16.msra.mxu0 0
    %874 = vmatpush.bf16.msra.mxu0 0
    %875 = vmatpush.bf16.msra.mxu0 %v863
    %876 = vmatmul.bf16.gmra.mxu0 %v866
    %v877 = vpop.f32.mrf.mxu0
    %v878 = vadd.f32 0.0, %v877
    %v879 = vpop.f32.mrf.mxu0
    %880 = vdwg.mxu0
    %v883 = vunpack.c.l.b16 %v786
    %v884 = vunpack.c.l.b16 %v787
    %v885 = vpack.c.b16 %v884, %v883
    %v888 = vsel %vm721, %v785, 0
    %890 = vmatpush.bf16.msra.mxu0 0
    %891 = vmatpush.bf16.msra.mxu0 0
    %892 = vmatpush.bf16.msra.mxu0 0
    %893 = vmatpush.bf16.msra.mxu0 0
    %894 = vmatpush.bf16.msra.mxu0 0
    %895 = vmatpush.bf16.msra.mxu0 0
    %896 = vmatpush.bf16.msra.mxu0 0
    %897 = vmatpush.bf16.msra.mxu0 %v885
    %898 = vmatmul.bf16.gmra.mxu0 %v888
    %v899 = vpop.f32.mrf.mxu0
    %v900 = vadd.f32 %v878, %v899
    %v901 = vpop.f32.mrf.mxu0
    %902 = vdwg.mxu0
    %903 = vrot.lane.b32.xlu0 %v692, 96
    %v904 = vpop.permute.xlu0 %903
    %905 = vrot.lane.b32.xlu0 %v705, 96
    %v906 = vpop.permute.xlu0 %905
    %v907 = vsel %vm721, %v904, 0
    %v909 = vsel %vm721, %v906, 0
    %911 = vmatpush.xpose.msra.mxu0 0.0
    %912 = vmatpush.xpose.msra.mxu0 0.0
    %913 = vmatpush.xpose.msra.mxu0 0.0
    %914 = vmatpush.xpose.msra.mxu0 0.0
    %915 = vmatpush.xpose.msra.mxu0 0.0
    %916 = vmatpush.xpose.msra.mxu0 0.0
    %917 = vmatpush.xpose.msra.mxu0 0.0
    %918 = vmatpush.xpose.msra.mxu0 0.0
    %919 = vmatpush.xpose.msra.mxu0 0.0
    %920 = vmatpush.xpose.msra.mxu0 0.0
    %921 = vmatpush.xpose.msra.mxu0 0.0
    %922 = vmatpush.xpose.msra.mxu0 0.0
    %923 = vmatpush.xpose.msra.mxu0 0.0
    %924 = vmatpush.xpose.msra.mxu0 0.0
    %925 = vmatpush.xpose.msra.mxu0 0.0
    %926 = vmatpush.xpose.msra.mxu0 %v909
    %927 = vmatmul.f32.gmra.mxu0 %v907
    %v928 = vpop.f32.mrf.mxu0
    %v929 = vadd.f32 0.0, %v928
    %930 = vdwg.mxu0
    %v931 = vmul.f32 %v929, 0.25
    %v932 = vadd.f32 %v931, %v512
    %v933 = vsel %vm750, %v932, -inf
    %934 = vmax.xlane.f32.xlu0 %v933
    %v935 = vpop.xlane.xlu0 %934
    %v936 = vsub.f32 %v932, %v935
    %v937 = vmul.f32 %v936, 1.442695
    %v938 = vpow.pop %v937
    %v939 = vsel %vm750, %v938, 0.0
    %940 = vadd.xlane.f32.xlu0 %v939
    %v941 = vpop.xlane.xlu0 %940
    %v942 = vrcp.pop %v941
    %v943 = vmul.f32 %v938, %v942
    %944 = vrot.lane.b32.xlu0 %v718, 96
    %v945 = vpop.permute.xlu0 %944
    %v948 = vsel %vm750, %v943, 0
    %950 = vmatpush.msra.mxu0 0.0
    %951 = vmatpush.msra.mxu0 0.0
    %952 = vmatpush.msra.mxu0 0.0
    %953 = vmatpush.msra.mxu0 0.0
    %954 = vmatpush.msra.mxu0 0.0
    %955 = vmatpush.msra.mxu0 0.0
    %956 = vmatpush.msra.mxu0 0.0
    %957 = vmatpush.msra.mxu0 0.0
    %958 = vmatpush.msra.mxu0 0.0
    %959 = vmatpush.msra.mxu0 0.0
    %960 = vmatpush.msra.mxu0 0.0
    %961 = vmatpush.msra.mxu0 0.0
    %962 = vmatpush.msra.mxu0 0.0
    %963 = vmatpush.msra.mxu0 0.0
    %964 = vmatpush.msra.mxu0 0.0
    %965 = vmatpush.msra.mxu0 %v945
    %966 = vmatmul.f32.gmra.mxu0 %v948
    %v967 = vpop.f32.mrf.mxu0
    %v968 = vadd.f32 0.0, %v967
    %969 = vdwg.mxu0
    %v970 = vpack.c.bf16 %v968, %v968
    %v971 = vld [vmem:[%s5 + $0x10] sm:$0xf]
    %v972 = vld [vmem:[%s5 + $0x14] sm:$0xf]
    %v975 = vunpack.c.l.b16 %v971
    %v976 = vunpack.c.l.b16 %v972
    %v977 = vpack.c.b16 %v976, %v975
    %v980 = vsel %vm721, %v970, 0
    %982 = vmatpush.bf16.msra.mxu0 0
    %983 = vmatpush.bf16.msra.mxu0 0
    %984 = vmatpush.bf16.msra.mxu0 0
    %985 = vmatpush.bf16.msra.mxu0 0
    %986 = vmatpush.bf16.msra.mxu0 0
    %987 = vmatpush.bf16.msra.mxu0 0
    %988 = vmatpush.bf16.msra.mxu0 0
    %989 = vmatpush.bf16.msra.mxu0 %v977
    %990 = vmatmul.bf16.gmra.mxu0 %v980
    %v991 = vpop.f32.mrf.mxu0
    %v992 = vadd.f32 0.0, %v991
    %v993 = vpop.f32.mrf.mxu0
    %994 = vdwg.mxu0
    %v995 = vadd.f32 %v900, %v992
    %996 = vrot.lane.b32.xlu0 %v692, 80
    %v997 = vpop.permute.xlu0 %996
    %998 = vrot.lane.b32.xlu0 %v705, 80
    %v999 = vpop.permute.xlu0 %998
    %v1000 = vsel %vm721, %v997, 0
    %v1002 = vsel %vm721, %v999, 0
    %1004 = vmatpush.xpose.msra.mxu0 0.0
    %1005 = vmatpush.xpose.msra.mxu0 0.0
    %1006 = vmatpush.xpose.msra.mxu0 0.0
    %1007 = vmatpush.xpose.msra.mxu0 0.0
    %1008 = vmatpush.xpose.msra.mxu0 0.0
    %1009 = vmatpush.xpose.msra.mxu0 0.0
    %1010 = vmatpush.xpose.msra.mxu0 0.0
    %1011 = vmatpush.xpose.msra.mxu0 0.0
    %1012 = vmatpush.xpose.msra.mxu0 0.0
    %1013 = vmatpush.xpose.msra.mxu0 0.0
    %1014 = vmatpush.xpose.msra.mxu0 0.0
    %1015 = vmatpush.xpose.msra.mxu0 0.0
    %1016 = vmatpush.xpose.msra.mxu0 0.0
    %1017 = vmatpush.xpose.msra.mxu0 0.0
    %1018 = vmatpush.xpose.msra.mxu0 0.0
    %1019 = vmatpush.xpose.msra.mxu0 %v1002
    %1020 = vmatmul.f32.gmra.mxu0 %v1000
    %v1021 = vpop.f32.mrf.mxu0
    %v1022 = vadd.f32 0.0, %v1021
    %1023 = vdwg.mxu0
    %v1024 = vmul.f32 %v1022, 0.25
    %v1025 = vadd.f32 %v1024, %v512
    %v1026 = vsel %vm750, %v1025, -inf
    %1027 = vmax.xlane.f32.xlu0 %v1026
    %v1028 = vpop.xlane.xlu0 %1027
    %v1029 = vsub.f32 %v1025, %v1028
    %v1030 = vmul.f32 %v1029, 1.442695
    %v1031 = vpow.pop %v1030
    %v1032 = vsel %vm750, %v1031, 0.0
    %1033 = vadd.xlane.f32.xlu0 %v1032
    %v1034 = vpop.xlane.xlu0 %1033
    %v1035 = vrcp.pop %v1034
    %v1036 = vmul.f32 %v1031, %v1035
    %1037 = vrot.lane.b32.xlu0 %v718, 80
    %v1038 = vpop.permute.xlu0 %1037
    %v1041 = vsel %vm750, %v1036, 0
    %1043 = vmatpush.msra.mxu0 0.0
    %1044 = vmatpush.msra.mxu0 0.0
    %1045 = vmatpush.msra.mxu0 0.0
    %1046 = vmatpush.msra.mxu0 0.0
    %1047 = vmatpush.msra.mxu0 0.0
    %1048 = vmatpush.msra.mxu0 0.0
    %1049 = vmatpush.msra.mxu0 0.0
    %1050 = vmatpush.msra.mxu0 0.0
    %1051 = vmatpush.msra.mxu0 0.0
    %1052 = vmatpush.msra.mxu0 0.0
    %1053 = vmatpush.msra.mxu0 0.0
    %1054 = vmatpush.msra.mxu0 0.0
    %1055 = vmatpush.msra.mxu0 0.0
    %1056 = vmatpush.msra.mxu0 0.0
    %1057 = vmatpush.msra.mxu0 0.0
    %1058 = vmatpush.msra.mxu0 %v1038
    %1059 = vmatmul.f32.gmra.mxu0 %v1041
    %v1060 = vpop.f32.mrf.mxu0
    %v1061 = vadd.f32 0.0, %v1060
    %1062 = vdwg.mxu0
    %v1063 = vpack.c.bf16 %v1061, %v1061
    %v1064 = vld [vmem:[%s5 + $0x18] sm:$0xf]
    %v1065 = vld [vmem:[%s5 + $0x1c] sm:$0xf]
    %v1068 = vunpack.c.l.b16 %v1064
    %v1069 = vunpack.c.l.b16 %v1065
    %v1070 = vpack.c.b16 %v1069, %v1068
    %v1073 = vsel %vm721, %v1063, 0
    %1075 = vmatpush.bf16.msra.mxu0 0
    %1076 = vmatpush.bf16.msra.mxu0 0
    %1077 = vmatpush.bf16.msra.mxu0 0
    %1078 = vmatpush.bf16.msra.mxu0 0
    %1079 = vmatpush.bf16.msra.mxu0 0
    %1080 = vmatpush.bf16.msra.mxu0 0
    %1081 = vmatpush.bf16.msra.mxu0 0
    %1082 = vmatpush.bf16.msra.mxu0 %v1070
    %1083 = vmatmul.bf16.gmra.mxu0 %v1073
    %v1084 = vpop.f32.mrf.mxu0
    %v1085 = vadd.f32 0.0, %v1084
    %v1086 = vpop.f32.mrf.mxu0
    %1087 = vdwg.mxu0
    %v1088 = vadd.f32 %v995, %v1085
    %1089 = vrot.lane.b32.xlu0 %v692, 64
    %v1090 = vpop.permute.xlu0 %1089
    %1091 = vrot.lane.b32.xlu0 %v705, 64
    %v1092 = vpop.permute.xlu0 %1091
    %v1093 = vsel %vm721, %v1090, 0
    %v1095 = vsel %vm721, %v1092, 0
    %1097 = vmatpush.xpose.msra.mxu0 0.0
    %1098 = vmatpush.xpose.msra.mxu0 0.0
    %1099 = vmatpush.xpose.msra.mxu0 0.0
    %1100 = vmatpush.xpose.msra.mxu0 0.0
    %1101 = vmatpush.xpose.msra.mxu0 0.0
    %1102 = vmatpush.xpose.msra.mxu0 0.0
    %1103 = vmatpush.xpose.msra.mxu0 0.0
    %1104 = vmatpush.xpose.msra.mxu0 0.0
    %1105 = vmatpush.xpose.msra.mxu0 0.0
    %1106 = vmatpush.xpose.msra.mxu0 0.0
    %1107 = vmatpush.xpose.msra.mxu0 0.0
    %1108 = vmatpush.xpose.msra.mxu0 0.0
    %1109 = vmatpush.xpose.msra.mxu0 0.0
    %1110 = vmatpush.xpose.msra.mxu0 0.0
    %1111 = vmatpush.xpose.msra.mxu0 0.0
    %1112 = vmatpush.xpose.msra.mxu0 %v1095
    %1113 = vmatmul.f32.gmra.mxu0 %v1093
    %v1114 = vpop.f32.mrf.mxu0
    %v1115 = vadd.f32 0.0, %v1114
    %1116 = vdwg.mxu0
    %v1117 = vmul.f32 %v1115, 0.25
    %v1118 = vadd.f32 %v1117, %v512
    %v1119 = vsel %vm750, %v1118, -inf
    %1120 = vmax.xlane.f32.xlu0 %v1119
    %v1121 = vpop.xlane.xlu0 %1120
    %v1122 = vsub.f32 %v1118, %v1121
    %v1123 = vmul.f32 %v1122, 1.442695
    %v1124 = vpow.pop %v1123
    %v1125 = vsel %vm750, %v1124, 0.0
    %1126 = vadd.xlane.f32.xlu0 %v1125
    %v1127 = vpop.xlane.xlu0 %1126
    %v1128 = vrcp.pop %v1127
    %v1129 = vmul.f32 %v1124, %v1128
    %1130 = vrot.lane.b32.xlu0 %v718, 64
    %v1131 = vpop.permute.xlu0 %1130
    %v1134 = vsel %vm750, %v1129, 0
    %1136 = vmatpush.msra.mxu0 0.0
    %1137 = vmatpush.msra.mxu0 0.0
    %1138 = vmatpush.msra.mxu0 0.0
    %1139 = vmatpush.msra.mxu0 0.0
    %1140 = vmatpush.msra.mxu0 0.0
    %1141 = vmatpush.msra.mxu0 0.0
    %1142 = vmatpush.msra.mxu0 0.0
    %1143 = vmatpush.msra.mxu0 0.0
    %1144 = vmatpush.msra.mxu0 0.0
    %1145 = vmatpush.msra.mxu0 0.0
    %1146 = vmatpush.msra.mxu0 0.0
    %1147 = vmatpush.msra.mxu0 0.0
    %1148 = vmatpush.msra.mxu0 0.0
    %1149 = vmatpush.msra.mxu0 0.0
    %1150 = vmatpush.msra.mxu0 0.0
    %1151 = vmatpush.msra.mxu0 %v1131
    %1152 = vmatmul.f32.gmra.mxu0 %v1134
    %v1153 = vpop.f32.mrf.mxu0
    %v1154 = vadd.f32 0.0, %v1153
    %1155 = vdwg.mxu0
    %v1156 = vpack.c.bf16 %v1154, %v1154
    %v1157 = vld [vmem:[%s5 + $0x20] sm:$0xf]
    %v1158 = vld [vmem:[%s5 + $0x24] sm:$0xf]
    %v1161 = vunpack.c.l.b16 %v1157
    %v1162 = vunpack.c.l.b16 %v1158
    %v1163 = vpack.c.b16 %v1162, %v1161
    %v1166 = vsel %vm721, %v1156, 0
    %1168 = vmatpush.bf16.msra.mxu0 0
    %1169 = vmatpush.bf16.msra.mxu0 0
    %1170 = vmatpush.bf16.msra.mxu0 0
    %1171 = vmatpush.bf16.msra.mxu0 0
    %1172 = vmatpush.bf16.msra.mxu0 0
    %1173 = vmatpush.bf16.msra.mxu0 0
    %1174 = vmatpush.bf16.msra.mxu0 0
    %1175 = vmatpush.bf16.msra.mxu0 %v1163
    %1176 = vmatmul.bf16.gmra.mxu0 %v1166
    %v1177 = vpop.f32.mrf.mxu0
    %v1178 = vadd.f32 0.0, %v1177
    %v1179 = vpop.f32.mrf.mxu0
    %1180 = vdwg.mxu0
    %v1181 = vadd.f32 %v1088, %v1178
    %1182 = vrot.lane.b32.xlu0 %v692, 48
    %v1183 = vpop.permute.xlu0 %1182
    %1184 = vrot.lane.b32.xlu0 %v705, 48
    %v1185 = vpop.permute.xlu0 %1184
    %v1186 = vsel %vm721, %v1183, 0
    %v1188 = vsel %vm721, %v1185, 0
    %1190 = vmatpush.xpose.msra.mxu0 0.0
    %1191 = vmatpush.xpose.msra.mxu0 0.0
    %1192 = vmatpush.xpose.msra.mxu0 0.0
    %1193 = vmatpush.xpose.msra.mxu0 0.0
    %1194 = vmatpush.xpose.msra.mxu0 0.0
    %1195 = vmatpush.xpose.msra.mxu0 0.0
    %1196 = vmatpush.xpose.msra.mxu0 0.0
    %1197 = vmatpush.xpose.msra.mxu0 0.0
    %1198 = vmatpush.xpose.msra.mxu0 0.0
    %1199 = vmatpush.xpose.msra.mxu0 0.0
    %1200 = vmatpush.xpose.msra.mxu0 0.0
    %1201 = vmatpush.xpose.msra.mxu0 0.0
    %1202 = vmatpush.xpose.msra.mxu0 0.0
    %1203 = vmatpush.xpose.msra.mxu0 0.0
    %1204 = vmatpush.xpose.msra.mxu0 0.0
    %1205 = vmatpush.xpose.msra.mxu0 %v1188
    %1206 = vmatmul.f32.gmra.mxu0 %v1186
    %v1207 = vpop.f32.mrf.mxu0
    %v1208 = vadd.f32 0.0, %v1207
    %1209 = vdwg.mxu0
    %v1210 = vmul.f32 %v1208, 0.25
    %v1211 = vadd.f32 %v1210, %v512
    %v1212 = vsel %vm750, %v1211, -inf
    %1213 = vmax.xlane.f32.xlu0 %v1212
    %v1214 = vpop.xlane.xlu0 %1213
    %v1215 = vsub.f32 %v1211, %v1214
    %v1216 = vmul.f32 %v1215, 1.442695
    %v1217 = vpow.pop %v1216
    %v1218 = vsel %vm750, %v1217, 0.0
    %1219 = vadd.xlane.f32.xlu0 %v1218
    %v1220 = vpop.xlane.xlu0 %1219
    %v1221 = vrcp.pop %v1220
    %v1222 = vmul.f32 %v1217, %v1221
    %1223 = vrot.lane.b32.xlu0 %v718, 48
    %v1224 = vpop.permute.xlu0 %1223
    %v1227 = vsel %vm750, %v1222, 0
    %1229 = vmatpush.msra.mxu0 0.0
    %1230 = vmatpush.msra.mxu0 0.0
    %1231 = vmatpush.msra.mxu0 0.0
    %1232 = vmatpush.msra.mxu0 0.0
    %1233 = vmatpush.msra.mxu0 0.0
    %1234 = vmatpush.msra.mxu0 0.0
    %1235 = vmatpush.msra.mxu0 0.0
    %1236 = vmatpush.msra.mxu0 0.0
    %1237 = vmatpush.msra.mxu0 0.0
    %1238 = vmatpush.msra.mxu0 0.0
    %1239 = vmatpush.msra.mxu0 0.0
    %1240 = vmatpush.msra.mxu0 0.0
    %1241 = vmatpush.msra.mxu0 0.0
    %1242 = vmatpush.msra.mxu0 0.0
    %1243 = vmatpush.msra.mxu0 0.0
    %1244 = vmatpush.msra.mxu0 %v1224
    %1245 = vmatmul.f32.gmra.mxu0 %v1227
    %v1246 = vpop.f32.mrf.mxu0
    %v1247 = vadd.f32 0.0, %v1246
    %1248 = vdwg.mxu0
    %v1249 = vpack.c.bf16 %v1247, %v1247
    %v1250 = vld [vmem:[%s5 + $0x28] sm:$0xf]
    %v1251 = vld [vmem:[%s5 + $0x2c] sm:$0xf]
    %v1254 = vunpack.c.l.b16 %v1250
    %v1255 = vunpack.c.l.b16 %v1251
    %v1256 = vpack.c.b16 %v1255, %v1254
    %v1259 = vsel %vm721, %v1249, 0
    %1261 = vmatpush.bf16.msra.mxu0 0
    %1262 = vmatpush.bf16.msra.mxu0 0
    %1263 = vmatpush.bf16.msra.mxu0 0
    %1264 = vmatpush.bf16.msra.mxu0 0
    %1265 = vmatpush.bf16.msra.mxu0 0
    %1266 = vmatpush.bf16.msra.mxu0 0
    %1267 = vmatpush.bf16.msra.mxu0 0
    %1268 = vmatpush.bf16.msra.mxu0 %v1256
    %1269 = vmatmul.bf16.gmra.mxu0 %v1259
    %v1270 = vpop.f32.mrf.mxu0
    %v1271 = vadd.f32 0.0, %v1270
    %v1272 = vpop.f32.mrf.mxu0
    %1273 = vdwg.mxu0
    %v1274 = vadd.f32 %v1181, %v1271
    %1275 = vrot.lane.b32.xlu0 %v692, 32
    %v1276 = vpop.permute.xlu0 %1275
    %1277 = vrot.lane.b32.xlu0 %v705, 32
    %v1278 = vpop.permute.xlu0 %1277
    %v1279 = vsel %vm721, %v1276, 0
    %v1281 = vsel %vm721, %v1278, 0
    %1283 = vmatpush.xpose.msra.mxu0 0.0
    %1284 = vmatpush.xpose.msra.mxu0 0.0
    %1285 = vmatpush.xpose.msra.mxu0 0.0
    %1286 = vmatpush.xpose.msra.mxu0 0.0
    %1287 = vmatpush.xpose.msra.mxu0 0.0
    %1288 = vmatpush.xpose.msra.mxu0 0.0
    %1289 = vmatpush.xpose.msra.mxu0 0.0
    %1290 = vmatpush.xpose.msra.mxu0 0.0
    %1291 = vmatpush.xpose.msra.mxu0 0.0
    %1292 = vmatpush.xpose.msra.mxu0 0.0
    %1293 = vmatpush.xpose.msra.mxu0 0.0
    %1294 = vmatpush.xpose.msra.mxu0 0.0
    %1295 = vmatpush.xpose.msra.mxu0 0.0
    %1296 = vmatpush.xpose.msra.mxu0 0.0
    %1297 = vmatpush.xpose.msra.mxu0 0.0
    %1298 = vmatpush.xpose.msra.mxu0 %v1281
    %1299 = vmatmul.f32.gmra.mxu0 %v1279
    %v1300 = vpop.f32.mrf.mxu0
    %v1301 = vadd.f32 0.0, %v1300
    %1302 = vdwg.mxu0
    %v1303 = vmul.f32 %v1301, 0.25
    %v1304 = vadd.f32 %v1303, %v512
    %v1305 = vsel %vm750, %v1304, -inf
    %1306 = vmax.xlane.f32.xlu0 %v1305
    %v1307 = vpop.xlane.xlu0 %1306
    %v1308 = vsub.f32 %v1304, %v1307
    %v1309 = vmul.f32 %v1308, 1.442695
    %v1310 = vpow.pop %v1309
    %v1311 = vsel %vm750, %v1310, 0.0
    %1312 = vadd.xlane.f32.xlu0 %v1311
    %v1313 = vpop.xlane.xlu0 %1312
    %v1314 = vrcp.pop %v1313
    %v1315 = vmul.f32 %v1310, %v1314
    %1316 = vrot.lane.b32.xlu0 %v718, 32
    %v1317 = vpop.permute.xlu0 %1316
    %v1320 = vsel %vm750, %v1315, 0
    %1322 = vmatpush.msra.mxu0 0.0
    %1323 = vmatpush.msra.mxu0 0.0
    %1324 = vmatpush.msra.mxu0 0.0
    %1325 = vmatpush.msra.mxu0 0.0
    %1326 = vmatpush.msra.mxu0 0.0
    %1327 = vmatpush.msra.mxu0 0.0
    %1328 = vmatpush.msra.mxu0 0.0
    %1329 = vmatpush.msra.mxu0 0.0
    %1330 = vmatpush.msra.mxu0 0.0
    %1331 = vmatpush.msra.mxu0 0.0
    %1332 = vmatpush.msra.mxu0 0.0
    %1333 = vmatpush.msra.mxu0 0.0
    %1334 = vmatpush.msra.mxu0 0.0
    %1335 = vmatpush.msra.mxu0 0.0
    %1336 = vmatpush.msra.mxu0 0.0
    %1337 = vmatpush.msra.mxu0 %v1317
    %1338 = vmatmul.f32.gmra.mxu0 %v1320
    %v1339 = vpop.f32.mrf.mxu0
    %v1340 = vadd.f32 0.0, %v1339
    %1341 = vdwg.mxu0
    %v1342 = vpack.c.bf16 %v1340, %v1340
    %v1343 = vld [vmem:[%s5 + $0x30] sm:$0xf]
    %v1344 = vld [vmem:[%s5 + $0x34] sm:$0xf]
    %v1347 = vunpack.c.l.b16 %v1343
    %v1348 = vunpack.c.l.b16 %v1344
    %v1349 = vpack.c.b16 %v1348, %v1347
    %v1352 = vsel %vm721, %v1342, 0
    %1354 = vmatpush.bf16.msra.mxu0 0
    %1355 = vmatpush.bf16.msra.mxu0 0
    %1356 = vmatpush.bf16.msra.mxu0 0
    %1357 = vmatpush.bf16.msra.mxu0 0
    %1358 = vmatpush.bf16.msra.mxu0 0
    %1359 = vmatpush.bf16.msra.mxu0 0
    %1360 = vmatpush.bf16.msra.mxu0 0
    %1361 = vmatpush.bf16.msra.mxu0 %v1349
    %1362 = vmatmul.bf16.gmra.mxu0 %v1352
    %v1363 = vpop.f32.mrf.mxu0
    %v1364 = vadd.f32 0.0, %v1363
    %v1365 = vpop.f32.mrf.mxu0
    %1366 = vdwg.mxu0
    %v1367 = vadd.f32 %v1274, %v1364
    %1368 = vrot.lane.b32.xlu0 %v692, 16
    %v1369 = vpop.permute.xlu0 %1368
    %1370 = vrot.lane.b32.xlu0 %v705, 16
    %v1371 = vpop.permute.xlu0 %1370
    %v1372 = vsel %vm721, %v1369, 0
    %v1374 = vsel %vm721, %v1371, 0
    %1376 = vmatpush.xpose.msra.mxu0 0.0
    %1377 = vmatpush.xpose.msra.mxu0 0.0
    %1378 = vmatpush.xpose.msra.mxu0 0.0
    %1379 = vmatpush.xpose.msra.mxu0 0.0
    %1380 = vmatpush.xpose.msra.mxu0 0.0
    %1381 = vmatpush.xpose.msra.mxu0 0.0
    %1382 = vmatpush.xpose.msra.mxu0 0.0
    %1383 = vmatpush.xpose.msra.mxu0 0.0
    %1384 = vmatpush.xpose.msra.mxu0 0.0
    %1385 = vmatpush.xpose.msra.mxu0 0.0
    %1386 = vmatpush.xpose.msra.mxu0 0.0
    %1387 = vmatpush.xpose.msra.mxu0 0.0
    %1388 = vmatpush.xpose.msra.mxu0 0.0
    %1389 = vmatpush.xpose.msra.mxu0 0.0
    %1390 = vmatpush.xpose.msra.mxu0 0.0
    %1391 = vmatpush.xpose.msra.mxu0 %v1374
    %1392 = vmatmul.f32.gmra.mxu0 %v1372
    %v1393 = vpop.f32.mrf.mxu0
    %v1394 = vadd.f32 0.0, %v1393
    %1395 = vdwg.mxu0
    %v1396 = vmul.f32 %v1394, 0.25
    %v1397 = vadd.f32 %v1396, %v512
    %v1398 = vsel %vm750, %v1397, -inf
    %1399 = vmax.xlane.f32.xlu0 %v1398
    %v1400 = vpop.xlane.xlu0 %1399
    %v1401 = vsub.f32 %v1397, %v1400
    %v1402 = vmul.f32 %v1401, 1.442695
    %v1403 = vpow.pop %v1402
    %v1404 = vsel %vm750, %v1403, 0.0
    %1405 = vadd.xlane.f32.xlu0 %v1404
    %v1406 = vpop.xlane.xlu0 %1405
    %v1407 = vrcp.pop %v1406
    %v1408 = vmul.f32 %v1403, %v1407
    %1409 = vrot.lane.b32.xlu0 %v718, 16
    %v1410 = vpop.permute.xlu0 %1409
    %v1413 = vsel %vm750, %v1408, 0
    %1415 = vmatpush.msra.mxu0 0.0
    %1416 = vmatpush.msra.mxu0 0.0
    %1417 = vmatpush.msra.mxu0 0.0
    %1418 = vmatpush.msra.mxu0 0.0
    %1419 = vmatpush.msra.mxu0 0.0
    %1420 = vmatpush.msra.mxu0 0.0
    %1421 = vmatpush.msra.mxu0 0.0
    %1422 = vmatpush.msra.mxu0 0.0
    %1423 = vmatpush.msra.mxu0 0.0
    %1424 = vmatpush.msra.mxu0 0.0
    %1425 = vmatpush.msra.mxu0 0.0
    %1426 = vmatpush.msra.mxu0 0.0
    %1427 = vmatpush.msra.mxu0 0.0
    %1428 = vmatpush.msra.mxu0 0.0
    %1429 = vmatpush.msra.mxu0 0.0
    %1430 = vmatpush.msra.mxu0 %v1410
    %1431 = vmatmul.f32.gmra.mxu0 %v1413
    %v1432 = vpop.f32.mrf.mxu0
    %v1433 = vadd.f32 0.0, %v1432
    %1434 = vdwg.mxu0
    %v1435 = vpack.c.bf16 %v1433, %v1433
    %v1436 = vld [vmem:[%s5 + $0x38] sm:$0xf]
    %v1437 = vld [vmem:[%s5 + $0x3c] sm:$0xf]
    %v1440 = vunpack.c.l.b16 %v1436
    %v1441 = vunpack.c.l.b16 %v1437
    %v1442 = vpack.c.b16 %v1441, %v1440
    %v1445 = vsel %vm721, %v1435, 0
    %1447 = vmatpush.bf16.msra.mxu0 0
    %1448 = vmatpush.bf16.msra.mxu0 0
    %1449 = vmatpush.bf16.msra.mxu0 0
    %1450 = vmatpush.bf16.msra.mxu0 0
    %1451 = vmatpush.bf16.msra.mxu0 0
    %1452 = vmatpush.bf16.msra.mxu0 0
    %1453 = vmatpush.bf16.msra.mxu0 0
    %1454 = vmatpush.bf16.msra.mxu0 %v1442
    %1455 = vmatmul.bf16.gmra.mxu0 %v1445
    %v1456 = vpop.f32.mrf.mxu0
    %v1457 = vadd.f32 0.0, %v1456
    %v1458 = vpop.f32.mrf.mxu0
    %1459 = vdwg.mxu0
    %v1460 = vadd.f32 %v1367, %v1457
    %v1461 = vld [vmem:[%s6] sm:$0x1]
    %v1463 = vperm.slane %v1461, 0
    %v1465 = vadd.f32 %v1460, %v1463
    %v1466 = vadd.f32 %v509, %v1465
    %1467 = vadd.xlane.f32.xlu0 %v1466
    %v1468 = vpop.xlane.xlu0 %1467
    %v1469 = vrcp.pop 128.0
    %v1470 = vmul.f32 128.0, %v1469
    %v1471 = vsub.f32 1.0, %v1470
    %v1472 = vmul.f32 %v1469, %v1471
    %v1473 = vadd.f32 %v1469, %v1472
    %vm1474 = vweird.f32 %v1469
    %v1475 = vsel %vm1474, %v1469, %v1473
    %v1476 = vmul.f32 %v1468, %v1475
    %v1477 = vsub.f32 %v1466, %v1476
    %v1478 = vmul.f32 %v1477, %v1477
    %1479 = vadd.xlane.f32.xlu0 %v1478
    %v1480 = vpop.xlane.xlu0 %1479
    %v1481 = vmul.f32 %v1480, %v1475
    %v1482 = vadd.f32 %v1481, 1e-05
    %v1483 = vrsqrt.pop %v1482
    %v1484 = vmul.f32 %v1483, %v1482
    %v1485 = vmul.f32 %v1484, %v1483
    %v1486 = vmul.f32 0.5, %v1485
    %v1487 = vsub.f32 1.5, %v1486
    %v1488 = vmul.f32 %v1483, %v1487
    %vm1489 = vweird.f32 %v1482
    %vm1490 = vweird.f32 %v1483
    %vm1491 = vmor %vm1489, %vm1490
    %v1492 = vsel %vm1491, %v1483, %v1488
    %v1493 = vmul.f32 %v1477, %v1492
    %v1494 = vld [vmem:[%s7] sm:$0x1]
    %v1496 = vperm.slane %v1494, 0
    %v1498 = vmul.f32 %v1493, %v1496
    %v1499 = vld [vmem:[%s8] sm:$0x1]
    %v1501 = vperm.slane %v1499, 0
    %v1503 = vadd.f32 %v1498, %v1501
    %v1504 = vpack.c.bf16 %v1503, %v1503
    %v1505 = vld [vmem:[%s9] sm:$0xff]
    %v1506 = vld [vmem:[%s9 + $0x8] sm:$0xff]
    %v1507 = vld [vmem:[%s9 + $0x10] sm:$0xff]
    %v1508 = vld [vmem:[%s9 + $0x18] sm:$0xff]
    %v1509 = vld [vmem:[%s9 + $0x20] sm:$0xff]
    %v1510 = vld [vmem:[%s9 + $0x28] sm:$0xff]
    %v1511 = vld [vmem:[%s9 + $0x30] sm:$0xff]
    %v1512 = vld [vmem:[%s9 + $0x38] sm:$0xff]
    %v1513 = vld [vmem:[%s9 + $0x40] sm:$0xff]
    %v1514 = vld [vmem:[%s9 + $0x48] sm:$0xff]
    %v1515 = vld [vmem:[%s9 + $0x50] sm:$0xff]
    %v1516 = vld [vmem:[%s9 + $0x58] sm:$0xff]
    %v1517 = vld [vmem:[%s9 + $0x60] sm:$0xff]
    %v1518 = vld [vmem:[%s9 + $0x68] sm:$0xff]
    %v1519 = vld [vmem:[%s9 + $0x70] sm:$0xff]
    %v1520 = vld [vmem:[%s9 + $0x78] sm:$0xff]
    %v1521 = vld [vmem:[%s10] sm:$0x3]
    %v1523 = vperm.slane %v1521, 0
    %v1524 = vperm.slane %v1521, 1
    %v1543 = vunpack.c.l.b16 %v1505
    %v1544 = vunpack.c.h.b16 %v1505
    %v1545 = vunpack.c.l.b16 %v1506
    %v1546 = vunpack.c.h.b16 %v1506
    %v1547 = vunpack.c.l.b16 %v1507
    %v1548 = vunpack.c.h.b16 %v1507
    %v1549 = vunpack.c.l.b16 %v1508
    %v1550 = vunpack.c.h.b16 %v1508
    %v1551 = vunpack.c.l.b16 %v1509
    %v1552 = vunpack.c.h.b16 %v1509
    %v1553 = vunpack.c.l.b16 %v1510
    %v1554 = vunpack.c.h.b16 %v1510
    %v1555 = vunpack.c.l.b16 %v1511
    %v1556 = vunpack.c.h.b16 %v1511
    %v1557 = vunpack.c.l.b16 %v1512
    %v1558 = vunpack.c.h.b16 %v1512
    %v1559 = vunpack.c.l.b16 %v1513
    %v1560 = vunpack.c.h.b16 %v1513
    %v1561 = vunpack.c.l.b16 %v1514
    %v1562 = vunpack.c.h.b16 %v1514
    %v1563 = vunpack.c.l.b16 %v1515
    %v1564 = vunpack.c.h.b16 %v1515
    %v1565 = vunpack.c.l.b16 %v1516
    %v1566 = vunpack.c.h.b16 %v1516
    %v1567 = vunpack.c.l.b16 %v1517
    %v1568 = vunpack.c.h.b16 %v1517
    %v1569 = vunpack.c.l.b16 %v1518
    %v1570 = vunpack.c.h.b16 %v1518
    %v1571 = vunpack.c.l.b16 %v1519
    %v1572 = vunpack.c.h.b16 %v1519
    %v1573 = vunpack.c.l.b16 %v1520
    %v1574 = vunpack.c.h.b16 %v1520
    %v1575 = vpack.c.b16 %v1545, %v1543
    %v1576 = vpack.c.b16 %v1546, %v1544
    %v1577 = vpack.c.b16 %v1549, %v1547
    %v1578 = vpack.c.b16 %v1550, %v1548
    %v1579 = vpack.c.b16 %v1553, %v1551
    %v1580 = vpack.c.b16 %v1554, %v1552
    %v1581 = vpack.c.b16 %v1557, %v1555
    %v1582 = vpack.c.b16 %v1558, %v1556
    %v1583 = vpack.c.b16 %v1561, %v1559
    %v1584 = vpack.c.b16 %v1562, %v1560
    %v1585 = vpack.c.b16 %v1565, %v1563
    %v1586 = vpack.c.b16 %v1566, %v1564
    %v1587 = vpack.c.b16 %v1569, %v1567
    %v1588 = vpack.c.b16 %v1570, %v1568
    %v1589 = vpack.c.b16 %v1573, %v1571
    %v1590 = vpack.c.b16 %v1574, %v1572
    %1607 = vmatpush.bf16.msra.mxu0 %v1589
    %1608 = vmatpush.bf16.msra.mxu0 %v1587
    %1609 = vmatpush.bf16.msra.mxu0 %v1585
    %1610 = vmatpush.bf16.msra.mxu0 %v1583
    %1611 = vmatpush.bf16.msra.mxu0 %v1581
    %1612 = vmatpush.bf16.msra.mxu0 %v1579
    %1613 = vmatpush.bf16.msra.mxu0 %v1577
    %1614 = vmatpush.bf16.msra.mxu0 %v1575
    %1615 = vmatmul.bf16.gmra.mxu0 %v1504
    %v1616 = vpop.f32.mrf.mxu0
    %v1617 = vadd.f32 %v1523, %v1616
    %v1618 = vpop.f32.mrf.mxu0
    %1619 = vdwg.mxu0
    %1620 = vmatpush.bf16.msra.mxu0 %v1590
    %1621 = vmatpush.bf16.msra.mxu0 %v1588
    %1622 = vmatpush.bf16.msra.mxu0 %v1586
    %1623 = vmatpush.bf16.msra.mxu0 %v1584
    %1624 = vmatpush.bf16.msra.mxu0 %v1582
    %1625 = vmatpush.bf16.msra.mxu0 %v1580
    %1626 = vmatpush.bf16.msra.mxu0 %v1578
    %1627 = vmatpush.bf16.msra.mxu0 %v1576
    %1628 = vmatmul.bf16.gmra.mxu0 %v1504
    %v1629 = vpop.f32.mrf.mxu0
    %v1630 = vadd.f32 %v1524, %v1629
    %v1631 = vpop.f32.mrf.mxu0
    %1632 = vdwg.mxu0
    %v1633 = vmax.f32 %v1617, 0.0
    %v1634 = vmax.f32 %v1630, 0.0
    %v1635 = vpack.c.bf16 %v1633, %v1633
    %v1636 = vpack.c.bf16 %v1634, %v1634
    %v1637 = vld [vmem:[#allocation2] sm:$0xf]
    %v1638 = vld [vmem:[#allocation2 + $0x4] sm:$0xf]
    %v1639 = vld [vmem:[#allocation2 + $0x8] sm:$0xf]
    %v1640 = vld [vmem:[#allocation2 + $0xc] sm:$0xf]
    %v1641 = vld [vmem:[#allocation2 + $0x10] sm:$0xf]
    %v1642 = vld [vmem:[#allocation2 + $0x14] sm:$0xf]
    %v1643 = vld [vmem:[#allocation2 + $0x18] sm:$0xf]
    %v1644 = vld [vmem:[#allocation2 + $0x1c] sm:$0xf]
    %v1645 = vld [vmem:[#allocation2 + $0x20] sm:$0xf]
    %v1646 = vld [vmem:[#allocation2 + $0x24] sm:$0xf]
    %v1647 = vld [vmem:[#allocation2 + $0x28] sm:$0xf]
    %v1648 = vld [vmem:[#allocation2 + $0x2c] sm:$0xf]
    %v1649 = vld [vmem:[#allocation2 + $0x30] sm:$0xf]
    %v1650 = vld [vmem:[#allocation2 + $0x34] sm:$0xf]
    %v1651 = vld [vmem:[#allocation2 + $0x38] sm:$0xf]
    %v1652 = vld [vmem:[#allocation2 + $0x3c] sm:$0xf]
    %v1653 = vld [vmem:[#allocation2 + $0x40] sm:$0xf]
    %v1654 = vld [vmem:[#allocation2 + $0x44] sm:$0xf]
    %v1655 = vld [vmem:[#allocation2 + $0x48] sm:$0xf]
    %v1656 = vld [vmem:[#allocation2 + $0x4c] sm:$0xf]
    %v1657 = vld [vmem:[#allocation2 + $0x50] sm:$0xf]
    %v1658 = vld [vmem:[#allocation2 + $0x54] sm:$0xf]
    %v1659 = vld [vmem:[#allocation2 + $0x58] sm:$0xf]
    %v1660 = vld [vmem:[#allocation2 + $0x5c] sm:$0xf]
    %v1661 = vld [vmem:[#allocation2 + $0x60] sm:$0xf]
    %v1662 = vld [vmem:[#allocation2 + $0x64] sm:$0xf]
    %v1663 = vld [vmem:[#allocation2 + $0x68] sm:$0xf]
    %v1664 = vld [vmem:[#allocation2 + $0x6c] sm:$0xf]
    %v1665 = vld [vmem:[#allocation2 + $0x70] sm:$0xf]
    %v1666 = vld [vmem:[#allocation2 + $0x74] sm:$0xf]
    %v1667 = vld [vmem:[#allocation2 + $0x78] sm:$0xf]
    %v1668 = vld [vmem:[#allocation2 + $0x7c] sm:$0xf]
    %v1669 = vld [vmem:[%s12] sm:$0x1]
    %v1671 = vperm.slane %v1669, 0
    %v1705 = vunpack.c.l.b16 %v1637
    %v1706 = vunpack.c.l.b16 %v1638
    %v1707 = vunpack.c.l.b16 %v1639
    %v1708 = vunpack.c.l.b16 %v1640
    %v1709 = vunpack.c.l.b16 %v1641
    %v1710 = vunpack.c.l.b16 %v1642
    %v1711 = vunpack.c.l.b16 %v1643
    %v1712 = vunpack.c.l.b16 %v1644
    %v1713 = vunpack.c.l.b16 %v1645
    %v1714 = vunpack.c.l.b16 %v1646
    %v1715 = vunpack.c.l.b16 %v1647
    %v1716 = vunpack.c.l.b16 %v1648
    %v1717 = vunpack.c.l.b16 %v1649
    %v1718 = vunpack.c.l.b16 %v1650
    %v1719 = vunpack.c.l.b16 %v1651
    %v1720 = vunpack.c.l.b16 %v1652
    %v1721 = vunpack.c.l.b16 %v1653
    %v1722 = vunpack.c.l.b16 %v1654
    %v1723 = vunpack.c.l.b16 %v1655
    %v1724 = vunpack.c.l.b16 %v1656
    %v1725 = vunpack.c.l.b16 %v1657
    %v1726 = vunpack.c.l.b16 %v1658
    %v1727 = vunpack.c.l.b16 %v1659
    %v1728 = vunpack.c.l.b16 %v1660
    %v1729 = vunpack.c.l.b16 %v1661
    %v1730 = vunpack.c.l.b16 %v1662
    %v1731 = vunpack.c.l.b16 %v1663
    %v1732 = vunpack.c.l.b16 %v1664
    %v1733 = vunpack.c.l.b16 %v1665
    %v1734 = vunpack.c.l.b16 %v1666
    %v1735 = vunpack.c.l.b16 %v1667
    %v1736 = vunpack.c.l.b16 %v1668
    %v1737 = vpack.c.b16 %v1706, %v1705
    %v1738 = vpack.c.b16 %v1708, %v1707
    %v1739 = vpack.c.b16 %v1710, %v1709
    %v1740 = vpack.c.b16 %v1712, %v1711
    %v1741 = vpack.c.b16 %v1714, %v1713
    %v1742 = vpack.c.b16 %v1716, %v1715
    %v1743 = vpack.c.b16 %v1718, %v1717
    %v1744 = vpack.c.b16 %v1720, %v1719
    %v1745 = vpack.c.b16 %v1722, %v1721
    %v1746 = vpack.c.b16 %v1724, %v1723
    %v1747 = vpack.c.b16 %v1726, %v1725
    %v1748 = vpack.c.b16 %v1728, %v1727
    %v1749 = vpack.c.b16 %v1730, %v1729
    %v1750 = vpack.c.b16 %v1732, %v1731
    %v1751 = vpack.c.b16 %v1734, %v1733
    %v1752 = vpack.c.b16 %v1736, %v1735
    %1769 = vmatpush.bf16.msra.mxu0 %v1744
    %1770 = vmatpush.bf16.msra.mxu0 %v1743
    %1771 = vmatpush.bf16.msra.mxu0 %v1742
    %1772 = vmatpush.bf16.msra.mxu0 %v1741
    %1773 = vmatpush.bf16.msra.mxu0 %v1740
    %1774 = vmatpush.bf16.msra.mxu0 %v1739
    %1775 = vmatpush.bf16.msra.mxu0 %v1738
    %1776 = vmatpush.bf16.msra.mxu0 %v1737
    %1777 = vmatmul.bf16.gmra.mxu0 %v1635
    %v1778 = vpop.f32.mrf.mxu0
    %v1779 = vadd.f32 %v1671, %v1778
    %v1780 = vpop.f32.mrf.mxu0
    %1781 = vdwg.mxu0
    %1782 = vmatpush.bf16.msra.mxu0 %v1752
    %1783 = vmatpush.bf16.msra.mxu0 %v1751
    %1784 = vmatpush.bf16.msra.mxu0 %v1750
    %1785 = vmatpush.bf16.msra.mxu0 %v1749
    %1786 = vmatpush.bf16.msra.mxu0 %v1748
    %1787 = vmatpush.bf16.msra.mxu0 %v1747
    %1788 = vmatpush.bf16.msra.mxu0 %v1746
    %1789 = vmatpush.bf16.msra.mxu0 %v1745
    %1790 = vmatmul.bf16.gmra.mxu0 %v1636
    %v1791 = vpop.f32.mrf.mxu0
    %v1792 = vadd.f32 %v1779, %v1791
    %v1793 = vpop.f32.mrf.mxu0
    %1794 = vdwg.mxu0
    %v1795 = vadd.f32 %v1503, %v1792
    %1796 = vadd.xlane.f32.xlu0 %v1795
    %v1797 = vpop.xlane.xlu0 %1796
    %v1798 = vmul.f32 %v1797, %v1475
    %v1799 = vsub.f32 %v1795, %v1798
    %v1800 = vmul.f32 %v1799, %v1799
    %1801 = vadd.xlane.f32.xlu0 %v1800
    %v1802 = vpop.xlane.xlu0 %1801
    %v1803 = vmul.f32 %v1802, %v1475
    %v1804 = vadd.f32 %v1803, 1e-05
    %v1805 = vrsqrt.pop %v1804
    %v1806 = vmul.f32 %v1805, %v1804
    %v1807 = vmul.f32 %v1806, %v1805
    %v1808 = vmul.f32 0.5, %v1807
    %v1809 = vsub.f32 1.5, %v1808
    %v1810 = vmul.f32 %v1805, %v1809
    %vm1811 = vweird.f32 %v1804
    %vm1812 = vweird.f32 %v1805
    %vm1813 = vmor %vm1811, %vm1812
    %v1814 = vsel %vm1813, %v1805, %v1810
    %v1815 = vmul.f32 %v1799, %v1814
    %v1816 = vld [vmem:[%s13] sm:$0x1]
    %v1818 = vperm.slane %v1816, 0
    %v1820 = vmul.f32 %v1815, %v1818
    %v1821 = vld [vmem:[%s14] sm:$0x1]
    %v1823 = vperm.slane %v1821, 0
    %v1825 = vadd.f32 %v1820, %v1823
    %v1826 = vpack.c.bf16 %v1825, %v1825
    %s1827 = scalar_lea.vmem %s3, 192
    %v1828 = vld [vmem:[%s1827] sm:$0xff]
    %v1829 = vld [vmem:[%s1827 + $0x8] sm:$0xf]
    %v1830 = vld [vmem:[%s1827 + $0xc] sm:$0xff]
    %v1831 = vld [vmem:[%s1827 + $0x14] sm:$0xf]
    %v1832 = vld [vmem:[%s1827 + $0x18] sm:$0xff]
    %v1833 = vld [vmem:[%s1827 + $0x20] sm:$0xf]
    %v1834 = vld [vmem:[%s1827 + $0x24] sm:$0xff]
    %v1835 = vld [vmem:[%s1827 + $0x2c] sm:$0xf]
    %v1836 = vld [vmem:[%s1827 + $0x30] sm:$0xff]
    %v1837 = vld [vmem:[%s1827 + $0x38] sm:$0xf]
    %v1838 = vld [vmem:[%s1827 + $0x3c] sm:$0xff]
    %v1839 = vld [vmem:[%s1827 + $0x44] sm:$0xf]
    %v1840 = vld [vmem:[%s1827 + $0x48] sm:$0xff]
    %v1841 = vld [vmem:[%s1827 + $0x50] sm:$0xf]
    %v1842 = vld [vmem:[%s1827 + $0x54] sm:$0xff]
    %v1843 = vld [vmem:[%s1827 + $0x5c] sm:$0xf]
    %v1844 = vld [vmem:[%s1827 + $0x60] sm:$0xff]
    %v1845 = vld [vmem:[%s1827 + $0x68] sm:$0xf]
    %v1846 = vld [vmem:[%s1827 + $0x6c] sm:$0xff]
    %v1847 = vld [vmem:[%s1827 + $0x74] sm:$0xf]
    %v1848 = vld [vmem:[%s1827 + $0x78] sm:$0xff]
    %v1849 = vld [vmem:[%s1827 + $0x80] sm:$0xf]
    %v1850 = vld [vmem:[%s1827 + $0x84] sm:$0xff]
    %v1851 = vld [vmem:[%s1827 + $0x8c] sm:$0xf]
    %v1852 = vld [vmem:[%s1827 + $0x90] sm:$0xff]
    %v1853 = vld [vmem:[%s1827 + $0x98] sm:$0xf]
    %v1854 = vld [vmem:[%s1827 + $0x9c] sm:$0xff]
    %v1855 = vld [vmem:[%s1827 + $0xa4] sm:$0xf]
    %v1856 = vld [vmem:[%s1827 + $0xa8] sm:$0xff]
    %v1857 = vld [vmem:[%s1827 + $0xb0] sm:$0xf]
    %v1858 = vld [vmem:[%s1827 + $0xb4] sm:$0xff]
    %v1859 = vld [vmem:[%s1827 + $0xbc] sm:$0xf]
    %s1860 = scalar_lea.vmem %s4, 3
    %v1861 = vld [vmem:[%s1860] sm:$0x7]
    %v1863 = vperm.slane %v1861, 0
    %v1864 = vperm.slane %v1861, 1
    %v1865 = vperm.slane %v1861, 2
    %v1901 = vunpack.c.l.b16 %v1828
    %v1902 = vunpack.c.h.b16 %v1828
    %v1903 = vunpack.c.l.b16 %v1829
    %v1904 = vunpack.c.l.b16 %v1830
    %v1905 = vunpack.c.h.b16 %v1830
    %v1906 = vunpack.c.l.b16 %v1831
    %v1907 = vunpack.c.l.b16 %v1832
    %v1908 = vunpack.c.h.b16 %v1832
    %v1909 = vunpack.c.l.b16 %v1833
    %v1910 = vunpack.c.l.b16 %v1834
    %v1911 = vunpack.c.h.b16 %v1834
    %v1912 = vunpack.c.l.b16 %v1835
    %v1913 = vunpack.c.l.b16 %v1836
    %v1914 = vunpack.c.h.b16 %v1836
    %v1915 = vunpack.c.l.b16 %v1837
    %v1916 = vunpack.c.l.b16 %v1838
    %v1917 = vunpack.c.h.b16 %v1838
    %v1918 = vunpack.c.l.b16 %v1839
    %v1919 = vunpack.c.l.b16 %v1840
    %v1920 = vunpack.c.h.b16 %v1840
    %v1921 = vunpack.c.l.b16 %v1841
    %v1922 = vunpack.c.l.b16 %v1842
    %v1923 = vunpack.c.h.b16 %v1842
    %v1924 = vunpack.c.l.b16 %v1843
    %v1925 = vunpack.c.l.b16 %v1844
    %v1926 = vunpack.c.h.b16 %v1844
    %v1927 = vunpack.c.l.b16 %v1845
    %v1928 = vunpack.c.l.b16 %v1846
    %v1929 = vunpack.c.h.b16 %v1846
    %v1930 = vunpack.c.l.b16 %v1847
    %v1931 = vunpack.c.l.b16 %v1848
    %v1932 = vunpack.c.h.b16 %v1848
    %v1933 = vunpack.c.l.b16 %v1849
    %v1934 = vunpack.c.l.b16 %v1850
    %v1935 = vunpack.c.h.b16 %v1850
    %v1936 = vunpack.c.l.b16 %v1851
    %v1937 = vunpack.c.l.b16 %v1852
    %v1938 = vunpack.c.h.b16 %v1852
    %v1939 = vunpack.c.l.b16 %v1853
    %v1940 = vunpack.c.l.b16 %v1854
    %v1941 = vunpack.c.h.b16 %v1854
    %v1942 = vunpack.c.l.b16 %v1855
    %v1943 = vunpack.c.l.b16 %v1856
    %v1944 = vunpack.c.h.b16 %v1856
    %v1945 = vunpack.c.l.b16 %v1857
    %v1946 = vunpack.c.l.b16 %v1858
    %v1947 = vunpack.c.h.b16 %v1858
    %v1948 = vunpack.c.l.b16 %v1859
    %v1949 = vpack.c.b16 %v1904, %v1901
    %v1950 = vpack.c.b16 %v1905, %v1902
    %v1951 = vpack.c.b16 %v1906, %v1903
    %v1952 = vpack.c.b16 %v1910, %v1907
    %v1953 = vpack.c.b16 %v1911, %v1908
    %v1954 = vpack.c.b16 %v1912, %v1909
    %v1955 = vpack.c.b16 %v1916, %v1913
    %v1956 = vpack.c.b16 %v1917, %v1914
    %v1957 = vpack.c.b16 %v1918, %v1915
    %v1958 = vpack.c.b16 %v1922, %v1919
    %v1959 = vpack.c.b16 %v1923, %v1920
    %v1960 = vpack.c.b16 %v1924, %v1921
    %v1961 = vpack.c.b16 %v1928, %v1925
    %v1962 = vpack.c.b16 %v1929, %v1926
    %v1963 = vpack.c.b16 %v1930, %v1927
    %v1964 = vpack.c.b16 %v1934, %v1931
    %v1965 = vpack.c.b16 %v1935, %v1932
    %v1966 = vpack.c.b16 %v1936, %v1933
    %v1967 = vpack.c.b16 %v1940, %v1937
    %v1968 = vpack.c.b16 %v1941, %v1938
    %v1969 = vpack.c.b16 %v1942, %v1939
    %v1970 = vpack.c.b16 %v1946, %v1943
    %v1971 = vpack.c.b16 %v1947, %v1944
    %v1972 = vpack.c.b16 %v1948, %v1945
    %1997 = vmatpush.bf16.msra.mxu0 %v1970
    %1998 = vmatpush.bf16.msra.mxu0 %v1967
    %1999 = vmatpush.bf16.msra.mxu0 %v1964
    %2000 = vmatpush.bf16.msra.mxu0 %v1961
    %2001 = vmatpush.bf16.msra.mxu0 %v1958
    %2002 = vmatpush.bf16.msra.mxu0 %v1955
    %2003 = vmatpush.bf16.msra.mxu0 %v1952
    %2004 = vmatpush.bf16.msra.mxu0 %v1949
    %2005 = vmatmul.bf16.gmra.mxu0 %v1826
    %v2006 = vpop.f32.mrf.mxu0
    %v2007 = vadd.f32 %v1863, %v2006
    %v2008 = vpop.f32.mrf.mxu0
    %2009 = vdwg.mxu0
    %2010 = vmatpush.bf16.msra.mxu0 %v1971
    %2011 = vmatpush.bf16.msra.mxu0 %v1968
    %2012 = vmatpush.bf16.msra.mxu0 %v1965
    %2013 = vmatpush.bf16.msra.mxu0 %v1962
    %2014 = vmatpush.bf16.msra.mxu0 %v1959
    %2015 = vmatpush.bf16.msra.mxu0 %v1956
    %2016 = vmatpush.bf16.msra.mxu0 %v1953
    %2017 = vmatpush.bf16.msra.mxu0 %v1950
    %2018 = vmatmul.bf16.gmra.mxu0 %v1826
    %v2019 = vpop.f32.mrf.mxu0
    %v2020 = vadd.f32 %v1864, %v2019
    %v2021 = vpop.f32.mrf.mxu0
    %2022 = vdwg.mxu0
    %2023 = vmatpush.bf16.msra.mxu0 %v1972
    %2024 = vmatpush.bf16.msra.mxu0 %v1969
    %2025 = vmatpush.bf16.msra.mxu0 %v1966
    %2026 = vmatpush.bf16.msra.mxu0 %v1963
    %2027 = vmatpush.bf16.msra.mxu0 %v1960
    %2028 = vmatpush.bf16.msra.mxu0 %v1957
    %2029 = vmatpush.bf16.msra.mxu0 %v1954
    %2030 = vmatpush.bf16.msra.mxu0 %v1951
    %2031 = vmatmul.bf16.gmra.mxu0 %v1826
    %v2032 = vpop.f32.mrf.mxu0
    %v2033 = vadd.f32 %v1865, %v2032
    %v2034 = vpop.f32.mrf.mxu0
    %2035 = vdwg.mxu0
    %v2037 = vsel %vm721, %v2007, 0
    %v2040 = vsel %vm721, %v2020, 0
    %2042 = vmatpush.xpose.msra.mxu0 0.0
    %2043 = vmatpush.xpose.msra.mxu0 0.0
    %2044 = vmatpush.xpose.msra.mxu0 0.0
    %2045 = vmatpush.xpose.msra.mxu0 0.0
    %2046 = vmatpush.xpose.msra.mxu0 0.0
    %2047 = vmatpush.xpose.msra.mxu0 0.0
    %2048 = vmatpush.xpose.msra.mxu0 0.0
    %2049 = vmatpush.xpose.msra.mxu0 0.0
    %2050 = vmatpush.xpose.msra.mxu0 0.0
    %2051 = vmatpush.xpose.msra.mxu0 0.0
    %2052 = vmatpush.xpose.msra.mxu0 0.0
    %2053 = vmatpush.xpose.msra.mxu0 0.0
    %2054 = vmatpush.xpose.msra.mxu0 0.0
    %2055 = vmatpush.xpose.msra.mxu0 0.0
    %2056 = vmatpush.xpose.msra.mxu0 0.0
    %2057 = vmatpush.xpose.msra.mxu0 %v2040
    %2058 = vmatmul.f32.gmra.mxu0 %v2037
    %v2059 = vpop.f32.mrf.mxu0
    %v2060 = vadd.f32 0.0, %v2059
    %2061 = vdwg.mxu0
    %v2062 = vmul.f32 %v2060, 0.25
    %v2063 = vadd.f32 %v2062, %v512
    %v2064 = vsel %vm750, %v2063, -inf
    %2065 = vmax.xlane.f32.xlu0 %v2064
    %v2066 = vpop.xlane.xlu0 %2065
    %v2067 = vsub.f32 %v2063, %v2066
    %v2068 = vmul.f32 %v2067, 1.442695
    %v2069 = vpow.pop %v2068
    %v2070 = vsel %vm750, %v2069, 0.0
    %2071 = vadd.xlane.f32.xlu0 %v2070
    %v2072 = vpop.xlane.xlu0 %2071
    %v2073 = vrcp.pop %v2072
    %v2074 = vmul.f32 %v2069, %v2073
    %v2076 = vsel %vm750, %v2074, 0
    %2078 = vmatpush.msra.mxu0 0.0
    %2079 = vmatpush.msra.mxu0 0.0
    %2080 = vmatpush.msra.mxu0 0.0
    %2081 = vmatpush.msra.mxu0 0.0
    %2082 = vmatpush.msra.mxu0 0.0
    %2083 = vmatpush.msra.mxu0 0.0
    %2084 = vmatpush.msra.mxu0 0.0
    %2085 = vmatpush.msra.mxu0 0.0
    %2086 = vmatpush.msra.mxu0 0.0
    %2087 = vmatpush.msra.mxu0 0.0
    %2088 = vmatpush.msra.mxu0 0.0
    %2089 = vmatpush.msra.mxu0 0.0
    %2090 = vmatpush.msra.mxu0 0.0
    %2091 = vmatpush.msra.mxu0 0.0
    %2092 = vmatpush.msra.mxu0 0.0
    %2093 = vmatpush.msra.mxu0 %v2033
    %2094 = vmatmul.f32.gmra.mxu0 %v2076
    %v2095 = vpop.f32.mrf.mxu0
    %v2096 = vadd.f32 0.0, %v2095
    %2097 = vdwg.mxu0
    %v2098 = vpack.c.bf16 %v2096, %v2096
    %s2099 = scalar_lea.vmem %s5, 64
    %v2100 = vld [vmem:[%s2099] sm:$0xf]
    %v2101 = vld [vmem:[%s2099 + $0x4] sm:$0xf]
    %2102 = vrot.lane.b32.xlu0 %v2007, 112
    %v2103 = vpop.permute.xlu0 %2102
    %2104 = vrot.lane.b32.xlu0 %v2020, 112
    %v2105 = vpop.permute.xlu0 %2104
    %v2106 = vsel %vm721, %v2103, 0
    %v2108 = vsel %vm721, %v2105, 0
    %2110 = vmatpush.xpose.msra.mxu0 0.0
    %2111 = vmatpush.xpose.msra.mxu0 0.0
    %2112 = vmatpush.xpose.msra.mxu0 0.0
    %2113 = vmatpush.xpose.msra.mxu0 0.0
    %2114 = vmatpush.xpose.msra.mxu0 0.0
    %2115 = vmatpush.xpose.msra.mxu0 0.0
    %2116 = vmatpush.xpose.msra.mxu0 0.0
    %2117 = vmatpush.xpose.msra.mxu0 0.0
    %2118 = vmatpush.xpose.msra.mxu0 0.0
    %2119 = vmatpush.xpose.msra.mxu0 0.0
    %2120 = vmatpush.xpose.msra.mxu0 0.0
    %2121 = vmatpush.xpose.msra.mxu0 0.0
    %2122 = vmatpush.xpose.msra.mxu0 0.0
    %2123 = vmatpush.xpose.msra.mxu0 0.0
    %2124 = vmatpush.xpose.msra.mxu0 0.0
    %2125 = vmatpush.xpose.msra.mxu0 %v2108
    %2126 = vmatmul.f32.gmra.mxu0 %v2106
    %v2127 = vpop.f32.mrf.mxu0
    %v2128 = vadd.f32 0.0, %v2127
    %2129 = vdwg.mxu0
    %v2130 = vmul.f32 %v2128, 0.25
    %v2131 = vadd.f32 %v2130, %v512
    %v2132 = vsel %vm750, %v2131, -inf
    %2133 = vmax.xlane.f32.xlu0 %v2132
    %v2134 = vpop.xlane.xlu0 %2133
    %v2135 = vsub.f32 %v2131, %v2134
    %v2136 = vmul.f32 %v2135, 1.442695
    %v2137 = vpow.pop %v2136
    %v2138 = vsel %vm750, %v2137, 0.0
    %2139 = vadd.xlane.f32.xlu0 %v2138
    %v2140 = vpop.xlane.xlu0 %2139
    %v2141 = vrcp.pop %v2140
    %v2142 = vmul.f32 %v2137, %v2141
    %2144 = vrot.lane.b32.xlu0 %v2033, 112
    %v2145 = vpop.permute.xlu0 %2144
    %v2148 = vsel %vm750, %v2142, 0
    %2150 = vmatpush.msra.mxu0 0.0
    %2151 = vmatpush.msra.mxu0 0.0
    %2152 = vmatpush.msra.mxu0 0.0
    %2153 = vmatpush.msra.mxu0 0.0
    %2154 = vmatpush.msra.mxu0 0.0
    %2155 = vmatpush.msra.mxu0 0.0
    %2156 = vmatpush.msra.mxu0 0.0
    %2157 = vmatpush.msra.mxu0 0.0
    %2158 = vmatpush.msra.mxu0 0.0
    %2159 = vmatpush.msra.mxu0 0.0
    %2160 = vmatpush.msra.mxu0 0.0
    %2161 = vmatpush.msra.mxu0 0.0
    %2162 = vmatpush.msra.mxu0 0.0
    %2163 = vmatpush.msra.mxu0 0.0
    %2164 = vmatpush.msra.mxu0 0.0
    %2165 = vmatpush.msra.mxu0 %v2145
    %2166 = vmatmul.f32.gmra.mxu0 %v2148
    %v2167 = vpop.f32.mrf.mxu0
    %v2168 = vadd.f32 0.0, %v2167
    %2169 = vdwg.mxu0
    %v2170 = vpack.c.bf16 %v2168, %v2168
    %v2171 = vld [vmem:[%s2099 + $0x8] sm:$0xf]
    %v2172 = vld [vmem:[%s2099 + $0xc] sm:$0xf]
    %v2175 = vunpack.c.l.b16 %v2171
    %v2176 = vunpack.c.l.b16 %v2172
    %v2177 = vpack.c.b16 %v2176, %v2175
    %v2180 = vsel %vm721, %v2170, 0
    %2182 = vmatpush.bf16.msra.mxu0 0
    %2183 = vmatpush.bf16.msra.mxu0 0
    %2184 = vmatpush.bf16.msra.mxu0 0
    %2185 = vmatpush.bf16.msra.mxu0 0
    %2186 = vmatpush.bf16.msra.mxu0 0
    %2187 = vmatpush.bf16.msra.mxu0 0
    %2188 = vmatpush.bf16.msra.mxu0 0
    %2189 = vmatpush.bf16.msra.mxu0 %v2177
    %2190 = vmatmul.bf16.gmra.mxu0 %v2180
    %v2191 = vpop.f32.mrf.mxu0
    %v2192 = vadd.f32 0.0, %v2191
    %v2193 = vpop.f32.mrf.mxu0
    %2194 = vdwg.mxu0
    %v2197 = vunpack.c.l.b16 %v2100
    %v2198 = vunpack.c.l.b16 %v2101
    %v2199 = vpack.c.b16 %v2198, %v2197
    %v2202 = vsel %vm721, %v2098, 0
    %2204 = vmatpush.bf16.msra.mxu0 0
    %2205 = vmatpush.bf16.msra.mxu0 0
    %2206 = vmatpush.bf16.msra.mxu0 0
    %2207 = vmatpush.bf16.msra.mxu0 0
    %2208 = vmatpush.bf16.msra.mxu0 0
    %2209 = vmatpush.bf16.msra.mxu0 0
    %2210 = vmatpush.bf16.msra.mxu0 0
    %2211 = vmatpush.bf16.msra.mxu0 %v2199
    %2212 = vmatmul.bf16.gmra.mxu0 %v2202
    %v2213 = vpop.f32.mrf.mxu0
    %v2214 = vadd.f32 %v2192, %v2213
    %v2215 = vpop.f32.mrf.mxu0
    %2216 = vdwg.mxu0
    %2217 = vrot.lane.b32.xlu0 %v2007, 96
    %v2218 = vpop.permute.xlu0 %2217
    %2219 = vrot.lane.b32.xlu0 %v2020, 96
    %v2220 = vpop.permute.xlu0 %2219
    %v2221 = vsel %vm721, %v2218, 0
    %v2223 = vsel %vm721, %v2220, 0
    %2225 = vmatpush.xpose.msra.mxu0 0.0
    %2226 = vmatpush.xpose.msra.mxu0 0.0
    %2227 = vmatpush.xpose.msra.mxu0 0.0
    %2228 = vmatpush.xpose.msra.mxu0 0.0
    %2229 = vmatpush.xpose.msra.mxu0 0.0
    %2230 = vmatpush.xpose.msra.mxu0 0.0
    %2231 = vmatpush.xpose.msra.mxu0 0.0
    %2232 = vmatpush.xpose.msra.mxu0 0.0
    %2233 = vmatpush.xpose.msra.mxu0 0.0
    %2234 = vmatpush.xpose.msra.mxu0 0.0
    %2235 = vmatpush.xpose.msra.mxu0 0.0
    %2236 = vmatpush.xpose.msra.mxu0 0.0
    %2237 = vmatpush.xpose.msra.mxu0 0.0
    %2238 = vmatpush.xpose.msra.mxu0 0.0
    %2239 = vmatpush.xpose.msra.mxu0 0.0
    %2240 = vmatpush.xpose.msra.mxu0 %v2223
    %2241 = vmatmul.f32.gmra.mxu0 %v2221
    %v2242 = vpop.f32.mrf.mxu0
    %v2243 = vadd.f32 0.0, %v2242
    %2244 = vdwg.mxu0
    %v2245 = vmul.f32 %v2243, 0.25
    %v2246 = vadd.f32 %v2245, %v512
    %v2247 = vsel %vm750, %v2246, -inf
    %2248 = vmax.xlane.f32.xlu0 %v2247
    %v2249 = vpop.xlane.xlu0 %2248
    %v2250 = vsub.f32 %v2246, %v2249
    %v2251 = vmul.f32 %v2250, 1.442695
    %v2252 = vpow.pop %v2251
    %v2253 = vsel %vm750, %v2252, 0.0
    %2254 = vadd.xlane.f32.xlu0 %v2253
    %v2255 = vpop.xlane.xlu0 %2254
    %v2256 = vrcp.pop %v2255
    %v2257 = vmul.f32 %v2252, %v2256
    %2258 = vrot.lane.b32.xlu0 %v2033, 96
    %v2259 = vpop.permute.xlu0 %2258
    %v2262 = vsel %vm750, %v2257, 0
    %2264 = vmatpush.msra.mxu0 0.0
    %2265 = vmatpush.msra.mxu0 0.0
    %2266 = vmatpush.msra.mxu0 0.0
    %2267 = vmatpush.msra.mxu0 0.0
    %2268 = vmatpush.msra.mxu0 0.0
    %2269 = vmatpush.msra.mxu0 0.0
    %2270 = vmatpush.msra.mxu0 0.0
    %2271 = vmatpush.msra.mxu0 0.0
    %2272 = vmatpush.msra.mxu0 0.0
    %2273 = vmatpush.msra.mxu0 0.0
    %2274 = vmatpush.msra.mxu0 0.0
    %2275 = vmatpush.msra.mxu0 0.0
    %2276 = vmatpush.msra.mxu0 0.0
    %2277 = vmatpush.msra.mxu0 0.0
    %2278 = vmatpush.msra.mxu0 0.0
    %2279 = vmatpush.msra.mxu0 %v2259
    %2280 = vmatmul.f32.gmra.mxu0 %v2262
    %v2281 = vpop.f32.mrf.mxu0
    %v2282 = vadd.f32 0.0, %v2281
    %2283 = vdwg.mxu0
    %v2284 = vpack.c.bf16 %v2282, %v2282
    %v2285 = vld [vmem:[%s2099 + $0x10] sm:$0xf]
    %v2286 = vld [vmem:[%s2099 + $0x14] sm:$0xf]
    %v2289 = vunpack.c.l.b16 %v2285
    %v2290 = vunpack.c.l.b16 %v2286
    %v2291 = vpack.c.b16 %v2290, %v2289
    %v2294 = vsel %vm721, %v2284, 0
    %2296 = vmatpush.bf16.msra.mxu0 0
    %2297 = vmatpush.bf16.msra.mxu0 0
    %2298 = vmatpush.bf16.msra.mxu0 0
    %2299 = vmatpush.bf16.msra.mxu0 0
    %2300 = vmatpush.bf16.msra.mxu0 0
    %2301 = vmatpush.bf16.msra.mxu0 0
    %2302 = vmatpush.bf16.msra.mxu0 0
    %2303 = vmatpush.bf16.msra.mxu0 %v2291
    %2304 = vmatmul.bf16.gmra.mxu0 %v2294
    %v2305 = vpop.f32.mrf.mxu0
    %v2306 = vadd.f32 0.0, %v2305
    %v2307 = vpop.f32.mrf.mxu0
    %2308 = vdwg.mxu0
    %v2309 = vadd.f32 %v2214, %v2306
    %2310 = vrot.lane.b32.xlu0 %v2007, 80
    %v2311 = vpop.permute.xlu0 %2310
    %2312 = vrot.lane.b32.xlu0 %v2020, 80
    %v2313 = vpop.permute.xlu0 %2312
    %v2314 = vsel %vm721, %v2311, 0
    %v2316 = vsel %vm721, %v2313, 0
    %2318 = vmatpush.xpose.msra.mxu0 0.0
    %2319 = vmatpush.xpose.msra.mxu0 0.0
    %2320 = vmatpush.xpose.msra.mxu0 0.0
    %2321 = vmatpush.xpose.msra.mxu0 0.0
    %2322 = vmatpush.xpose.msra.mxu0 0.0
    %2323 = vmatpush.xpose.msra.mxu0 0.0
    %2324 = vmatpush.xpose.msra.mxu0 0.0
    %2325 = vmatpush.xpose.msra.mxu0 0.0
    %2326 = vmatpush.xpose.msra.mxu0 0.0
    %2327 = vmatpush.xpose.msra.mxu0 0.0
    %2328 = vmatpush.xpose.msra.mxu0 0.0
    %2329 = vmatpush.xpose.msra.mxu0 0.0
    %2330 = vmatpush.xpose.msra.mxu0 0.0
    %2331 = vmatpush.xpose.msra.mxu0 0.0
    %2332 = vmatpush.xpose.msra.mxu0 0.0
    %2333 = vmatpush.xpose.msra.mxu0 %v2316
    %2334 = vmatmul.f32.gmra.mxu0 %v2314
    %v2335 = vpop.f32.mrf.mxu0
    %v2336 = vadd.f32 0.0, %v2335
    %2337 = vdwg.mxu0
    %v2338 = vmul.f32 %v2336, 0.25
    %v2339 = vadd.f32 %v2338, %v512
    %v2340 = vsel %vm750, %v2339, -inf
    %2341 = vmax.xlane.f32.xlu0 %v2340
    %v2342 = vpop.xlane.xlu0 %2341
    %v2343 = vsub.f32 %v2339, %v2342
    %v2344 = vmul.f32 %v2343, 1.442695
    %v2345 = vpow.pop %v2344
    %v2346 = vsel %vm750, %v2345, 0.0
    %2347 = vadd.xlane.f32.xlu0 %v2346
    %v2348 = vpop.xlane.xlu0 %2347
    %v2349 = vrcp.pop %v2348
    %v2350 = vmul.f32 %v2345, %v2349
    %2351 = vrot.lane.b32.xlu0 %v2033, 80
    %v2352 = vpop.permute.xlu0 %2351
    %v2355 = vsel %vm750, %v2350, 0
    %2357 = vmatpush.msra.mxu0 0.0
    %2358 = vmatpush.msra.mxu0 0.0
    %2359 = vmatpush.msra.mxu0 0.0
    %2360 = vmatpush.msra.mxu0 0.0
    %2361 = vmatpush.msra.mxu0 0.0
    %2362 = vmatpush.msra.mxu0 0.0
    %2363 = vmatpush.msra.mxu0 0.0
    %2364 = vmatpush.msra.mxu0 0.0
    %2365 = vmatpush.msra.mxu0 0.0
    %2366 = vmatpush.msra.mxu0 0.0
    %2367 = vmatpush.msra.mxu0 0.0
    %2368 = vmatpush.msra.mxu0 0.0
    %2369 = vmatpush.msra.mxu0 0.0
    %2370 = vmatpush.msra.mxu0 0.0
    %2371 = vmatpush.msra.mxu0 0.0
    %2372 = vmatpush.msra.mxu0 %v2352
    %2373 = vmatmul.f32.gmra.mxu0 %v2355
    %v2374 = vpop.f32.mrf.mxu0
    %v2375 = vadd.f32 0.0, %v2374
    %2376 = vdwg.mxu0
    %v2377 = vpack.c.bf16 %v2375, %v2375
    %v2378 = vld [vmem:[%s2099 + $0x18] sm:$0xf]
    %v2379 = vld [vmem:[%s2099 + $0x1c] sm:$0xf]
    %v2382 = vunpack.c.l.b16 %v2378
    %v2383 = vunpack.c.l.b16 %v2379
    %v2384 = vpack.c.b16 %v2383, %v2382
    %v2387 = vsel %vm721, %v2377, 0
    %2389 = vmatpush.bf16.msra.mxu0 0
    %2390 = vmatpush.bf16.msra.mxu0 0
    %2391 = vmatpush.bf16.msra.mxu0 0
    %2392 = vmatpush.bf16.msra.mxu0 0
    %2393 = vmatpush.bf16.msra.mxu0 0
    %2394 = vmatpush.bf16.msra.mxu0 0
    %2395 = vmatpush.bf16.msra.mxu0 0
    %2396 = vmatpush.bf16.msra.mxu0 %v2384
    %2397 = vmatmul.bf16.gmra.mxu0 %v2387
    %v2398 = vpop.f32.mrf.mxu0
    %v2399 = vadd.f32 0.0, %v2398
    %v2400 = vpop.f32.mrf.mxu0
    %2401 = vdwg.mxu0
    %v2402 = vadd.f32 %v2309, %v2399
    %2403 = vrot.lane.b32.xlu0 %v2007, 64
    %v2404 = vpop.permute.xlu0 %2403
    %2405 = vrot.lane.b32.xlu0 %v2020, 64
    %v2406 = vpop.permute.xlu0 %2405
    %v2407 = vsel %vm721, %v2404, 0
    %v2409 = vsel %vm721, %v2406, 0
    %2411 = vmatpush.xpose.msra.mxu0 0.0
    %2412 = vmatpush.xpose.msra.mxu0 0.0
    %2413 = vmatpush.xpose.msra.mxu0 0.0
    %2414 = vmatpush.xpose.msra.mxu0 0.0
    %2415 = vmatpush.xpose.msra.mxu0 0.0
    %2416 = vmatpush.xpose.msra.mxu0 0.0
    %2417 = vmatpush.xpose.msra.mxu0 0.0
    %2418 = vmatpush.xpose.msra.mxu0 0.0
    %2419 = vmatpush.xpose.msra.mxu0 0.0
    %2420 = vmatpush.xpose.msra.mxu0 0.0
    %2421 = vmatpush.xpose.msra.mxu0 0.0
    %2422 = vmatpush.xpose.msra.mxu0 0.0
    %2423 = vmatpush.xpose.msra.mxu0 0.0
    %2424 = vmatpush.xpose.msra.mxu0 0.0
    %2425 = vmatpush.xpose.msra.mxu0 0.0
    %2426 = vmatpush.xpose.msra.mxu0 %v2409
    %2427 = vmatmul.f32.gmra.mxu0 %v2407
    %v2428 = vpop.f32.mrf.mxu0
    %v2429 = vadd.f32 0.0, %v2428
    %2430 = vdwg.mxu0
    %v2431 = vmul.f32 %v2429, 0.25
    %v2432 = vadd.f32 %v2431, %v512
    %v2433 = vsel %vm750, %v2432, -inf
    %2434 = vmax.xlane.f32.xlu0 %v2433
    %v2435 = vpop.xlane.xlu0 %2434
    %v2436 = vsub.f32 %v2432, %v2435
    %v2437 = vmul.f32 %v2436, 1.442695
    %v2438 = vpow.pop %v2437
    %v2439 = vsel %vm750, %v2438, 0.0
    %2440 = vadd.xlane.f32.xlu0 %v2439
    %v2441 = vpop.xlane.xlu0 %2440
    %v2442 = vrcp.pop %v2441
    %v2443 = vmul.f32 %v2438, %v2442
    %2444 = vrot.lane.b32.xlu0 %v2033, 64
    %v2445 = vpop.permute.xlu0 %2444
    %v2448 = vsel %vm750, %v2443, 0
    %2450 = vmatpush.msra.mxu0 0.0
    %2451 = vmatpush.msra.mxu0 0.0
    %2452 = vmatpush.msra.mxu0 0.0
    %2453 = vmatpush.msra.mxu0 0.0
    %2454 = vmatpush.msra.mxu0 0.0
    %2455 = vmatpush.msra.mxu0 0.0
    %2456 = vmatpush.msra.mxu0 0.0
    %2457 = vmatpush.msra.mxu0 0.0
    %2458 = vmatpush.msra.mxu0 0.0
    %2459 = vmatpush.msra.mxu0 0.0
    %2460 = vmatpush.msra.mxu0 0.0
    %2461 = vmatpush.msra.mxu0 0.0
    %2462 = vmatpush.msra.mxu0 0.0
    %2463 = vmatpush.msra.mxu0 0.0
    %2464 = vmatpush.msra.mxu0 0.0
    %2465 = vmatpush.msra.mxu0 %v2445
    %2466 = vmatmul.f32.gmra.mxu0 %v2448
    %v2467 = vpop.f32.mrf.mxu0
    %v2468 = vadd.f32 0.0, %v2467
    %2469 = vdwg.mxu0
    %v2470 = vpack.c.bf16 %v2468, %v2468
    %v2471 = vld [vmem:[%s2099 + $0x20] sm:$0xf]
    %v2472 = vld [vmem:[%s2099 + $0x24] sm:$0xf]
    %v2475 = vunpack.c.l.b16 %v2471
    %v2476 = vunpack.c.l.b16 %v2472
    %v2477 = vpack.c.b16 %v2476, %v2475
    %v2480 = vsel %vm721, %v2470, 0
    %2482 = vmatpush.bf16.msra.mxu0 0
    %2483 = vmatpush.bf16.msra.mxu0 0
    %2484 = vmatpush.bf16.msra.mxu0 0
    %2485 = vmatpush.bf16.msra.mxu0 0
    %2486 = vmatpush.bf16.msra.mxu0 0
    %2487 = vmatpush.bf16.msra.mxu0 0
    %2488 = vmatpush.bf16.msra.mxu0 0
    %2489 = vmatpush.bf16.msra.mxu0 %v2477
    %2490 = vmatmul.bf16.gmra.mxu0 %v2480
    %v2491 = vpop.f32.mrf.mxu0
    %v2492 = vadd.f32 0.0, %v2491
    %v2493 = vpop.f32.mrf.mxu0
    %2494 = vdwg.mxu0
    %v2495 = vadd.f32 %v2402, %v2492
    %2496 = vrot.lane.b32.xlu0 %v2007, 48
    %v2497 = vpop.permute.xlu0 %2496
    %2498 = vrot.lane.b32.xlu0 %v2020, 48
    %v2499 = vpop.permute.xlu0 %2498
    %v2500 = vsel %vm721, %v2497, 0
    %v2502 = vsel %vm721, %v2499, 0
    %2504 = vmatpush.xpose.msra.mxu0 0.0
    %2505 = vmatpush.xpose.msra.mxu0 0.0
    %2506 = vmatpush.xpose.msra.mxu0 0.0
    %2507 = vmatpush.xpose.msra.mxu0 0.0
    %2508 = vmatpush.xpose.msra.mxu0 0.0
    %2509 = vmatpush.xpose.msra.mxu0 0.0
    %2510 = vmatpush.xpose.msra.mxu0 0.0
    %2511 = vmatpush.xpose.msra.mxu0 0.0
    %2512 = vmatpush.xpose.msra.mxu0 0.0
    %2513 = vmatpush.xpose.msra.mxu0 0.0
    %2514 = vmatpush.xpose.msra.mxu0 0.0
    %2515 = vmatpush.xpose.msra.mxu0 0.0
    %2516 = vmatpush.xpose.msra.mxu0 0.0
    %2517 = vmatpush.xpose.msra.mxu0 0.0
    %2518 = vmatpush.xpose.msra.mxu0 0.0
    %2519 = vmatpush.xpose.msra.mxu0 %v2502
    %2520 = vmatmul.f32.gmra.mxu0 %v2500
    %v2521 = vpop.f32.mrf.mxu0
    %v2522 = vadd.f32 0.0, %v2521
    %2523 = vdwg.mxu0
    %v2524 = vmul.f32 %v2522, 0.25
    %v2525 = vadd.f32 %v2524, %v512
    %v2526 = vsel %vm750, %v2525, -inf
    %2527 = vmax.xlane.f32.xlu0 %v2526
    %v2528 = vpop.xlane.xlu0 %2527
    %v2529 = vsub.f32 %v2525, %v2528
    %v2530 = vmul.f32 %v2529, 1.442695
    %v2531 = vpow.pop %v2530
    %v2532 = vsel %vm750, %v2531, 0.0
    %2533 = vadd.xlane.f32.xlu0 %v2532
    %v2534 = vpop.xlane.xlu0 %2533
    %v2535 = vrcp.pop %v2534
    %v2536 = vmul.f32 %v2531, %v2535
    %2537 = vrot.lane.b32.xlu0 %v2033, 48
    %v2538 = vpop.permute.xlu0 %2537
    %v2541 = vsel %vm750, %v2536, 0
    %2543 = vmatpush.msra.mxu0 0.0
    %2544 = vmatpush.msra.mxu0 0.0
    %2545 = vmatpush.msra.mxu0 0.0
    %2546 = vmatpush.msra.mxu0 0.0
    %2547 = vmatpush.msra.mxu0 0.0
    %2548 = vmatpush.msra.mxu0 0.0
    %2549 = vmatpush.msra.mxu0 0.0
    %2550 = vmatpush.msra.mxu0 0.0
    %2551 = vmatpush.msra.mxu0 0.0
    %2552 = vmatpush.msra.mxu0 0.0
    %2553 = vmatpush.msra.mxu0 0.0
    %2554 = vmatpush.msra.mxu0 0.0
    %2555 = vmatpush.msra.mxu0 0.0
    %2556 = vmatpush.msra.mxu0 0.0
    %2557 = vmatpush.msra.mxu0 0.0
    %2558 = vmatpush.msra.mxu0 %v2538
    %2559 = vmatmul.f32.gmra.mxu0 %v2541
    %v2560 = vpop.f32.mrf.mxu0
    %v2561 = vadd.f32 0.0, %v2560
    %2562 = vdwg.mxu0
    %v2563 = vpack.c.bf16 %v2561, %v2561
    %v2564 = vld [vmem:[%s2099 + $0x28] sm:$0xf]
    %v2565 = vld [vmem:[%s2099 + $0x2c] sm:$0xf]
    %v2568 = vunpack.c.l.b16 %v2564
    %v2569 = vunpack.c.l.b16 %v2565
    %v2570 = vpack.c.b16 %v2569, %v2568
    %v2573 = vsel %vm721, %v2563, 0
    %2575 = vmatpush.bf16.msra.mxu0 0
    %2576 = vmatpush.bf16.msra.mxu0 0
    %2577 = vmatpush.bf16.msra.mxu0 0
    %2578 = vmatpush.bf16.msra.mxu0 0
    %2579 = vmatpush.bf16.msra.mxu0 0
    %2580 = vmatpush.bf16.msra.mxu0 0
    %2581 = vmatpush.bf16.msra.mxu0 0
    %2582 = vmatpush.bf16.msra.mxu0 %v2570
    %2583 = vmatmul.bf16.gmra.mxu0 %v2573
    %v2584 = vpop.f32.mrf.mxu0
    %v2585 = vadd.f32 0.0, %v2584
    %v2586 = vpop.f32.mrf.mxu0
    %2587 = vdwg.mxu0
    %v2588 = vadd.f32 %v2495, %v2585
    %2589 = vrot.lane.b32.xlu0 %v2007, 32
    %v2590 = vpop.permute.xlu0 %2589
    %2591 = vrot.lane.b32.xlu0 %v2020, 32
    %v2592 = vpop.permute.xlu0 %2591
    %v2593 = vsel %vm721, %v2590, 0
    %v2595 = vsel %vm721, %v2592, 0
    %2597 = vmatpush.xpose.msra.mxu0 0.0
    %2598 = vmatpush.xpose.msra.mxu0 0.0
    %2599 = vmatpush.xpose.msra.mxu0 0.0
    %2600 = vmatpush.xpose.msra.mxu0 0.0
    %2601 = vmatpush.xpose.msra.mxu0 0.0
    %2602 = vmatpush.xpose.msra.mxu0 0.0
    %2603 = vmatpush.xpose.msra.mxu0 0.0
    %2604 = vmatpush.xpose.msra.mxu0 0.0
    %2605 = vmatpush.xpose.msra.mxu0 0.0
    %2606 = vmatpush.xpose.msra.mxu0 0.0
    %2607 = vmatpush.xpose.msra.mxu0 0.0
    %2608 = vmatpush.xpose.msra.mxu0 0.0
    %2609 = vmatpush.xpose.msra.mxu0 0.0
    %2610 = vmatpush.xpose.msra.mxu0 0.0
    %2611 = vmatpush.xpose.msra.mxu0 0.0
    %2612 = vmatpush.xpose.msra.mxu0 %v2595
    %2613 = vmatmul.f32.gmra.mxu0 %v2593
    %v2614 = vpop.f32.mrf.mxu0
    %v2615 = vadd.f32 0.0, %v2614
    %2616 = vdwg.mxu0
    %v2617 = vmul.f32 %v2615, 0.25
    %v2618 = vadd.f32 %v2617, %v512
    %v2619 = vsel %vm750, %v2618, -inf
    %2620 = vmax.xlane.f32.xlu0 %v2619
    %v2621 = vpop.xlane.xlu0 %2620
    %v2622 = vsub.f32 %v2618, %v2621
    %v2623 = vmul.f32 %v2622, 1.442695
    %v2624 = vpow.pop %v2623
    %v2625 = vsel %vm750, %v2624, 0.0
    %2626 = vadd.xlane.f32.xlu0 %v2625
    %v2627 = vpop.xlane.xlu0 %2626
    %v2628 = vrcp.pop %v2627
    %v2629 = vmul.f32 %v2624, %v2628
    %2630 = vrot.lane.b32.xlu0 %v2033, 32
    %v2631 = vpop.permute.xlu0 %2630
    %v2634 = vsel %vm750, %v2629, 0
    %2636 = vmatpush.msra.mxu0 0.0
    %2637 = vmatpush.msra.mxu0 0.0
    %2638 = vmatpush.msra.mxu0 0.0
    %2639 = vmatpush.msra.mxu0 0.0
    %2640 = vmatpush.msra.mxu0 0.0
    %2641 = vmatpush.msra.mxu0 0.0
    %2642 = vmatpush.msra.mxu0 0.0
    %2643 = vmatpush.msra.mxu0 0.0
    %2644 = vmatpush.msra.mxu0 0.0
    %2645 = vmatpush.msra.mxu0 0.0
    %2646 = vmatpush.msra.mxu0 0.0
    %2647 = vmatpush.msra.mxu0 0.0
    %2648 = vmatpush.msra.mxu0 0.0
    %2649 = vmatpush.msra.mxu0 0.0
    %2650 = vmatpush.msra.mxu0 0.0
    %2651 = vmatpush.msra.mxu0 %v2631
    %2652 = vmatmul.f32.gmra.mxu0 %v2634
    %v2653 = vpop.f32.mrf.mxu0
    %v2654 = vadd.f32 0.0, %v2653
    %2655 = vdwg.mxu0
    %v2656 = vpack.c.bf16 %v2654, %v2654
    %v2657 = vld [vmem:[%s2099 + $0x30] sm:$0xf]
    %v2658 = vld [vmem:[%s2099 + $0x34] sm:$0xf]
    %v2661 = vunpack.c.l.b16 %v2657
    %v2662 = vunpack.c.l.b16 %v2658
    %v2663 = vpack.c.b16 %v2662, %v2661
    %v2666 = vsel %vm721, %v2656, 0
    %2668 = vmatpush.bf16.msra.mxu0 0
    %2669 = vmatpush.bf16.msra.mxu0 0
    %2670 = vmatpush.bf16.msra.mxu0 0
    %2671 = vmatpush.bf16.msra.mxu0 0
    %2672 = vmatpush.bf16.msra.mxu0 0
    %2673 = vmatpush.bf16.msra.mxu0 0
    %2674 = vmatpush.bf16.msra.mxu0 0
    %2675 = vmatpush.bf16.msra.mxu0 %v2663
    %2676 = vmatmul.bf16.gmra.mxu0 %v2666
    %v2677 = vpop.f32.mrf.mxu0
    %v2678 = vadd.f32 0.0, %v2677
    %v2679 = vpop.f32.mrf.mxu0
    %2680 = vdwg.mxu0
    %v2681 = vadd.f32 %v2588, %v2678
    %2682 = vrot.lane.b32.xlu0 %v2007, 16
    %v2683 = vpop.permute.xlu0 %2682
    %2684 = vrot.lane.b32.xlu0 %v2020, 16
    %v2685 = vpop.permute.xlu0 %2684
    %v2686 = vsel %vm721, %v2683, 0
    %v2688 = vsel %vm721, %v2685, 0
    %2690 = vmatpush.xpose.msra.mxu0 0.0
    %2691 = vmatpush.xpose.msra.mxu0 0.0
    %2692 = vmatpush.xpose.msra.mxu0 0.0
    %2693 = vmatpush.xpose.msra.mxu0 0.0
    %2694 = vmatpush.xpose.msra.mxu0 0.0
    %2695 = vmatpush.xpose.msra.mxu0 0.0
    %2696 = vmatpush.xpose.msra.mxu0 0.0
    %2697 = vmatpush.xpose.msra.mxu0 0.0
    %2698 = vmatpush.xpose.msra.mxu0 0.0
    %2699 = vmatpush.xpose.msra.mxu0 0.0
    %2700 = vmatpush.xpose.msra.mxu0 0.0
    %2701 = vmatpush.xpose.msra.mxu0 0.0
    %2702 = vmatpush.xpose.msra.mxu0 0.0
    %2703 = vmatpush.xpose.msra.mxu0 0.0
    %2704 = vmatpush.xpose.msra.mxu0 0.0
    %2705 = vmatpush.xpose.msra.mxu0 %v2688
    %2706 = vmatmul.f32.gmra.mxu0 %v2686
    %v2707 = vpop.f32.mrf.mxu0
    %v2708 = vadd.f32 0.0, %v2707
    %2709 = vdwg.mxu0
    %v2710 = vmul.f32 %v2708, 0.25
    %v2711 = vadd.f32 %v2710, %v512
    %v2712 = vsel %vm750, %v2711, -inf
    %2713 = vmax.xlane.f32.xlu0 %v2712
    %v2714 = vpop.xlane.xlu0 %2713
    %v2715 = vsub.f32 %v2711, %v2714
    %v2716 = vmul.f32 %v2715, 1.442695
    %v2717 = vpow.pop %v2716
    %v2718 = vsel %vm750, %v2717, 0.0
    %2719 = vadd.xlane.f32.xlu0 %v2718
    %v2720 = vpop.xlane.xlu0 %2719
    %v2721 = vrcp.pop %v2720
    %v2722 = vmul.f32 %v2717, %v2721
    %2723 = vrot.lane.b32.xlu0 %v2033, 16
    %v2724 = vpop.permute.xlu0 %2723
    %v2727 = vsel %vm750, %v2722, 0
    %2729 = vmatpush.msra.mxu0 0.0
    %2730 = vmatpush.msra.mxu0 0.0
    %2731 = vmatpush.msra.mxu0 0.0
    %2732 = vmatpush.msra.mxu0 0.0
    %2733 = vmatpush.msra.mxu0 0.0
    %2734 = vmatpush.msra.mxu0 0.0
    %2735 = vmatpush.msra.mxu0 0.0
    %2736 = vmatpush.msra.mxu0 0.0
    %2737 = vmatpush.msra.mxu0 0.0
    %2738 = vmatpush.msra.mxu0 0.0
    %2739 = vmatpush.msra.mxu0 0.0
    %2740 = vmatpush.msra.mxu0 0.0
    %2741 = vmatpush.msra.mxu0 0.0
    %2742 = vmatpush.msra.mxu0 0.0
    %2743 = vmatpush.msra.mxu0 0.0
    %2744 = vmatpush.msra.mxu0 %v2724
    %2745 = vmatmul.f32.gmra.mxu0 %v2727
    %v2746 = vpop.f32.mrf.mxu0
    %v2747 = vadd.f32 0.0, %v2746
    %2748 = vdwg.mxu0
    %v2749 = vpack.c.bf16 %v2747, %v2747
    %v2750 = vld [vmem:[%s2099 + $0x38] sm:$0xf]
    %v2751 = vld [vmem:[%s2099 + $0x3c] sm:$0xf]
    %v2754 = vunpack.c.l.b16 %v2750
    %v2755 = vunpack.c.l.b16 %v2751
    %v2756 = vpack.c.b16 %v2755, %v2754
    %v2759 = vsel %vm721, %v2749, 0
    %2761 = vmatpush.bf16.msra.mxu0 0
    %2762 = vmatpush.bf16.msra.mxu0 0
    %2763 = vmatpush.bf16.msra.mxu0 0
    %2764 = vmatpush.bf16.msra.mxu0 0
    %2765 = vmatpush.bf16.msra.mxu0 0
    %2766 = vmatpush.bf16.msra.mxu0 0
    %2767 = vmatpush.bf16.msra.mxu0 0
    %2768 = vmatpush.bf16.msra.mxu0 %v2756
    %2769 = vmatmul.bf16.gmra.mxu0 %v2759
    %v2770 = vpop.f32.mrf.mxu0
    %v2771 = vadd.f32 0.0, %v2770
    %v2772 = vpop.f32.mrf.mxu0
    %2773 = vdwg.mxu0
    %v2774 = vadd.f32 %v2681, %v2771
    %s2775 = scalar_lea.vmem %s6, 1
    %v2776 = vld [vmem:[%s2775] sm:$0x1]
    %v2778 = vperm.slane %v2776, 0
    %v2780 = vadd.f32 %v2774, %v2778
    %v2781 = vadd.f32 %v1825, %v2780
    %2782 = vadd.xlane.f32.xlu0 %v2781
    %v2783 = vpop.xlane.xlu0 %2782
    %v2784 = vmul.f32 %v2783, %v1475
    %v2785 = vsub.f32 %v2781, %v2784
    %v2786 = vmul.f32 %v2785, %v2785
    %2787 = vadd.xlane.f32.xlu0 %v2786
    %v2788 = vpop.xlane.xlu0 %2787
    %v2789 = vmul.f32 %v2788, %v1475
    %v2790 = vadd.f32 %v2789, 1e-05
    %v2791 = vrsqrt.pop %v2790
    %v2792 = vmul.f32 %v2791, %v2790
    %v2793 = vmul.f32 %v2792, %v2791
    %v2794 = vmul.f32 0.5, %v2793
    %v2795 = vsub.f32 1.5, %v2794
    %v2796 = vmul.f32 %v2791, %v2795
    %vm2797 = vweird.f32 %v2790
    %vm2798 = vweird.f32 %v2791
    %vm2799 = vmor %vm2797, %vm2798
    %v2800 = vsel %vm2799, %v2791, %v2796
    %v2801 = vmul.f32 %v2785, %v2800
    %s2802 = scalar_lea.vmem %s7, 1
    %v2803 = vld [vmem:[%s2802] sm:$0x1]
    %v2805 = vperm.slane %v2803, 0
    %v2807 = vmul.f32 %v2801, %v2805
    %s2808 = scalar_lea.vmem %s8, 1
    %v2809 = vld [vmem:[%s2808] sm:$0x1]
    %v2811 = vperm.slane %v2809, 0
    %v2813 = vadd.f32 %v2807, %v2811
    %v2814 = vpack.c.bf16 %v2813, %v2813
    %s2815 = scalar_lea.vmem %s9, 128
    %v2816 = vld [vmem:[%s2815] sm:$0xff]
    %v2817 = vld [vmem:[%s2815 + $0x8] sm:$0xff]
    %v2818 = vld [vmem:[%s2815 + $0x10] sm:$0xff]
    %v2819 = vld [vmem:[%s2815 + $0x18] sm:$0xff]
    %v2820 = vld [vmem:[%s2815 + $0x20] sm:$0xff]
    %v2821 = vld [vmem:[%s2815 + $0x28] sm:$0xff]
    %v2822 = vld [vmem:[%s2815 + $0x30] sm:$0xff]
    %v2823 = vld [vmem:[%s2815 + $0x38] sm:$0xff]
    %v2824 = vld [vmem:[%s2815 + $0x40] sm:$0xff]
    %v2825 = vld [vmem:[%s2815 + $0x48] sm:$0xff]
    %v2826 = vld [vmem:[%s2815 + $0x50] sm:$0xff]
    %v2827 = vld [vmem:[%s2815 + $0x58] sm:$0xff]
    %v2828 = vld [vmem:[%s2815 + $0x60] sm:$0xff]
    %v2829 = vld [vmem:[%s2815 + $0x68] sm:$0xff]
    %v2830 = vld [vmem:[%s2815 + $0x70] sm:$0xff]
    %v2831 = vld [vmem:[%s2815 + $0x78] sm:$0xff]
    %s2832 = scalar_lea.vmem %s10, 2
    %v2833 = vld [vmem:[%s2832] sm:$0x3]
    %v2835 = vperm.slane %v2833, 0
    %v2836 = vperm.slane %v2833, 1
    %v2855 = vunpack.c.l.b16 %v2816
    %v2856 = vunpack.c.h.b16 %v2816
    %v2857 = vunpack.c.l.b16 %v2817
    %v2858 = vunpack.c.h.b16 %v2817
    %v2859 = vunpack.c.l.b16 %v2818
    %v2860 = vunpack.c.h.b16 %v2818
    %v2861 = vunpack.c.l.b16 %v2819
    %v2862 = vunpack.c.h.b16 %v2819
    %v2863 = vunpack.c.l.b16 %v2820
    %v2864 = vunpack.c.h.b16 %v2820
    %v2865 = vunpack.c.l.b16 %v2821
    %v2866 = vunpack.c.h.b16 %v2821
    %v2867 = vunpack.c.l.b16 %v2822
    %v2868 = vunpack.c.h.b16 %v2822
    %v2869 = vunpack.c.l.b16 %v2823
    %v2870 = vunpack.c.h.b16 %v2823
    %v2871 = vunpack.c.l.b16 %v2824
    %v2872 = vunpack.c.h.b16 %v2824
    %v2873 = vunpack.c.l.b16 %v2825
    %v2874 = vunpack.c.h.b16 %v2825
    %v2875 = vunpack.c.l.b16 %v2826
    %v2876 = vunpack.c.h.b16 %v2826
    %v2877 = vunpack.c.l.b16 %v2827
    %v2878 = vunpack.c.h.b16 %v2827
    %v2879 = vunpack.c.l.b16 %v2828
    %v2880 = vunpack.c.h.b16 %v2828
    %v2881 = vunpack.c.l.b16 %v2829
    %v2882 = vunpack.c.h.b16 %v2829
    %v2883 = vunpack.c.l.b16 %v2830
    %v2884 = vunpack.c.h.b16 %v2830
    %v2885 = vunpack.c.l.b16 %v2831
    %v2886 = vunpack.c.h.b16 %v2831
    %v2887 = vpack.c.b16 %v2857, %v2855
    %v2888 = vpack.c.b16 %v2858, %v2856
    %v2889 = vpack.c.b16 %v2861, %v2859
    %v2890 = vpack.c.b16 %v2862, %v2860
    %v2891 = vpack.c.b16 %v2865, %v2863
    %v2892 = vpack.c.b16 %v2866, %v2864
    %v2893 = vpack.c.b16 %v2869, %v2867
    %v2894 = vpack.c.b16 %v2870, %v2868
    %v2895 = vpack.c.b16 %v2873, %v2871
    %v2896 = vpack.c.b16 %v2874, %v2872
    %v2897 = vpack.c.b16 %v2877, %v2875
    %v2898 = vpack.c.b16 %v2878, %v2876
    %v2899 = vpack.c.b16 %v2881, %v2879
    %v2900 = vpack.c.b16 %v2882, %v2880
    %v2901 = vpack.c.b16 %v2885, %v2883
    %v2902 = vpack.c.b16 %v2886, %v2884
    %2919 = vmatpush.bf16.msra.mxu0 %v2901
    %2920 = vmatpush.bf16.msra.mxu0 %v2899
    %2921 = vmatpush.bf16.msra.mxu0 %v2897
    %2922 = vmatpush.bf16.msra.mxu0 %v2895
    %2923 = vmatpush.bf16.msra.mxu0 %v2893
    %2924 = vmatpush.bf16.msra.mxu0 %v2891
    %2925 = vmatpush.bf16.msra.mxu0 %v2889
    %2926 = vmatpush.bf16.msra.mxu0 %v2887
    %2927 = vmatmul.bf16.gmra.mxu0 %v2814
    %v2928 = vpop.f32.mrf.mxu0
    %v2929 = vadd.f32 %v2835, %v2928
    %v2930 = vpop.f32.mrf.mxu0
    %2931 = vdwg.mxu0
    %2932 = vmatpush.bf16.msra.mxu0 %v2902
    %2933 = vmatpush.bf16.msra.mxu0 %v2900
    %2934 = vmatpush.bf16.msra.mxu0 %v2898
    %2935 = vmatpush.bf16.msra.mxu0 %v2896
    %2936 = vmatpush.bf16.msra.mxu0 %v2894
    %2937 = vmatpush.bf16.msra.mxu0 %v2892
    %2938 = vmatpush.bf16.msra.mxu0 %v2890
    %2939 = vmatpush.bf16.msra.mxu0 %v2888
    %2940 = vmatmul.bf16.gmra.mxu0 %v2814
    %v2941 = vpop.f32.mrf.mxu0
    %v2942 = vadd.f32 %v2836, %v2941
    %v2943 = vpop.f32.mrf.mxu0
    %2944 = vdwg.mxu0
    %v2945 = vmax.f32 %v2929, 0.0
    %v2946 = vmax.f32 %v2942, 0.0
    %v2947 = vpack.c.bf16 %v2945, %v2945
    %v2948 = vpack.c.bf16 %v2946, %v2946
    %s2949 = scalar_lea.vmem [#allocation2], 128
    %v2950 = vld [vmem:[%s2949] sm:$0xf]
    %v2951 = vld [vmem:[%s2949 + $0x4] sm:$0xf]
    %v2952 = vld [vmem:[%s2949 + $0x8] sm:$0xf]
    %v2953 = vld [vmem:[%s2949 + $0xc] sm:$0xf]
    %v2954 = vld [vmem:[%s2949 + $0x10] sm:$0xf]
    %v2955 = vld [vmem:[%s2949 + $0x14] sm:$0xf]
    %v2956 = vld [vmem:[%s2949 + $0x18] sm:$0xf]
    %v2957 = vld [vmem:[%s2949 + $0x1c] sm:$0xf]
    %v2958 = vld [vmem:[%s2949 + $0x20] sm:$0xf]
    %v2959 = vld [vmem:[%s2949 + $0x24] sm:$0xf]
    %v2960 = vld [vmem:[%s2949 + $0x28] sm:$0xf]
    %v2961 = vld [vmem:[%s2949 + $0x2c] sm:$0xf]
    %v2962 = vld [vmem:[%s2949 + $0x30] sm:$0xf]
    %v2963 = vld [vmem:[%s2949 + $0x34] sm:$0xf]
    %v2964 = vld [vmem:[%s2949 + $0x38] sm:$0xf]
    %v2965 = vld [vmem:[%s2949 + $0x3c] sm:$0xf]
    %v2966 = vld [vmem:[%s2949 + $0x40] sm:$0xf]
    %v2967 = vld [vmem:[%s2949 + $0x44] sm:$0xf]
    %v2968 = vld [vmem:[%s2949 + $0x48] sm:$0xf]
    %v2969 = vld [vmem:[%s2949 + $0x4c] sm:$0xf]
    %v2970 = vld [vmem:[%s2949 + $0x50] sm:$0xf]
    %v2971 = vld [vmem:[%s2949 + $0x54] sm:$0xf]
    %v2972 = vld [vmem:[%s2949 + $0x58] sm:$0xf]
    %v2973 = vld [vmem:[%s2949 + $0x5c] sm:$0xf]
    %v2974 = vld [vmem:[%s2949 + $0x60] sm:$0xf]
    %v2975 = vld [vmem:[%s2949 + $0x64] sm:$0xf]
    %v2976 = vld [vmem:[%s2949 + $0x68] sm:$0xf]
    %v2977 = vld [vmem:[%s2949 + $0x6c] sm:$0xf]
    %v2978 = vld [vmem:[%s2949 + $0x70] sm:$0xf]
    %v2979 = vld [vmem:[%s2949 + $0x74] sm:$0xf]
    %v2980 = vld [vmem:[%s2949 + $0x78] sm:$0xf]
    %v2981 = vld [vmem:[%s2949 + $0x7c] sm:$0xf]
    %s2982 = scalar_lea.vmem %s12, 1
    %v2983 = vld [vmem:[%s2982] sm:$0x1]
    %v2985 = vperm.slane %v2983, 0
    %v3019 = vunpack.c.l.b16 %v2950
    %v3020 = vunpack.c.l.b16 %v2951
    %v3021 = vunpack.c.l.b16 %v2952
    %v3022 = vunpack.c.l.b16 %v2953
    %v3023 = vunpack.c.l.b16 %v2954
    %v3024 = vunpack.c.l.b16 %v2955
    %v3025 = vunpack.c.l.b16 %v2956
    %v3026 = vunpack.c.l.b16 %v2957
    %v3027 = vunpack.c.l.b16 %v2958
    %v3028 = vunpack.c.l.b16 %v2959
    %v3029 = vunpack.c.l.b16 %v2960
    %v3030 = vunpack.c.l.b16 %v2961
    %v3031 = vunpack.c.l.b16 %v2962
    %v3032 = vunpack.c.l.b16 %v2963
    %v3033 = vunpack.c.l.b16 %v2964
    %v3034 = vunpack.c.l.b16 %v2965
    %v3035 = vunpack.c.l.b16 %v2966
    %v3036 = vunpack.c.l.b16 %v2967
    %v3037 = vunpack.c.l.b16 %v2968
    %v3038 = vunpack.c.l.b16 %v2969
    %v3039 = vunpack.c.l.b16 %v2970
    %v3040 = vunpack.c.l.b16 %v2971
    %v3041 = vunpack.c.l.b16 %v2972
    %v3042 = vunpack.c.l.b16 %v2973
    %v3043 = vunpack.c.l.b16 %v2974
    %v3044 = vunpack.c.l.b16 %v2975
    %v3045 = vunpack.c.l.b16 %v2976
    %v3046 = vunpack.c.l.b16 %v2977
    %v3047 = vunpack.c.l.b16 %v2978
    %v3048 = vunpack.c.l.b16 %v2979
    %v3049 = vunpack.c.l.b16 %v2980
    %v3050 = vunpack.c.l.b16 %v2981
    %v3051 = vpack.c.b16 %v3020, %v3019
    %v3052 = vpack.c.b16 %v3022, %v3021
    %v3053 = vpack.c.b16 %v3024, %v3023
    %v3054 = vpack.c.b16 %v3026, %v3025
    %v3055 = vpack.c.b16 %v3028, %v3027
    %v3056 = vpack.c.b16 %v3030, %v3029
    %v3057 = vpack.c.b16 %v3032, %v3031
    %v3058 = vpack.c.b16 %v3034, %v3033
    %v3059 = vpack.c.b16 %v3036, %v3035
    %v3060 = vpack.c.b16 %v3038, %v3037
    %v3061 = vpack.c.b16 %v3040, %v3039
    %v3062 = vpack.c.b16 %v3042, %v3041
    %v3063 = vpack.c.b16 %v3044, %v3043
    %v3064 = vpack.c.b16 %v3046, %v3045
    %v3065 = vpack.c.b16 %v3048, %v3047
    %v3066 = vpack.c.b16 %v3050, %v3049
    %3083 = vmatpush.bf16.msra.mxu0 %v3058
    %3084 = vmatpush.bf16.msra.mxu0 %v3057
    %3085 = vmatpush.bf16.msra.mxu0 %v3056
    %3086 = vmatpush.bf16.msra.mxu0 %v3055
    %3087 = vmatpush.bf16.msra.mxu0 %v3054
    %3088 = vmatpush.bf16.msra.mxu0 %v3053
    %3089 = vmatpush.bf16.msra.mxu0 %v3052
    %3090 = vmatpush.bf16.msra.mxu0 %v3051
    %3091 = vmatmul.bf16.gmra.mxu0 %v2947
    %v3092 = vpop.f32.mrf.mxu0
    %v3093 = vadd.f32 %v2985, %v3092
    %v3094 = vpop.f32.mrf.mxu0
    %3095 = vdwg.mxu0
    %3096 = vmatpush.bf16.msra.mxu0 %v3066
    %3097 = vmatpush.bf16.msra.mxu0 %v3065
    %3098 = vmatpush.bf16.msra.mxu0 %v3064
    %3099 = vmatpush.bf16.msra.mxu0 %v3063
    %3100 = vmatpush.bf16.msra.mxu0 %v3062
    %3101 = vmatpush.bf16.msra.mxu0 %v3061
    %3102 = vmatpush.bf16.msra.mxu0 %v3060
    %3103 = vmatpush.bf16.msra.mxu0 %v3059
    %3104 = vmatmul.bf16.gmra.mxu0 %v2948
    %v3105 = vpop.f32.mrf.mxu0
    %v3106 = vadd.f32 %v3093, %v3105
    %v3107 = vpop.f32.mrf.mxu0
    %3108 = vdwg.mxu0
    %v3109 = vadd.f32 %v2813, %v3106
    %3110 = vadd.xlane.f32.xlu0 %v3109
    %v3111 = vpop.xlane.xlu0 %3110
    %v3112 = vmul.f32 %v3111, %v1475
    %v3113 = vsub.f32 %v3109, %v3112
    %v3114 = vmul.f32 %v3113, %v3113
    %3115 = vadd.xlane.f32.xlu0 %v3114
    %v3116 = vpop.xlane.xlu0 %3115
    %v3117 = vmul.f32 %v3116, %v1475
    %v3118 = vadd.f32 %v3117, 1e-05
    %v3119 = vrsqrt.pop %v3118
    %v3120 = vmul.f32 %v3119, %v3118
    %v3121 = vmul.f32 %v3120, %v3119
    %v3122 = vmul.f32 0.5, %v3121
    %v3123 = vsub.f32 1.5, %v3122
    %v3124 = vmul.f32 %v3119, %v3123
    %vm3125 = vweird.f32 %v3118
    %vm3126 = vweird.f32 %v3119
    %vm3127 = vmor %vm3125, %vm3126
    %v3128 = vsel %vm3127, %v3119, %v3124
    %v3129 = vmul.f32 %v3113, %v3128
    %s3130 = scalar_lea.vmem %s13, 1
    %v3131 = vld [vmem:[%s3130] sm:$0x1]
    %v3133 = vperm.slane %v3131, 0
    %v3135 = vmul.f32 %v3129, %v3133
    %s3136 = scalar_lea.vmem %s14, 1
    %v3137 = vld [vmem:[%s3136] sm:$0x1]
    %v3139 = vperm.slane %v3137, 0
    %v3141 = vadd.f32 %v3135, %v3139
    %v3142 = vld [vmem:[%s20] sm:$0x3]
    %v3144 = vsel %vm750, %v3142, 0
    %3146 = vmatpush.msra.mxu0 0.0
    %3147 = vmatpush.msra.mxu0 0.0
    %3148 = vmatpush.msra.mxu0 0.0
    %3149 = vmatpush.msra.mxu0 0.0
    %3150 = vmatpush.msra.mxu0 0.0
    %3151 = vmatpush.msra.mxu0 0.0
    %3152 = vmatpush.msra.mxu0 0.0
    %3153 = vmatpush.msra.mxu0 0.0
    %3154 = vmatpush.msra.mxu0 0.0
    %3155 = vmatpush.msra.mxu0 0.0
    %3156 = vmatpush.msra.mxu0 0.0
    %3157 = vmatpush.msra.mxu0 0.0
    %3158 = vmatpush.msra.mxu0 0.0
    %3159 = vmatpush.msra.mxu0 0.0
    %3160 = vmatpush.msra.mxu0 0.0
    %3161 = vmatpush.msra.mxu0 %v3141
    %3162 = vmatmul.f32.gmra.mxu0 %v3144
    %v3163 = vpop.f32.mrf.mxu0
    %v3164 = vadd.f32 0.0, %v3163
    %3165 = vdwg.mxu0
    %vm3166 = vcmask 1041408
    %v3167 = vsel %vm3166, %v3164, 0.0
    %3168 = vadd.xlane.f32.xlu0 %v3167
    %v3169 = vpop.xlane.xlu0 %3168
    %v3170 = vmul.f32 %v3169, %v1475
    %v3171 = vsub.f32 %v3164, %v3170
    %v3172 = vmul.f32 %v3171, %v3171
    %v3173 = vsel %vm3166, %v3172, 0.0
    %3174 = vadd.xlane.f32.xlu0 %v3173
    %v3175 = vpop.xlane.xlu0 %3174
    %v3176 = vmul.f32 %v3175, %v1475
    %v3177 = vadd.f32 %v3176, 1e-05
    %v3178 = vrsqrt.pop %v3177
    %v3179 = vmul.f32 %v3178, %v3177
    %v3180 = vmul.f32 %v3179, %v3178
    %v3181 = vmul.f32 0.5, %v3180
    %v3182 = vsub.f32 1.5, %v3181
    %v3183 = vmul.f32 %v3178, %v3182
    %vm3184 = vweird.f32 %v3177
    %vm3185 = vweird.f32 %v3178
    %vm3186 = vmor %vm3184, %vm3185
    %v3187 = vsel %vm3186, %v3178, %v3183
    %v3188 = vmul.f32 %v3171, %v3187
    %v3189 = vld [vmem:[%s15] sm:$0x1]
    %v3191 = vperm.slane %v3189, 0
    %v3193 = vmul.f32 %v3188, %v3191
    %v3194 = vld [vmem:[%s16] sm:$0x1]
    %v3196 = vperm.slane %v3194, 0
    %v3198 = vadd.f32 %v3193, %v3196
    %v3199 = vpack.c.bf16 %v3198, %v3198
    %v3200 = vld [vmem:[#allocation5] sm:$0xf]
    %v3201 = vld [vmem:[#allocation5 + $0x4] sm:$0xf]
    %v3202 = vld [vmem:[#allocation5 + $0x8] sm:$0xf]
    %v3203 = vld [vmem:[#allocation5 + $0xc] sm:$0xf]
    %v3204 = vld [vmem:[#allocation5 + $0x10] sm:$0xf]
    %v3205 = vld [vmem:[#allocation5 + $0x14] sm:$0xf]
    %v3206 = vld [vmem:[#allocation5 + $0x18] sm:$0xf]
    %v3207 = vld [vmem:[#allocation5 + $0x1c] sm:$0xf]
    %v3208 = vld [vmem:[#allocation5 + $0x20] sm:$0xf]
    %v3209 = vld [vmem:[#allocation5 + $0x24] sm:$0xf]
    %v3210 = vld [vmem:[#allocation5 + $0x28] sm:$0xf]
    %v3211 = vld [vmem:[#allocation5 + $0x2c] sm:$0xf]
    %v3212 = vld [vmem:[#allocation5 + $0x30] sm:$0xf]
    %v3213 = vld [vmem:[#allocation5 + $0x34] sm:$0xf]
    %v3214 = vld [vmem:[#allocation5 + $0x38] sm:$0xf]
    %v3215 = vld [vmem:[#allocation5 + $0x3c] sm:$0xf]
    %v3216 = vld [vmem:[%s18] sm:$0x1]
    %v3218 = vperm.slane %v3216, 0
    %v3236 = vunpack.c.l.b16 %v3200
    %v3237 = vunpack.c.l.b16 %v3201
    %v3238 = vunpack.c.l.b16 %v3202
    %v3239 = vunpack.c.l.b16 %v3203
    %v3240 = vunpack.c.l.b16 %v3204
    %v3241 = vunpack.c.l.b16 %v3205
    %v3242 = vunpack.c.l.b16 %v3206
    %v3243 = vunpack.c.l.b16 %v3207
    %v3244 = vunpack.c.l.b16 %v3208
    %v3245 = vunpack.c.l.b16 %v3209
    %v3246 = vunpack.c.l.b16 %v3210
    %v3247 = vunpack.c.l.b16 %v3211
    %v3248 = vunpack.c.l.b16 %v3212
    %v3249 = vunpack.c.l.b16 %v3213
    %v3250 = vunpack.c.l.b16 %v3214
    %v3251 = vunpack.c.l.b16 %v3215
    %v3252 = vpack.c.b16 %v3237, %v3236
    %v3253 = vpack.c.b16 %v3239, %v3238
    %v3254 = vpack.c.b16 %v3241, %v3240
    %v3255 = vpack.c.b16 %v3243, %v3242
    %v3256 = vpack.c.b16 %v3245, %v3244
    %v3257 = vpack.c.b16 %v3247, %v3246
    %v3258 = vpack.c.b16 %v3249, %v3248
    %v3259 = vpack.c.b16 %v3251, %v3250
    %3268 = vmatpush.bf16.msra.mxu0 %v3259
    %3269 = vmatpush.bf16.msra.mxu0 %v3258
    %3270 = vmatpush.bf16.msra.mxu0 %v3257
    %3271 = vmatpush.bf16.msra.mxu0 %v3256
    %3272 = vmatpush.bf16.msra.mxu0 %v3255
    %3273 = vmatpush.bf16.msra.mxu0 %v3254
    %3274 = vmatpush.bf16.msra.mxu0 %v3253
    %3275 = vmatpush.bf16.msra.mxu0 %v3252
    %3276 = vmatmul.bf16.gmra.mxu0 %v3199
    %v3277 = vpop.f32.mrf.mxu0
    %v3278 = vadd.f32 %v3218, %v3277
    %v3279 = vpop.f32.mrf.mxu0
    %3280 = vdwg.mxu0
    %3281 = vst [vmem:[#allocation7] sm:$0x3] %v3278
    // Predicated region
    $region94: #{custom_image_classifier.1} parent=1 // pred_check
      _
    $region95: #{custom_image_classifier.1} parent=1 // pred_check_branch
      %3283 = sbr.rel (0) target = $region97
    $region96: #{custom_image_classifier.1} parent=1 // pred_region
      %3285 = vsyncadd [#allocation4], 0
      %s3287 = sshll.u32 [#allocation7], 4
      %s3288 = int_to_ptr.vmem [resolvable:$true] %s3287
      %s3289 = sshll.u32 %s21, 4
      %s3290 = int_to_ptr.hbm [resolvable:$true] %s3289
      %3292 = dma.vmem_to_hbm [thread:$0]  %s3288, 32, %s3290, [#allocation4]
    $region97: #{custom_image_classifier.1} parent=1 // pred_fallthru
      _
    // Predicated region
    $region98: #{custom_image_classifier.1} parent=1 // pred_check
      _
    $region99: #{custom_image_classifier.1} parent=1 // pred_check_branch
      %3294 = sbr.rel (0) target = $region101
    $region100: #{custom_image_classifier.1} parent=1 // pred_region
      %3296 = dma.done [#allocation4], 32
    $region101: #{custom_image_classifier.1} parent=1 // pred_fallthru
      _
    %3297 = vsyncpa [#allocation3], 1
    %3298 = vsyncpa [#allocation6], 1
    %3299 = vsyncpa [#allocation4], 1

</llo_original>
